<compile_context>
chip_gen: v5e
topology: v5e:2x2
jax: 0.10.0
libtpu: 0.0.40
codegen_flags: <defaults>
</compile_context>

<pallas_src>
import jax
import jax.numpy as jnp
import numpy as np
from jax.experimental import pallas as pl
from jax.experimental.pallas import tpu as pltpu


def _round_up(n, m):
    return ((n + m - 1) // m) * m


def _tensorcores_per_chip():
    """Best-effort TensorCores-per-chip query (v7x=2, v5e/v6e=1). Defaults to 1."""
    try:
        d = jax.devices()[0]
        nc = getattr(d, "num_cores", None)
        if nc:
            return int(nc)
        kind = (getattr(d, "device_kind", "") or "").lower()
        if "v7" in kind:
            return 2
    except Exception:
        pass
    return 1


# ----------------------------------------------------------------------------
# Kernel: the whole MLP forward, fused.  All weights/biases fit in VMEM.
#   x_ref            : [TB, 784]   (f32, cast to bf16 in-kernel)
#   wN_ref / bN_ref  : [K, N] (bf16) / [1, N] (f32)
#   out_ref          : [TB, N_pad] (lane-dense 128 multiple)
# ----------------------------------------------------------------------------
def mlp_kernel(x_ref,
               w1_ref, b1_ref,
               w2_ref, b2_ref,
               w3_ref, b3_ref,
               w4_ref, b4_ref,
               w5_ref, b5_ref,
               out_ref):
    def hidden(h, w_ref, b_ref):
        # MXU matmul in bf16 with f32 accumulation; bias + ReLU in f32
        # (v5e has no bf16 VPU); cast back to bf16 for the next MXU pass.
        acc = jnp.dot(h, w_ref[...], preferred_element_type=jnp.float32)
        acc = jnp.maximum(acc + b_ref[...], 0.0)
        return acc.astype(w_ref.dtype)

    # In-kernel f32 -> bf16 cast: cheap VPU op, hidden under the matmuls.
    h = x_ref[...].astype(w1_ref.dtype)
    h = hidden(h, w1_ref, b1_ref)
    h = hidden(h, w2_ref, b2_ref)
    h = hidden(h, w3_ref, b3_ref)
    h = hidden(h, w4_ref, b4_ref)

    # output layer: Linear only (no activation), f32 accumulation.
    out = jnp.dot(h, w5_ref[...], preferred_element_type=jnp.float32) + b5_ref[...]
    out_ref[...] = out.astype(out_ref.dtype)


# ----------------------------------------------------------------------------
# Wrapper
# ----------------------------------------------------------------------------
def base_network_forward(x_img, params, *, tile_b=512,
                         compute_dtype=jnp.bfloat16, out_dtype=jnp.float32):
    """x_img: [B, C, H, W] float32.  params: list of (W [in,out], b [1,out]) in f32."""
    B = x_img.shape[0]
    x = x_img.reshape(B, -1).astype(jnp.float32)          # == x.view(x.size(0), -1)
    in_features = x.shape[1]
    num_classes = params[-1][0].shape[1]

    # ---- batch tile selection (multiples of 16: bf16 packs 16 sublanes/vreg) ----
    tb = max(16, min(tile_b, _round_up(B, 16)))
    b_pad = _round_up(B, tb)
    # Dual-TC split only where it pays: v7x (2 TCs/chip) and >=128 rows per step.
    if b_pad // tb < 2 and tb >= 256 and _tensorcores_per_chip() >= 2:
        tb = _round_up(b_pad // 2, 16)
        b_pad = _round_up(B, tb)

    # ---- lane-dense output padding (10 -> 128); no feature-side pad of x ----
    n_pad = _round_up(num_classes, 128)

    # Only pad batch rows when needed (often a no-op); no wrapper dtype cast.
    x_p = x if b_pad == B else jnp.pad(x, ((0, b_pad - B), (0, 0)))

    n_layers = len(params)
    ws, bs = [], []
    for li, (w, b) in enumerate(params):
        w = w.astype(jnp.float32)
        b = b.reshape(1, -1).astype(jnp.float32)
        if li == n_layers - 1:                          # pad output lanes (zeros)
            w = jnp.pad(w, ((0, 0), (0, n_pad - w.shape[1])))
            b = jnp.pad(b, ((0, 0), (0, n_pad - b.shape[1])))
        # TODO(synk): optional fp8 weights on v7x / int8 on v5e-v6e would halve the
        # weight HBM fetch in the small-batch regime (accuracy-dependent).
        ws.append(w.astype(compute_dtype))              # bf16 MXU operand
        bs.append(b)                                    # bias stays f32

    flat_params = []
    for w, b in zip(ws, bs):
        flat_params += [w, b]

    # ---- specs -------------------------------------------------------------
    x_spec = pl.BlockSpec((tb, in_features), lambda i: (i, 0))
    out_spec = pl.BlockSpec((tb, n_pad), lambda i: (i, 0))

    def make_param_specs(single_buffer):
        if single_buffer and hasattr(pl, "Buffered"):
            # Constant across the grid -> no need for a second buffer set.
            return [pl.BlockSpec(p.shape, lambda i: (0, 0),
                                 pipeline_mode=pl.Buffered(1)) for p in flat_params]
        return [pl.BlockSpec(p.shape, lambda i: (0, 0)) for p in flat_params]

    # ---- cost hint for XLA scheduling --------------------------------------
    flops = 2 * b_pad * sum(int(w.shape[0]) * int(w.shape[1]) for w in ws)
    bytes_accessed = (
        int(x_p.size) * x_p.dtype.itemsize
        + sum(int(p.size) * p.dtype.itemsize for p in flat_params)
        + b_pad * n_pad * np.dtype(out_dtype).itemsize
    )

    def run(single_buffer):
        return pl.pallas_call(
            mlp_kernel,
            out_shape=jax.ShapeDtypeStruct((b_pad, n_pad), out_dtype),
            grid_spec=pltpu.PrefetchScalarGridSpec(
                num_scalar_prefetch=0,
                grid=(b_pad // tb,),
                in_specs=[x_spec] + make_param_specs(single_buffer),
                out_specs=out_spec,
            ),
            compiler_params=pltpu.CompilerParams(
                dimension_semantics=("parallel",),
                # a few MB per step even at tb=512; stays well under v7x's 64 MiB VMEM
                vmem_limit_bytes=48 * 1024 * 1024,
            ),
            cost_estimate=pl.CostEstimate(
                flops=flops, transcendentals=0, bytes_accessed=bytes_accessed),
        )(x_p, *flat_params)

    # TODO(synk): for repeated small-B (serving) calls, keep weights VMEM-resident
    # across pallas_calls (cross-call semaphore/VMEM-ref futures) instead of
    # re-DMA-ing ~1.4 MB per call.
    try:
        out = run(True)           # constant weight/bias blocks single-buffered
    except Exception:
        out = run(False)          # fallback: default double-buffered specs

    return out[:B, :num_classes]


# ----------------------------------------------------------------------------
# Parameter init (matches nn.Linear's U(-1/sqrt(fan_in), +1/sqrt(fan_in)))
# ----------------------------------------------------------------------------
def init_linear(key, fan_in, fan_out):
    kw, kb = jax.random.split(key)
    bound = 1.0 / jnp.sqrt(jnp.float32(fan_in))
    w = jax.random.uniform(kw, (fan_in, fan_out), jnp.float32, -bound, bound)
    b = jax.random.uniform(kb, (1, fan_out), jnp.float32, -bound, bound)
    return w, b


def init_params(key, input_size, hidden_sizes, num_classes):
    sizes = [input_size] + hidden_sizes + [num_classes]
    keys = jax.random.split(key, len(sizes) - 1)
    return [init_linear(k, sizes[i], sizes[i + 1]) for i, k in enumerate(keys)]


# Pure-JAX reference.  With compute_dtype=bf16 it mirrors the kernel's rounding
# (bf16 MXU operands, f32 accumulation, f32 bias/ReLU) so tolerances stay tight.
def ref_forward(x_img, params, compute_dtype=jnp.float32):
    h = x_img.reshape(x_img.shape[0], -1).astype(jnp.float32)
    for i, (w, b) in enumerate(params):
        h = jnp.dot(h.astype(compute_dtype), w.astype(compute_dtype),
                    preferred_element_type=jnp.float32) + b.reshape(1, -1)
        if i < len(params) - 1:
            h = jnp.maximum(h, 0.0)
    return h


if __name__ == "__main__":
    key = jax.random.PRNGKey(0)
    k_x, k_p = jax.random.split(key)

    # module defaults: input_size=784 (1x28x28), hidden=[512,256,256,128], classes=10
    B, C, H, W = 32, 1, 28, 28
    input_size = C * H * W
    hidden_sizes = [512, 256, 256, 128]
    num_classes = 10

    x_img = jax.random.normal(k_x, (B, C, H, W), jnp.float32)
    params = init_params(k_p, input_size, hidden_sizes, num_classes)

    out = base_network_forward(x_img, params)
    out = jax.block_until_ready(out)
    assert out.shape == (B, num_classes)

    # bf16-matched reference (same rounding as the kernel) -> tight tolerance.
    ref_bf16 = ref_forward(x_img, params, compute_dtype=jnp.bfloat16)
    assert jnp.allclose(out, ref_bf16, atol=1e-2, rtol=1e-2), "mismatch vs bf16 reference"

    print("KERNEL_OK")
</pallas_src>

<mosaic_0001>
module attributes {stable_mosaic.version = 11 : i64} {
  func.func @mlp_kernel(%arg0: i32, %arg1: memref<32x784xf32, #tpu.memory_space<vmem>>, %arg2: memref<784x512xbf16, #tpu.memory_space<vmem>>, %arg3: memref<1x512xf32, #tpu.memory_space<vmem>>, %arg4: memref<512x256xbf16, #tpu.memory_space<vmem>>, %arg5: memref<1x256xf32, #tpu.memory_space<vmem>>, %arg6: memref<256x256xbf16, #tpu.memory_space<vmem>>, %arg7: memref<1x256xf32, #tpu.memory_space<vmem>>, %arg8: memref<256x128xbf16, #tpu.memory_space<vmem>>, %arg9: memref<1x128xf32, #tpu.memory_space<vmem>>, %arg10: memref<128x128xbf16, #tpu.memory_space<vmem>>, %arg11: memref<1x128xf32, #tpu.memory_space<vmem>>, %arg12: memref<32x128xf32, #tpu.memory_space<vmem>>) attributes {dimension_semantics = [#tpu.dimension_semantics<parallel>], iteration_bounds = array<i64: 1>, scalar_prefetch = 0 : i64, scratch_operands = 0 : i64, tpu.core_type = #tpu.core_type<tc>, window_params = [{transform_indices = @transform_0, window_bounds = array<i64: 32, 784>}, {pipeline_mode = #tpu.pipeline_mode<synchronous>, transform_indices = @transform_1, window_bounds = array<i64: 784, 512>}, {pipeline_mode = #tpu.pipeline_mode<synchronous>, transform_indices = @transform_2, window_bounds = array<i64: 1, 512>}, {pipeline_mode = #tpu.pipeline_mode<synchronous>, transform_indices = @transform_3, window_bounds = array<i64: 512, 256>}, {pipeline_mode = #tpu.pipeline_mode<synchronous>, transform_indices = @transform_4, window_bounds = array<i64: 1, 256>}, {pipeline_mode = #tpu.pipeline_mode<synchronous>, transform_indices = @transform_5, window_bounds = array<i64: 256, 256>}, {pipeline_mode = #tpu.pipeline_mode<synchronous>, transform_indices = @transform_6, window_bounds = array<i64: 1, 256>}, {pipeline_mode = #tpu.pipeline_mode<synchronous>, transform_indices = @transform_7, window_bounds = array<i64: 256, 128>}, {pipeline_mode = #tpu.pipeline_mode<synchronous>, transform_indices = @transform_8, window_bounds = array<i64: 1, 128>}, {pipeline_mode = #tpu.pipeline_mode<synchronous>, transform_indices = @transform_9, window_bounds = array<i64: 128, 128>}, {pipeline_mode = #tpu.pipeline_mode<synchronous>, transform_indices = @transform_10, window_bounds = array<i64: 1, 128>}, {transform_indices = @transform_11, window_bounds = array<i64: 32, 128>}]} {
    %c0 = arith.constant 0 : index
    %c0_0 = arith.constant 0 : index
    %0 = vector.load %arg1[%c0, %c0_0] : memref<32x784xf32, #tpu.memory_space<vmem>>, vector<32x784xf32>
    %1 = arith.truncf %0 : vector<32x784xf32> to vector<32x784xbf16>
    %c0_1 = arith.constant 0 : index
    %c0_2 = arith.constant 0 : index
    %2 = vector.load %arg2[%c0_1, %c0_2] : memref<784x512xbf16, #tpu.memory_space<vmem>>, vector<784x512xbf16>
    %cst = arith.constant dense<0.000000e+00> : vector<32x512xf32>
    %3 = tpu.matmul %1, %2, %cst {dimension_numbers = #tpu.dot_dimension_numbers<[1], [0], [0], [1], [0, 0, 1, 1], [], []>} : vector<32x784xbf16>, vector<784x512xbf16>, vector<32x512xf32> -> vector<32x512xf32>
    %c0_3 = arith.constant 0 : index
    %c0_4 = arith.constant 0 : index
    %4 = vector.load %arg3[%c0_3, %c0_4] : memref<1x512xf32, #tpu.memory_space<vmem>>, vector<1x512xf32>
    %5 = vector.broadcast %4 : vector<1x512xf32> to vector<32x512xf32>
    %6 = arith.addf %3, %5 : vector<32x512xf32>
    %cst_5 = arith.constant 0.000000e+00 : f32
    %7 = vector.broadcast %cst_5 : f32 to vector<32x512xf32>
    %8 = arith.maximumf %6, %7 : vector<32x512xf32>
    %9 = arith.truncf %8 : vector<32x512xf32> to vector<32x512xbf16>
    %c0_6 = arith.constant 0 : index
    %c0_7 = arith.constant 0 : index
    %10 = vector.load %arg4[%c0_6, %c0_7] : memref<512x256xbf16, #tpu.memory_space<vmem>>, vector<512x256xbf16>
    %cst_8 = arith.constant dense<0.000000e+00> : vector<32x256xf32>
    %11 = tpu.matmul %9, %10, %cst_8 {dimension_numbers = #tpu.dot_dimension_numbers<[1], [0], [0], [1], [0, 0, 1, 1], [], []>} : vector<32x512xbf16>, vector<512x256xbf16>, vector<32x256xf32> -> vector<32x256xf32>
    %c0_9 = arith.constant 0 : index
    %c0_10 = arith.constant 0 : index
    %12 = vector.load %arg5[%c0_9, %c0_10] : memref<1x256xf32, #tpu.memory_space<vmem>>, vector<1x256xf32>
    %13 = vector.broadcast %12 : vector<1x256xf32> to vector<32x256xf32>
    %14 = arith.addf %11, %13 : vector<32x256xf32>
    %cst_11 = arith.constant 0.000000e+00 : f32
    %15 = vector.broadcast %cst_11 : f32 to vector<32x256xf32>
    %16 = arith.maximumf %14, %15 : vector<32x256xf32>
    %17 = arith.truncf %16 : vector<32x256xf32> to vector<32x256xbf16>
    %c0_12 = arith.constant 0 : index
    %c0_13 = arith.constant 0 : index
    %18 = vector.load %arg6[%c0_12, %c0_13] : memref<256x256xbf16, #tpu.memory_space<vmem>>, vector<256x256xbf16>
    %cst_14 = arith.constant dense<0.000000e+00> : vector<32x256xf32>
    %19 = tpu.matmul %17, %18, %cst_14 {dimension_numbers = #tpu.dot_dimension_numbers<[1], [0], [0], [1], [0, 0, 1, 1], [], []>} : vector<32x256xbf16>, vector<256x256xbf16>, vector<32x256xf32> -> vector<32x256xf32>
    %c0_15 = arith.constant 0 : index
    %c0_16 = arith.constant 0 : index
    %20 = vector.load %arg7[%c0_15, %c0_16] : memref<1x256xf32, #tpu.memory_space<vmem>>, vector<1x256xf32>
    %21 = vector.broadcast %20 : vector<1x256xf32> to vector<32x256xf32>
    %22 = arith.addf %19, %21 : vector<32x256xf32>
    %cst_17 = arith.constant 0.000000e+00 : f32
    %23 = vector.broadcast %cst_17 : f32 to vector<32x256xf32>
    %24 = arith.maximumf %22, %23 : vector<32x256xf32>
    %25 = arith.truncf %24 : vector<32x256xf32> to vector<32x256xbf16>
    %c0_18 = arith.constant 0 : index
    %c0_19 = arith.constant 0 : index
    %26 = vector.load %arg8[%c0_18, %c0_19] : memref<256x128xbf16, #tpu.memory_space<vmem>>, vector<256x128xbf16>
    %cst_20 = arith.constant dense<0.000000e+00> : vector<32x128xf32>
    %27 = tpu.matmul %25, %26, %cst_20 {dimension_numbers = #tpu.dot_dimension_numbers<[1], [0], [0], [1], [0, 0, 1, 1], [], []>} : vector<32x256xbf16>, vector<256x128xbf16>, vector<32x128xf32> -> vector<32x128xf32>
    %c0_21 = arith.constant 0 : index
    %c0_22 = arith.constant 0 : index
    %28 = vector.load %arg9[%c0_21, %c0_22] : memref<1x128xf32, #tpu.memory_space<vmem>>, vector<1x128xf32>
    %29 = vector.broadcast %28 : vector<1x128xf32> to vector<32x128xf32>
    %30 = arith.addf %27, %29 : vector<32x128xf32>
    %cst_23 = arith.constant 0.000000e+00 : f32
    %31 = vector.broadcast %cst_23 : f32 to vector<32x128xf32>
    %32 = arith.maximumf %30, %31 : vector<32x128xf32>
    %33 = arith.truncf %32 : vector<32x128xf32> to vector<32x128xbf16>
    %c0_24 = arith.constant 0 : index
    %c0_25 = arith.constant 0 : index
    %34 = vector.load %arg10[%c0_24, %c0_25] : memref<128x128xbf16, #tpu.memory_space<vmem>>, vector<128x128xbf16>
    %cst_26 = arith.constant dense<0.000000e+00> : vector<32x128xf32>
    %35 = tpu.matmul %33, %34, %cst_26 {dimension_numbers = #tpu.dot_dimension_numbers<[1], [0], [0], [1], [0, 0, 1, 1], [], []>} : vector<32x128xbf16>, vector<128x128xbf16>, vector<32x128xf32> -> vector<32x128xf32>
    %c0_27 = arith.constant 0 : index
    %c0_28 = arith.constant 0 : index
    %36 = vector.load %arg11[%c0_27, %c0_28] : memref<1x128xf32, #tpu.memory_space<vmem>>, vector<1x128xf32>
    %37 = vector.broadcast %36 : vector<1x128xf32> to vector<32x128xf32>
    %38 = arith.addf %35, %37 : vector<32x128xf32>
    %c0_29 = arith.constant 0 : index
    %c0_30 = arith.constant 0 : index
    %39 = vector.load %arg12[%c0_29, %c0_30] : memref<32x128xf32, #tpu.memory_space<vmem>>, vector<32x128xf32>
    tpu.vector_store %arg12[%c0_29, %c0_30], %38 {strides = array<i32>} : memref<32x128xf32, #tpu.memory_space<vmem>>, vector<32x128xf32>,
    return
  }
  func.func @transform_0(%arg0: i32) -> (i32, i32) {
    %c0_i32 = arith.constant 0 : i32
    %c0_i32_0 = arith.constant 0 : i32
    return %arg0, %c0_i32 : i32, i32
  }
  func.func @transform_1(%arg0: i32) -> (i32, i32) {
    %c0_i32 = arith.constant 0 : i32
    %c0_i32_0 = arith.constant 0 : i32
    %c0_i32_1 = arith.constant 0 : i32
    return %c0_i32, %c0_i32_0 : i32, i32
  }
  func.func @transform_2(%arg0: i32) -> (i32, i32) {
    %c0_i32 = arith.constant 0 : i32
    %c0_i32_0 = arith.constant 0 : i32
    %c0_i32_1 = arith.constant 0 : i32
    return %c0_i32, %c0_i32_0 : i32, i32
  }
  func.func @transform_3(%arg0: i32) -> (i32, i32) {
    %c0_i32 = arith.constant 0 : i32
    %c0_i32_0 = arith.constant 0 : i32
    %c0_i32_1 = arith.constant 0 : i32
    return %c0_i32, %c0_i32_0 : i32, i32
  }
  func.func @transform_4(%arg0: i32) -> (i32, i32) {
    %c0_i32 = arith.constant 0 : i32
    %c0_i32_0 = arith.constant 0 : i32
    %c0_i32_1 = arith.constant 0 : i32
    return %c0_i32, %c0_i32_0 : i32, i32
  }
  func.func @transform_5(%arg0: i32) -> (i32, i32) {
    %c0_i32 = arith.constant 0 : i32
    %c0_i32_0 = arith.constant 0 : i32
    %c0_i32_1 = arith.constant 0 : i32
    return %c0_i32, %c0_i32_0 : i32, i32
  }
  func.func @transform_6(%arg0: i32) -> (i32, i32) {
    %c0_i32 = arith.constant 0 : i32
    %c0_i32_0 = arith.constant 0 : i32
    %c0_i32_1 = arith.constant 0 : i32
    return %c0_i32, %c0_i32_0 : i32, i32
  }
  func.func @transform_7(%arg0: i32) -> (i32, i32) {
    %c0_i32 = arith.constant 0 : i32
    %c0_i32_0 = arith.constant 0 : i32
    %c0_i32_1 = arith.constant 0 : i32
    return %c0_i32, %c0_i32_0 : i32, i32
  }
  func.func @transform_8(%arg0: i32) -> (i32, i32) {
    %c0_i32 = arith.constant 0 : i32
    %c0_i32_0 = arith.constant 0 : i32
    %c0_i32_1 = arith.constant 0 : i32
    return %c0_i32, %c0_i32_0 : i32, i32
  }
  func.func @transform_9(%arg0: i32) -> (i32, i32) {
    %c0_i32 = arith.constant 0 : i32
    %c0_i32_0 = arith.constant 0 : i32
    %c0_i32_1 = arith.constant 0 : i32
    return %c0_i32, %c0_i32_0 : i32, i32
  }
  func.func @transform_10(%arg0: i32) -> (i32, i32) {
    %c0_i32 = arith.constant 0 : i32
    %c0_i32_0 = arith.constant 0 : i32
    %c0_i32_1 = arith.constant 0 : i32
    return %c0_i32, %c0_i32_0 : i32, i32
  }
  func.func @transform_11(%arg0: i32) -> (i32, i32) {
    %c0_i32 = arith.constant 0 : i32
    %c0_i32_0 = arith.constant 0 : i32
    return %arg0, %c0_i32 : i32, i32
  }
}

module attributes {stable_mosaic.version = 11 : i64} {
  func.func @mlp_kernel(%arg0: i32, %arg1: memref<32x784xf32, #tpu.memory_space<vmem>>, %arg2: memref<784x512xbf16, #tpu.memory_space<vmem>>, %arg3: memref<1x512xf32, #tpu.memory_space<vmem>>, %arg4: memref<512x256xbf16, #tpu.memory_space<vmem>>, %arg5: memref<1x256xf32, #tpu.memory_space<vmem>>, %arg6: memref<256x256xbf16, #tpu.memory_space<vmem>>, %arg7: memref<1x256xf32, #tpu.memory_space<vmem>>, %arg8: memref<256x128xbf16, #tpu.memory_space<vmem>>, %arg9: memref<1x128xf32, #tpu.memory_space<vmem>>, %arg10: memref<128x128xbf16, #tpu.memory_space<vmem>>, %arg11: memref<1x128xf32, #tpu.memory_space<vmem>>, %arg12: memref<32x128xf32, #tpu.memory_space<vmem>>) attributes {dimension_semantics = [#tpu.dimension_semantics<parallel>], iteration_bounds = array<i64: 1>, scalar_prefetch = 0 : i64, scratch_operands = 0 : i64, tpu.core_type = #tpu.core_type<tc>, window_params = [{transform_indices = @transform_0, window_bounds = array<i64: 32, 784>}, {pipeline_mode = #tpu.pipeline_mode<synchronous>, transform_indices = @transform_1, window_bounds = array<i64: 784, 512>}, {pipeline_mode = #tpu.pipeline_mode<synchronous>, transform_indices = @transform_2, window_bounds = array<i64: 1, 512>}, {pipeline_mode = #tpu.pipeline_mode<synchronous>, transform_indices = @transform_3, window_bounds = array<i64: 512, 256>}, {pipeline_mode = #tpu.pipeline_mode<synchronous>, transform_indices = @transform_4, window_bounds = array<i64: 1, 256>}, {pipeline_mode = #tpu.pipeline_mode<synchronous>, transform_indices = @transform_5, window_bounds = array<i64: 256, 256>}, {pipeline_mode = #tpu.pipeline_mode<synchronous>, transform_indices = @transform_6, window_bounds = array<i64: 1, 256>}, {pipeline_mode = #tpu.pipeline_mode<synchronous>, transform_indices = @transform_7, window_bounds = array<i64: 256, 128>}, {pipeline_mode = #tpu.pipeline_mode<synchronous>, transform_indices = @transform_8, window_bounds = array<i64: 1, 128>}, {pipeline_mode = #tpu.pipeline_mode<synchronous>, transform_indices = @transform_9, window_bounds = array<i64: 128, 128>}, {pipeline_mode = #tpu.pipeline_mode<synchronous>, transform_indices = @transform_10, window_bounds = array<i64: 1, 128>}, {transform_indices = @transform_11, window_bounds = array<i64: 32, 128>}]} {
    %c0 = arith.constant 0 : index
    %c0_0 = arith.constant 0 : index
    %0 = vector.load %arg1[%c0, %c0_0] : memref<32x784xf32, #tpu.memory_space<vmem>>, vector<32x784xf32>
    %1 = arith.truncf %0 : vector<32x784xf32> to vector<32x784xbf16>
    %c0_1 = arith.constant 0 : index
    %c0_2 = arith.constant 0 : index
    %2 = vector.load %arg2[%c0_1, %c0_2] : memref<784x512xbf16, #tpu.memory_space<vmem>>, vector<784x512xbf16>
    %cst = arith.constant dense<0.000000e+00> : vector<32x512xf32>
    %3 = tpu.matmul %1, %2, %cst {dimension_numbers = #tpu.dot_dimension_numbers<[1], [0], [0], [1], [0, 0, 1, 1], [], []>} : vector<32x784xbf16>, vector<784x512xbf16>, vector<32x512xf32> -> vector<32x512xf32>
    %c0_3 = arith.constant 0 : index
    %c0_4 = arith.constant 0 : index
    %4 = vector.load %arg3[%c0_3, %c0_4] : memref<1x512xf32, #tpu.memory_space<vmem>>, vector<1x512xf32>
    %5 = vector.broadcast %4 : vector<1x512xf32> to vector<32x512xf32>
    %6 = arith.addf %3, %5 : vector<32x512xf32>
    %cst_5 = arith.constant 0.000000e+00 : f32
    %7 = vector.broadcast %cst_5 : f32 to vector<32x512xf32>
    %8 = arith.maximumf %6, %7 : vector<32x512xf32>
    %9 = arith.truncf %8 : vector<32x512xf32> to vector<32x512xbf16>
    %c0_6 = arith.constant 0 : index
    %c0_7 = arith.constant 0 : index
    %10 = vector.load %arg4[%c0_6, %c0_7] : memref<512x256xbf16, #tpu.memory_space<vmem>>, vector<512x256xbf16>
    %cst_8 = arith.constant dense<0.000000e+00> : vector<32x256xf32>
    %11 = tpu.matmul %9, %10, %cst_8 {dimension_numbers = #tpu.dot_dimension_numbers<[1], [0], [0], [1], [0, 0, 1, 1], [], []>} : vector<32x512xbf16>, vector<512x256xbf16>, vector<32x256xf32> -> vector<32x256xf32>
    %c0_9 = arith.constant 0 : index
    %c0_10 = arith.constant 0 : index
    %12 = vector.load %arg5[%c0_9, %c0_10] : memref<1x256xf32, #tpu.memory_space<vmem>>, vector<1x256xf32>
    %13 = vector.broadcast %12 : vector<1x256xf32> to vector<32x256xf32>
    %14 = arith.addf %11, %13 : vector<32x256xf32>
    %cst_11 = arith.constant 0.000000e+00 : f32
    %15 = vector.broadcast %cst_11 : f32 to vector<32x256xf32>
    %16 = arith.maximumf %14, %15 : vector<32x256xf32>
    %17 = arith.truncf %16 : vector<32x256xf32> to vector<32x256xbf16>
    %c0_12 = arith.constant 0 : index
    %c0_13 = arith.constant 0 : index
    %18 = vector.load %arg6[%c0_12, %c0_13] : memref<256x256xbf16, #tpu.memory_space<vmem>>, vector<256x256xbf16>
    %cst_14 = arith.constant dense<0.000000e+00> : vector<32x256xf32>
    %19 = tpu.matmul %17, %18, %cst_14 {dimension_numbers = #tpu.dot_dimension_numbers<[1], [0], [0], [1], [0, 0, 1, 1], [], []>} : vector<32x256xbf16>, vector<256x256xbf16>, vector<32x256xf32> -> vector<32x256xf32>
    %c0_15 = arith.constant 0 : index
    %c0_16 = arith.constant 0 : index
    %20 = vector.load %arg7[%c0_15, %c0_16] : memref<1x256xf32, #tpu.memory_space<vmem>>, vector<1x256xf32>
    %21 = vector.broadcast %20 : vector<1x256xf32> to vector<32x256xf32>
    %22 = arith.addf %19, %21 : vector<32x256xf32>
    %cst_17 = arith.constant 0.000000e+00 : f32
    %23 = vector.broadcast %cst_17 : f32 to vector<32x256xf32>
    %24 = arith.maximumf %22, %23 : vector<32x256xf32>
    %25 = arith.truncf %24 : vector<32x256xf32> to vector<32x256xbf16>
    %c0_18 = arith.constant 0 : index
    %c0_19 = arith.constant 0 : index
    %26 = vector.load %arg8[%c0_18, %c0_19] : memref<256x128xbf16, #tpu.memory_space<vmem>>, vector<256x128xbf16>
    %cst_20 = arith.constant dense<0.000000e+00> : vector<32x128xf32>
    %27 = tpu.matmul %25, %26, %cst_20 {dimension_numbers = #tpu.dot_dimension_numbers<[1], [0], [0], [1], [0, 0, 1, 1], [], []>} : vector<32x256xbf16>, vector<256x128xbf16>, vector<32x128xf32> -> vector<32x128xf32>
    %c0_21 = arith.constant 0 : index
    %c0_22 = arith.constant 0 : index
    %28 = vector.load %arg9[%c0_21, %c0_22] : memref<1x128xf32, #tpu.memory_space<vmem>>, vector<1x128xf32>
    %29 = vector.broadcast %28 : vector<1x128xf32> to vector<32x128xf32>
    %30 = arith.addf %27, %29 : vector<32x128xf32>
    %cst_23 = arith.constant 0.000000e+00 : f32
    %31 = vector.broadcast %cst_23 : f32 to vector<32x128xf32>
    %32 = arith.maximumf %30, %31 : vector<32x128xf32>
    %33 = arith.truncf %32 : vector<32x128xf32> to vector<32x128xbf16>
    %c0_24 = arith.constant 0 : index
    %c0_25 = arith.constant 0 : index
    %34 = vector.load %arg10[%c0_24, %c0_25] : memref<128x128xbf16, #tpu.memory_space<vmem>>, vector<128x128xbf16>
    %cst_26 = arith.constant dense<0.000000e+00> : vector<32x128xf32>
    %35 = tpu.matmul %33, %34, %cst_26 {dimension_numbers = #tpu.dot_dimension_numbers<[1], [0], [0], [1], [0, 0, 1, 1], [], []>} : vector<32x128xbf16>, vector<128x128xbf16>, vector<32x128xf32> -> vector<32x128xf32>
    %c0_27 = arith.constant 0 : index
    %c0_28 = arith.constant 0 : index
    %36 = vector.load %arg11[%c0_27, %c0_28] : memref<1x128xf32, #tpu.memory_space<vmem>>, vector<1x128xf32>
    %37 = vector.broadcast %36 : vector<1x128xf32> to vector<32x128xf32>
    %38 = arith.addf %35, %37 : vector<32x128xf32>
    %c0_29 = arith.constant 0 : index
    %c0_30 = arith.constant 0 : index
    %39 = vector.load %arg12[%c0_29, %c0_30] : memref<32x128xf32, #tpu.memory_space<vmem>>, vector<32x128xf32>
    tpu.vector_store %arg12[%c0_29, %c0_30], %38 {strides = array<i32>} : memref<32x128xf32, #tpu.memory_space<vmem>>, vector<32x128xf32>,
    return
  }
  func.func @transform_0(%arg0: i32) -> (i32, i32) {
    %c0_i32 = arith.constant 0 : i32
    %c0_i32_0 = arith.constant 0 : i32
    return %arg0, %c0_i32 : i32, i32
  }
  func.func @transform_1(%arg0: i32) -> (i32, i32) {
    %c0_i32 = arith.constant 0 : i32
    %c0_i32_0 = arith.constant 0 : i32
    %c0_i32_1 = arith.constant 0 : i32
    return %c0_i32, %c0_i32_0 : i32, i32
  }
  func.func @transform_2(%arg0: i32) -> (i32, i32) {
    %c0_i32 = arith.constant 0 : i32
    %c0_i32_0 = arith.constant 0 : i32
    %c0_i32_1 = arith.constant 0 : i32
    return %c0_i32, %c0_i32_0 : i32, i32
  }
  func.func @transform_3(%arg0: i32) -> (i32, i32) {
    %c0_i32 = arith.constant 0 : i32
    %c0_i32_0 = arith.constant 0 : i32
    %c0_i32_1 = arith.constant 0 : i32
    return %c0_i32, %c0_i32_0 : i32, i32
  }
  func.func @transform_4(%arg0: i32) -> (i32, i32) {
    %c0_i32 = arith.constant 0 : i32
    %c0_i32_0 = arith.constant 0 : i32
    %c0_i32_1 = arith.constant 0 : i32
    return %c0_i32, %c0_i32_0 : i32, i32
  }
  func.func @transform_5(%arg0: i32) -> (i32, i32) {
    %c0_i32 = arith.constant 0 : i32
    %c0_i32_0 = arith.constant 0 : i32
    %c0_i32_1 = arith.constant 0 : i32
    return %c0_i32, %c0_i32_0 : i32, i32
  }
  func.func @transform_6(%arg0: i32) -> (i32, i32) {
    %c0_i32 = arith.constant 0 : i32
    %c0_i32_0 = arith.constant 0 : i32
    %c0_i32_1 = arith.constant 0 : i32
    return %c0_i32, %c0_i32_0 : i32, i32
  }
  func.func @transform_7(%arg0: i32) -> (i32, i32) {
    %c0_i32 = arith.constant 0 : i32
    %c0_i32_0 = arith.constant 0 : i32
    %c0_i32_1 = arith.constant 0 : i32
    return %c0_i32, %c0_i32_0 : i32, i32
  }
  func.func @transform_8(%arg0: i32) -> (i32, i32) {
    %c0_i32 = arith.constant 0 : i32
    %c0_i32_0 = arith.constant 0 : i32
    %c0_i32_1 = arith.constant 0 : i32
    return %c0_i32, %c0_i32_0 : i32, i32
  }
  func.func @transform_9(%arg0: i32) -> (i32, i32) {
    %c0_i32 = arith.constant 0 : i32
    %c0_i32_0 = arith.constant 0 : i32
    %c0_i32_1 = arith.constant 0 : i32
    return %c0_i32, %c0_i32_0 : i32, i32
  }
  func.func @transform_10(%arg0: i32) -> (i32, i32) {
    %c0_i32 = arith.constant 0 : i32
    %c0_i32_0 = arith.constant 0 : i32
    %c0_i32_1 = arith.constant 0 : i32
    return %c0_i32, %c0_i32_0 : i32, i32
  }
  func.func @transform_11(%arg0: i32) -> (i32, i32) {
    %c0_i32 = arith.constant 0 : i32
    %c0_i32_0 = arith.constant 0 : i32
    return %arg0, %c0_i32 : i32, i32
  }
}

</mosaic_0001>

<llo_original>
// kernel: tpu_custom_call.1
$region0: #{tpu_custom_call.1}
  #allocation0 [shape = 'u32[]', space=smem, size = 0x4, offset = 0x4, fixed_abs, tag = 'smem constant byte address 0x4 - core index']
  #allocation1 [shape = 'u32[72,128]{1,0:T(1,128)}', space=vmem, size = 0x9000, scoped, tag = 'internal scratch']
  %s0 = inlined_call_operand.hbm [shape: f32[32,784], index: 0, kind: input, shape index: {}]
  %s1 = inlined_call_operand.hbm [shape: bf16[784,512], index: 1, kind: input, shape index: {}]
  %s2 = inlined_call_operand.hbm [shape: f32[1,512], index: 2, kind: input, shape index: {}]
  %s3 = inlined_call_operand.hbm [shape: bf16[512,256], index: 3, kind: input, shape index: {}]
  %s4 = inlined_call_operand.vmem [shape: f32[1,256], index: 4, kind: input, shape index: {}]
  %s5 = inlined_call_operand.hbm [shape: bf16[256,256], index: 5, kind: input, shape index: {}]
  %s6 = inlined_call_operand.vmem [shape: f32[1,256], index: 6, kind: input, shape index: {}]
  %s7 = inlined_call_operand.hbm [shape: bf16[256,128], index: 7, kind: input, shape index: {}]
  %s8 = inlined_call_operand.vmem [shape: f32[1,128], index: 8, kind: input, shape index: {}]
  %s9 = inlined_call_operand.hbm [shape: bf16[128,128], index: 9, kind: input, shape index: {}]
  %s10 = inlined_call_operand.vmem [shape: f32[1,128], index: 10, kind: input, shape index: {}]
  %s11 = inlined_call_operand.hbm [shape: f32[32,128], index: 11, kind: output, shape index: {}]
  %s12 = sld [smem:[#allocation0]]
  $region82: #{tpu_custom_call.1} parent=0
    _
  %s14 = ssub.s32 1, %s12
  %s15 = scalar_select 0, %s14, %s12
  $region1: #{tpu_custom_call.1} parent=0
    #allocation2 [shape = 'u8[114688]{0}', space=vmem, size = 0x1c000, scoped, tag = 'input window, operand 0, single buffered']
    #allocation3 [shape = 's32[1]{0}', space=sflag, size = 0x4, scoped, tag = 'scoped memory for tpu_custom_call.1']
    #allocation4 [shape = 's32[1]{0}', space=sflag, size = 0x4, scoped, tag = 'scoped memory for tpu_custom_call.1']
    #allocation5 [shape = 'u8[802816]{0}', space=vmem, size = 0xc4000, scoped, tag = 'input window, operand 1, single buffered']
    #allocation6 [shape = 's32[1]{0}', space=sflag, size = 0x4, scoped, tag = 'scoped memory for tpu_custom_call.1']
    #allocation7 [shape = 'u8[2048]{0}', space=vmem, size = 0x800, scoped, tag = 'input window, operand 2, single buffered']
    #allocation8 [shape = 'u8[262144]{0}', space=vmem, size = 0x40000, scoped, tag = 'input window, operand 3, single buffered']
    #allocation9 [shape = 's32[1]{0}', space=sflag, size = 0x4, scoped, tag = 'scoped memory for tpu_custom_call.1']
    #allocation10 [shape = 'u8[131072]{0}', space=vmem, size = 0x20000, scoped, tag = 'input window, operand 5, single buffered']
    #allocation11 [shape = 'u8[65536]{0}', space=vmem, size = 0x10000, scoped, tag = 'input window, operand 7, single buffered']
    #allocation12 [shape = 's32[1]{0}', space=sflag, size = 0x4, scoped, tag = 'scoped memory for tpu_custom_call.1']
    #allocation13 [shape = 'u8[32768]{0}', space=vmem, size = 0x8000, scoped, tag = 'input window, operand 9, single buffered']
    #allocation14 [shape = 'u8[16384]{0}', space=vmem, size = 0x4000, scoped, tag = 'output window, operand 0, single buffered']
    %16 = vsyncpa [#allocation3], 0
    %17 = vsyncpa [#allocation6], 0
    %18 = vsyncpa [#allocation9], 0
    %19 = vsyncpa [#allocation12], 0
    %20 = vsyncpa [#allocation4], 0
    // Predicated region
    $region2: #{tpu_custom_call.1} parent=1 // pred_check
      _
    $region3: #{tpu_custom_call.1} parent=1 // pred_check_branch
      %22 = sbr.rel (0) target = $region5
    $region4: #{tpu_custom_call.1} parent=1 // pred_region
      %24 = vsyncadd [#allocation3], 0
      %s25 = sshll.u32 %s0, 4
      %s26 = int_to_ptr.hbm [resolvable:$true] %s25
      %s27 = sshll.u32 [#allocation2], 4
      %s28 = int_to_ptr.vmem [resolvable:$true] %s27
      %33 = dma.hbm_to_vmem [thread:$0]  %s26, 3584, %s28, [#allocation3], 896, 896, 56
    $region5: #{tpu_custom_call.1} parent=1 // pred_fallthru
      _
    // Predicated region
    $region6: #{tpu_custom_call.1} parent=1 // pred_check
      _
    $region7: #{tpu_custom_call.1} parent=1 // pred_check_branch
      %35 = sbr.rel (0) target = $region9
    $region8: #{tpu_custom_call.1} parent=1 // pred_region
      %37 = vsyncadd [#allocation6], 0
      %s38 = sshll.u32 %s1, 4
      %s39 = int_to_ptr.hbm [resolvable:$true] %s38
      %s40 = sshll.u32 [#allocation5], 4
      %s41 = int_to_ptr.vmem [resolvable:$true] %s40
      %46 = dma.hbm_to_vmem [thread:$0]  %s39, 25088, %s41, [#allocation6], 256, 256, 16
    $region9: #{tpu_custom_call.1} parent=1 // pred_fallthru
      _
    // Predicated region
    $region10: #{tpu_custom_call.1} parent=1 // pred_check
      _
    $region11: #{tpu_custom_call.1} parent=1 // pred_check_branch
      %48 = sbr.rel (0) target = $region13
    $region12: #{tpu_custom_call.1} parent=1 // pred_region
      %50 = vsyncadd [#allocation6], 0
      %s52 = sshll.u32 %s2, 4
      %s53 = int_to_ptr.hbm [resolvable:$true] %s52
      %s54 = sshll.u32 [#allocation7], 4
      %s55 = int_to_ptr.vmem [resolvable:$true] %s54
      %57 = dma.hbm_to_vmem [thread:$0]  %s53, 64, %s55, [#allocation6]
    $region13: #{tpu_custom_call.1} parent=1 // pred_fallthru
      _
    // Predicated region
    $region14: #{tpu_custom_call.1} parent=1 // pred_check
      _
    $region15: #{tpu_custom_call.1} parent=1 // pred_check_branch
      %59 = sbr.rel (0) target = $region17
    $region16: #{tpu_custom_call.1} parent=1 // pred_region
      %61 = vsyncadd [#allocation9], 0
      %s62 = sshll.u32 %s3, 4
      %s63 = int_to_ptr.hbm [resolvable:$true] %s62
      %s64 = sshll.u32 [#allocation8], 4
      %s65 = int_to_ptr.vmem [resolvable:$true] %s64
      %70 = dma.hbm_to_vmem [thread:$0]  %s63, 8192, %s65, [#allocation9], 128, 128, 8
    $region17: #{tpu_custom_call.1} parent=1 // pred_fallthru
      _
    // Predicated region
    $region18: #{tpu_custom_call.1} parent=1 // pred_check
      _
    $region19: #{tpu_custom_call.1} parent=1 // pred_check_branch
      %72 = sbr.rel (0) target = $region21
    $region20: #{tpu_custom_call.1} parent=1 // pred_region
      _
    $region21: #{tpu_custom_call.1} parent=1 // pred_fallthru
      _
    // Predicated region
    $region22: #{tpu_custom_call.1} parent=1 // pred_check
      _
    $region23: #{tpu_custom_call.1} parent=1 // pred_check_branch
      %74 = sbr.rel (0) target = $region25
    $region24: #{tpu_custom_call.1} parent=1 // pred_region
      %76 = vsyncadd [#allocation9], 0
      %s77 = sshll.u32 %s5, 4
      %s78 = int_to_ptr.hbm [resolvable:$true] %s77
      %s79 = sshll.u32 [#allocation10], 4
      %s80 = int_to_ptr.vmem [resolvable:$true] %s79
      %85 = dma.hbm_to_vmem [thread:$0]  %s78, 4096, %s80, [#allocation9], 128, 128, 8
    $region25: #{tpu_custom_call.1} parent=1 // pred_fallthru
      _
    // Predicated region
    $region26: #{tpu_custom_call.1} parent=1 // pred_check
      _
    $region27: #{tpu_custom_call.1} parent=1 // pred_check_branch
      %87 = sbr.rel (0) target = $region29
    $region28: #{tpu_custom_call.1} parent=1 // pred_region
      _
    $region29: #{tpu_custom_call.1} parent=1 // pred_fallthru
      _
    // Predicated region
    $region30: #{tpu_custom_call.1} parent=1 // pred_check
      _
    $region31: #{tpu_custom_call.1} parent=1 // pred_check_branch
      %89 = sbr.rel (0) target = $region33
    $region32: #{tpu_custom_call.1} parent=1 // pred_region
      %91 = vsyncadd [#allocation12], 0
      %s92 = sshll.u32 %s7, 4
      %s93 = int_to_ptr.hbm [resolvable:$true] %s92
      %s94 = sshll.u32 [#allocation11], 4
      %s95 = int_to_ptr.vmem [resolvable:$true] %s94
      %100 = dma.hbm_to_vmem [thread:$0]  %s93, 2048, %s95, [#allocation12], 64, 64, 4
    $region33: #{tpu_custom_call.1} parent=1 // pred_fallthru
      _
    // Predicated region
    $region34: #{tpu_custom_call.1} parent=1 // pred_check
      _
    $region35: #{tpu_custom_call.1} parent=1 // pred_check_branch
      %102 = sbr.rel (0) target = $region37
    $region36: #{tpu_custom_call.1} parent=1 // pred_region
      _
    $region37: #{tpu_custom_call.1} parent=1 // pred_fallthru
      _
    // Predicated region
    $region38: #{tpu_custom_call.1} parent=1 // pred_check
      _
    $region39: #{tpu_custom_call.1} parent=1 // pred_check_branch
      %104 = sbr.rel (0) target = $region41
    $region40: #{tpu_custom_call.1} parent=1 // pred_region
      %106 = vsyncadd [#allocation12], 0
      %s107 = sshll.u32 %s9, 4
      %s108 = int_to_ptr.hbm [resolvable:$true] %s107
      %s109 = sshll.u32 [#allocation13], 4
      %s110 = int_to_ptr.vmem [resolvable:$true] %s109
      %115 = dma.hbm_to_vmem [thread:$0]  %s108, 1024, %s110, [#allocation12], 64, 64, 4
    $region41: #{tpu_custom_call.1} parent=1 // pred_fallthru
      _
    // Predicated region
    $region42: #{tpu_custom_call.1} parent=1 // pred_check
      _
    $region43: #{tpu_custom_call.1} parent=1 // pred_check_branch
      %117 = sbr.rel (0) target = $region45
    $region44: #{tpu_custom_call.1} parent=1 // pred_region
      _
    $region45: #{tpu_custom_call.1} parent=1 // pred_fallthru
      _
    // Predicated region
    $region46: #{tpu_custom_call.1} parent=1 // pred_check
      _
    $region47: #{tpu_custom_call.1} parent=1 // pred_check_branch
      %119 = sbr.rel (0) target = $region49
    $region48: #{tpu_custom_call.1} parent=1 // pred_region
      %121 = dma.done [#allocation3], 3584
    $region49: #{tpu_custom_call.1} parent=1 // pred_fallthru
      _
    // Predicated region
    $region50: #{tpu_custom_call.1} parent=1 // pred_check
      _
    $region51: #{tpu_custom_call.1} parent=1 // pred_check_branch
      %123 = sbr.rel (0) target = $region53
    $region52: #{tpu_custom_call.1} parent=1 // pred_region
      %125 = dma.done [#allocation6], 25088
    $region53: #{tpu_custom_call.1} parent=1 // pred_fallthru
      _
    // Predicated region
    $region54: #{tpu_custom_call.1} parent=1 // pred_check
      _
    $region55: #{tpu_custom_call.1} parent=1 // pred_check_branch
      %127 = sbr.rel (0) target = $region57
    $region56: #{tpu_custom_call.1} parent=1 // pred_region
      %129 = dma.done [#allocation6], 64
    $region57: #{tpu_custom_call.1} parent=1 // pred_fallthru
      _
    // Predicated region
    $region58: #{tpu_custom_call.1} parent=1 // pred_check
      _
    $region59: #{tpu_custom_call.1} parent=1 // pred_check_branch
      %131 = sbr.rel (0) target = $region61
    $region60: #{tpu_custom_call.1} parent=1 // pred_region
      %133 = dma.done [#allocation9], 8192
    $region61: #{tpu_custom_call.1} parent=1 // pred_fallthru
      _
    // Predicated region
    $region62: #{tpu_custom_call.1} parent=1 // pred_check
      _
    $region63: #{tpu_custom_call.1} parent=1 // pred_check_branch
      %135 = sbr.rel (0) target = $region65
    $region64: #{tpu_custom_call.1} parent=1 // pred_region
      %137 = dma.done [#allocation9], 4096
    $region65: #{tpu_custom_call.1} parent=1 // pred_fallthru
      _
    // Predicated region
    $region66: #{tpu_custom_call.1} parent=1 // pred_check
      _
    $region67: #{tpu_custom_call.1} parent=1 // pred_check_branch
      %139 = sbr.rel (0) target = $region69
    $region68: #{tpu_custom_call.1} parent=1 // pred_region
      %141 = dma.done [#allocation12], 2048
    $region69: #{tpu_custom_call.1} parent=1 // pred_fallthru
      _
    // Predicated region
    $region70: #{tpu_custom_call.1} parent=1 // pred_check
      _
    $region71: #{tpu_custom_call.1} parent=1 // pred_check_branch
      %143 = sbr.rel (0) target = $region73
    $region72: #{tpu_custom_call.1} parent=1 // pred_region
      %145 = dma.done [#allocation12], 1024
    $region73: #{tpu_custom_call.1} parent=1 // pred_fallthru
      _
    %v147 = vld [vmem:[#allocation2] sm:$0xff]
    %v148 = vld [vmem:[#allocation2 + $0x8] sm:$0xff]
    %v149 = vld [vmem:[#allocation2 + $0x10] sm:$0xff]
    %v150 = vld [vmem:[#allocation2 + $0x18] sm:$0xff]
    %v151 = vld [vmem:[#allocation2 + $0x20] sm:$0xff]
    %v152 = vld [vmem:[#allocation2 + $0x28] sm:$0xff]
    %v153 = vld [vmem:[#allocation2 + $0x30] sm:$0xff]
    %v154 = vld [vmem:[#allocation2 + $0x38] sm:$0xff]
    %v155 = vld [vmem:[#allocation2 + $0x40] sm:$0xff]
    %v156 = vld [vmem:[#allocation2 + $0x48] sm:$0xff]
    %v157 = vld [vmem:[#allocation2 + $0x50] sm:$0xff]
    %v158 = vld [vmem:[#allocation2 + $0x58] sm:$0xff]
    %v159 = vld [vmem:[#allocation2 + $0x60] sm:$0xff]
    %v160 = vld [vmem:[#allocation2 + $0x68] sm:$0xff]
    %v161 = vld [vmem:[#allocation2 + $0x70] sm:$0xff]
    %v162 = vld [vmem:[#allocation2 + $0x78] sm:$0xff]
    %v163 = vld [vmem:[#allocation2 + $0x80] sm:$0xff]
    %v164 = vld [vmem:[#allocation2 + $0x88] sm:$0xff]
    %v165 = vld [vmem:[#allocation2 + $0x90] sm:$0xff]
    %v166 = vld [vmem:[#allocation2 + $0x98] sm:$0xff]
    %v167 = vld [vmem:[#allocation2 + $0xa0] sm:$0xff]
    %v168 = vld [vmem:[#allocation2 + $0xa8] sm:$0xff]
    %v169 = vld [vmem:[#allocation2 + $0xb0] sm:$0xff]
    %v170 = vld [vmem:[#allocation2 + $0xb8] sm:$0xff]
    %v171 = vld [vmem:[#allocation2 + $0xc0] sm:$0xff]
    %v172 = vld [vmem:[#allocation2 + $0xc8] sm:$0xff]
    %v173 = vld [vmem:[#allocation2 + $0xd0] sm:$0xff]
    %v174 = vld [vmem:[#allocation2 + $0xd8] sm:$0xff]
    %v175 = vpack.c.bf16 %v154, %v147
    %v176 = vpack.c.bf16 %v155, %v148
    %v177 = vpack.c.bf16 %v156, %v149
    %v178 = vpack.c.bf16 %v157, %v150
    %v179 = vpack.c.bf16 %v158, %v151
    %v180 = vpack.c.bf16 %v159, %v152
    %v181 = vpack.c.bf16 %v160, %v153
    %v182 = vpack.c.bf16 %v168, %v161
    %v183 = vpack.c.bf16 %v169, %v162
    %v184 = vpack.c.bf16 %v170, %v163
    %v185 = vpack.c.bf16 %v171, %v164
    %v186 = vpack.c.bf16 %v172, %v165
    %v187 = vpack.c.bf16 %v173, %v166
    %v188 = vpack.c.bf16 %v174, %v167
    %v189 = vld [vmem:[#allocation5] sm:$0xff]
    %v190 = vld [vmem:[#allocation5 + $0x8] sm:$0xff]
    %v191 = vld [vmem:[#allocation5 + $0x10] sm:$0xff]
    %v192 = vld [vmem:[#allocation5 + $0x18] sm:$0xff]
    %v193 = vld [vmem:[#allocation5 + $0x20] sm:$0xff]
    %v194 = vld [vmem:[#allocation5 + $0x28] sm:$0xff]
    %v195 = vld [vmem:[#allocation5 + $0x30] sm:$0xff]
    %v196 = vld [vmem:[#allocation5 + $0x38] sm:$0xff]
    %v197 = vld [vmem:[#allocation5 + $0x40] sm:$0xff]
    %v198 = vld [vmem:[#allocation5 + $0x48] sm:$0xff]
    %v199 = vld [vmem:[#allocation5 + $0x50] sm:$0xff]
    %v200 = vld [vmem:[#allocation5 + $0x58] sm:$0xff]
    %v201 = vld [vmem:[#allocation5 + $0x60] sm:$0xff]
    %v202 = vld [vmem:[#allocation5 + $0x68] sm:$0xff]
    %v203 = vld [vmem:[#allocation5 + $0x70] sm:$0xff]
    %v204 = vld [vmem:[#allocation5 + $0x78] sm:$0xff]
    %v205 = vld [vmem:[#allocation5 + $0x80] sm:$0xff]
    %v206 = vld [vmem:[#allocation5 + $0x88] sm:$0xff]
    %v207 = vld [vmem:[#allocation5 + $0x90] sm:$0xff]
    %v208 = vld [vmem:[#allocation5 + $0x98] sm:$0xff]
    %v209 = vld [vmem:[#allocation5 + $0xa0] sm:$0xff]
    %v210 = vld [vmem:[#allocation5 + $0xa8] sm:$0xff]
    %v211 = vld [vmem:[#allocation5 + $0xb0] sm:$0xff]
    %v212 = vld [vmem:[#allocation5 + $0xb8] sm:$0xff]
    %v213 = vld [vmem:[#allocation5 + $0xc0] sm:$0xff]
    %v214 = vld [vmem:[#allocation5 + $0xc8] sm:$0xff]
    %v215 = vld [vmem:[#allocation5 + $0xd0] sm:$0xff]
    %v216 = vld [vmem:[#allocation5 + $0xd8] sm:$0xff]
    %v217 = vld [vmem:[#allocation5 + $0xe0] sm:$0xff]
    %v218 = vld [vmem:[#allocation5 + $0xe8] sm:$0xff]
    %v219 = vld [vmem:[#allocation5 + $0xf0] sm:$0xff]
    %v220 = vld [vmem:[#allocation5 + $0xf8] sm:$0xff]
    %v221 = vld [vmem:[#allocation5 + $0x100] sm:$0xff]
    %v222 = vld [vmem:[#allocation5 + $0x108] sm:$0xff]
    %v223 = vld [vmem:[#allocation5 + $0x110] sm:$0xff]
    %v224 = vld [vmem:[#allocation5 + $0x118] sm:$0xff]
    %v225 = vld [vmem:[#allocation5 + $0x120] sm:$0xff]
    %v226 = vld [vmem:[#allocation5 + $0x128] sm:$0xff]
    %v227 = vld [vmem:[#allocation5 + $0x130] sm:$0xff]
    %v228 = vld [vmem:[#allocation5 + $0x138] sm:$0xff]
    %v229 = vld [vmem:[#allocation5 + $0x140] sm:$0xff]
    %v230 = vld [vmem:[#allocation5 + $0x148] sm:$0xff]
    %v231 = vld [vmem:[#allocation5 + $0x150] sm:$0xff]
    %v232 = vld [vmem:[#allocation5 + $0x158] sm:$0xff]
    %v233 = vld [vmem:[#allocation5 + $0x160] sm:$0xff]
    %v234 = vld [vmem:[#allocation5 + $0x168] sm:$0xff]
    %v235 = vld [vmem:[#allocation5 + $0x170] sm:$0xff]
    %v236 = vld [vmem:[#allocation5 + $0x178] sm:$0xff]
    %v237 = vld [vmem:[#allocation5 + $0x180] sm:$0xff]
    %v238 = vld [vmem:[#allocation5 + $0x188] sm:$0xff]
    %v239 = vld [vmem:[#allocation5 + $0x190] sm:$0xff]
    %v240 = vld [vmem:[#allocation5 + $0x198] sm:$0xff]
    %v241 = vld [vmem:[#allocation5 + $0x1a0] sm:$0xff]
    %v242 = vld [vmem:[#allocation5 + $0x1a8] sm:$0xff]
    %v243 = vld [vmem:[#allocation5 + $0x1b0] sm:$0xff]
    %v244 = vld [vmem:[#allocation5 + $0x1b8] sm:$0xff]
    %v245 = vld [vmem:[#allocation5 + $0x1c0] sm:$0xff]
    %v246 = vld [vmem:[#allocation5 + $0x1c8] sm:$0xff]
    %v247 = vld [vmem:[#allocation5 + $0x1d0] sm:$0xff]
    %v248 = vld [vmem:[#allocation5 + $0x1d8] sm:$0xff]
    %v249 = vld [vmem:[#allocation5 + $0x1e0] sm:$0xff]
    %v250 = vld [vmem:[#allocation5 + $0x1e8] sm:$0xff]
    %v251 = vld [vmem:[#allocation5 + $0x1f0] sm:$0xff]
    %v252 = vld [vmem:[#allocation5 + $0x1f8] sm:$0xff]
    %v253 = vld [vmem:[#allocation5 + $0x200] sm:$0xff]
    %v254 = vld [vmem:[#allocation5 + $0x208] sm:$0xff]
    %v255 = vld [vmem:[#allocation5 + $0x210] sm:$0xff]
    %v256 = vld [vmem:[#allocation5 + $0x218] sm:$0xff]
    %v257 = vld [vmem:[#allocation5 + $0x220] sm:$0xff]
    %v258 = vld [vmem:[#allocation5 + $0x228] sm:$0xff]
    %v259 = vld [vmem:[#allocation5 + $0x230] sm:$0xff]
    %v260 = vld [vmem:[#allocation5 + $0x238] sm:$0xff]
    %v261 = vld [vmem:[#allocation5 + $0x240] sm:$0xff]
    %v262 = vld [vmem:[#allocation5 + $0x248] sm:$0xff]
    %v263 = vld [vmem:[#allocation5 + $0x250] sm:$0xff]
    %v264 = vld [vmem:[#allocation5 + $0x258] sm:$0xff]
    %v265 = vld [vmem:[#allocation5 + $0x260] sm:$0xff]
    %v266 = vld [vmem:[#allocation5 + $0x268] sm:$0xff]
    %v267 = vld [vmem:[#allocation5 + $0x270] sm:$0xff]
    %v268 = vld [vmem:[#allocation5 + $0x278] sm:$0xff]
    %v269 = vld [vmem:[#allocation5 + $0x280] sm:$0xff]
    %v270 = vld [vmem:[#allocation5 + $0x288] sm:$0xff]
    %v271 = vld [vmem:[#allocation5 + $0x290] sm:$0xff]
    %v272 = vld [vmem:[#allocation5 + $0x298] sm:$0xff]
    %v273 = vld [vmem:[#allocation5 + $0x2a0] sm:$0xff]
    %v274 = vld [vmem:[#allocation5 + $0x2a8] sm:$0xff]
    %v275 = vld [vmem:[#allocation5 + $0x2b0] sm:$0xff]
    %v276 = vld [vmem:[#allocation5 + $0x2b8] sm:$0xff]
    %v277 = vld [vmem:[#allocation5 + $0x2c0] sm:$0xff]
    %v278 = vld [vmem:[#allocation5 + $0x2c8] sm:$0xff]
    %v279 = vld [vmem:[#allocation5 + $0x2d0] sm:$0xff]
    %v280 = vld [vmem:[#allocation5 + $0x2d8] sm:$0xff]
    %v281 = vld [vmem:[#allocation5 + $0x2e0] sm:$0xff]
    %v282 = vld [vmem:[#allocation5 + $0x2e8] sm:$0xff]
    %v283 = vld [vmem:[#allocation5 + $0x2f0] sm:$0xff]
    %v284 = vld [vmem:[#allocation5 + $0x2f8] sm:$0xff]
    %v285 = vld [vmem:[#allocation5 + $0x300] sm:$0xff]
    %v286 = vld [vmem:[#allocation5 + $0x308] sm:$0xff]
    %v287 = vld [vmem:[#allocation5 + $0x310] sm:$0xff]
    %v288 = vld [vmem:[#allocation5 + $0x318] sm:$0xff]
    %v289 = vld [vmem:[#allocation5 + $0x320] sm:$0xff]
    %v290 = vld [vmem:[#allocation5 + $0x328] sm:$0xff]
    %v291 = vld [vmem:[#allocation5 + $0x330] sm:$0xff]
    %v292 = vld [vmem:[#allocation5 + $0x338] sm:$0xff]
    %v293 = vld [vmem:[#allocation5 + $0x340] sm:$0xff]
    %v294 = vld [vmem:[#allocation5 + $0x348] sm:$0xff]
    %v295 = vld [vmem:[#allocation5 + $0x350] sm:$0xff]
    %v296 = vld [vmem:[#allocation5 + $0x358] sm:$0xff]
    %v297 = vld [vmem:[#allocation5 + $0x360] sm:$0xff]
    %v298 = vld [vmem:[#allocation5 + $0x368] sm:$0xff]
    %v299 = vld [vmem:[#allocation5 + $0x370] sm:$0xff]
    %v300 = vld [vmem:[#allocation5 + $0x378] sm:$0xff]
    %v301 = vld [vmem:[#allocation5 + $0x380] sm:$0xff]
    %v302 = vld [vmem:[#allocation5 + $0x388] sm:$0xff]
    %v303 = vld [vmem:[#allocation5 + $0x390] sm:$0xff]
    %v304 = vld [vmem:[#allocation5 + $0x398] sm:$0xff]
    %v305 = vld [vmem:[#allocation5 + $0x3a0] sm:$0xff]
    %v306 = vld [vmem:[#allocation5 + $0x3a8] sm:$0xff]
    %v307 = vld [vmem:[#allocation5 + $0x3b0] sm:$0xff]
    %v308 = vld [vmem:[#allocation5 + $0x3b8] sm:$0xff]
    %v309 = vld [vmem:[#allocation5 + $0x3c0] sm:$0xff]
    %v310 = vld [vmem:[#allocation5 + $0x3c8] sm:$0xff]
    %v311 = vld [vmem:[#allocation5 + $0x3d0] sm:$0xff]
    %v312 = vld [vmem:[#allocation5 + $0x3d8] sm:$0xff]
    %v313 = vld [vmem:[#allocation5 + $0x3e0] sm:$0xff]
    %v314 = vld [vmem:[#allocation5 + $0x3e8] sm:$0xff]
    %v315 = vld [vmem:[#allocation5 + $0x3f0] sm:$0xff]
    %v316 = vld [vmem:[#allocation5 + $0x3f8] sm:$0xff]
    %v317 = vld [vmem:[#allocation5 + $0x400] sm:$0xff]
    %v318 = vld [vmem:[#allocation5 + $0x408] sm:$0xff]
    %v319 = vld [vmem:[#allocation5 + $0x410] sm:$0xff]
    %v320 = vld [vmem:[#allocation5 + $0x418] sm:$0xff]
    %v321 = vld [vmem:[#allocation5 + $0x420] sm:$0xff]
    %v322 = vld [vmem:[#allocation5 + $0x428] sm:$0xff]
    %v323 = vld [vmem:[#allocation5 + $0x430] sm:$0xff]
    %v324 = vld [vmem:[#allocation5 + $0x438] sm:$0xff]
    %v325 = vld [vmem:[#allocation5 + $0x440] sm:$0xff]
    %v326 = vld [vmem:[#allocation5 + $0x448] sm:$0xff]
    %v327 = vld [vmem:[#allocation5 + $0x450] sm:$0xff]
    %v328 = vld [vmem:[#allocation5 + $0x458] sm:$0xff]
    %v329 = vld [vmem:[#allocation5 + $0x460] sm:$0xff]
    %v330 = vld [vmem:[#allocation5 + $0x468] sm:$0xff]
    %v331 = vld [vmem:[#allocation5 + $0x470] sm:$0xff]
    %v332 = vld [vmem:[#allocation5 + $0x478] sm:$0xff]
    %v333 = vld [vmem:[#allocation5 + $0x480] sm:$0xff]
    %v334 = vld [vmem:[#allocation5 + $0x488] sm:$0xff]
    %v335 = vld [vmem:[#allocation5 + $0x490] sm:$0xff]
    %v336 = vld [vmem:[#allocation5 + $0x498] sm:$0xff]
    %v337 = vld [vmem:[#allocation5 + $0x4a0] sm:$0xff]
    %v338 = vld [vmem:[#allocation5 + $0x4a8] sm:$0xff]
    %v339 = vld [vmem:[#allocation5 + $0x4b0] sm:$0xff]
    %v340 = vld [vmem:[#allocation5 + $0x4b8] sm:$0xff]
    %v341 = vld [vmem:[#allocation5 + $0x4c0] sm:$0xff]
    %v342 = vld [vmem:[#allocation5 + $0x4c8] sm:$0xff]
    %v343 = vld [vmem:[#allocation5 + $0x4d0] sm:$0xff]
    %v344 = vld [vmem:[#allocation5 + $0x4d8] sm:$0xff]
    %v345 = vld [vmem:[#allocation5 + $0x4e0] sm:$0xff]
    %v346 = vld [vmem:[#allocation5 + $0x4e8] sm:$0xff]
    %v347 = vld [vmem:[#allocation5 + $0x4f0] sm:$0xff]
    %v348 = vld [vmem:[#allocation5 + $0x4f8] sm:$0xff]
    %v349 = vld [vmem:[#allocation5 + $0x500] sm:$0xff]
    %v350 = vld [vmem:[#allocation5 + $0x508] sm:$0xff]
    %v351 = vld [vmem:[#allocation5 + $0x510] sm:$0xff]
    %v352 = vld [vmem:[#allocation5 + $0x518] sm:$0xff]
    %v353 = vld [vmem:[#allocation5 + $0x520] sm:$0xff]
    %v354 = vld [vmem:[#allocation5 + $0x528] sm:$0xff]
    %v355 = vld [vmem:[#allocation5 + $0x530] sm:$0xff]
    %v356 = vld [vmem:[#allocation5 + $0x538] sm:$0xff]
    %v357 = vld [vmem:[#allocation5 + $0x540] sm:$0xff]
    %v358 = vld [vmem:[#allocation5 + $0x548] sm:$0xff]
    %v359 = vld [vmem:[#allocation5 + $0x550] sm:$0xff]
    %v360 = vld [vmem:[#allocation5 + $0x558] sm:$0xff]
    %v361 = vld [vmem:[#allocation5 + $0x560] sm:$0xff]
    %v362 = vld [vmem:[#allocation5 + $0x568] sm:$0xff]
    %v363 = vld [vmem:[#allocation5 + $0x570] sm:$0xff]
    %v364 = vld [vmem:[#allocation5 + $0x578] sm:$0xff]
    %v365 = vld [vmem:[#allocation5 + $0x580] sm:$0xff]
    %v366 = vld [vmem:[#allocation5 + $0x588] sm:$0xff]
    %v367 = vld [vmem:[#allocation5 + $0x590] sm:$0xff]
    %v368 = vld [vmem:[#allocation5 + $0x598] sm:$0xff]
    %v369 = vld [vmem:[#allocation5 + $0x5a0] sm:$0xff]
    %v370 = vld [vmem:[#allocation5 + $0x5a8] sm:$0xff]
    %v371 = vld [vmem:[#allocation5 + $0x5b0] sm:$0xff]
    %v372 = vld [vmem:[#allocation5 + $0x5b8] sm:$0xff]
    %v373 = vld [vmem:[#allocation5 + $0x5c0] sm:$0xff]
    %v374 = vld [vmem:[#allocation5 + $0x5c8] sm:$0xff]
    %v375 = vld [vmem:[#allocation5 + $0x5d0] sm:$0xff]
    %v376 = vld [vmem:[#allocation5 + $0x5d8] sm:$0xff]
    %v377 = vld [vmem:[#allocation5 + $0x5e0] sm:$0xff]
    %v378 = vld [vmem:[#allocation5 + $0x5e8] sm:$0xff]
    %v379 = vld [vmem:[#allocation5 + $0x5f0] sm:$0xff]
    %v380 = vld [vmem:[#allocation5 + $0x5f8] sm:$0xff]
    %v381 = vld [vmem:[#allocation5 + $0x600] sm:$0xff]
    %v382 = vld [vmem:[#allocation5 + $0x608] sm:$0xff]
    %v383 = vld [vmem:[#allocation5 + $0x610] sm:$0xff]
    %v384 = vld [vmem:[#allocation5 + $0x618] sm:$0xff]
    %v385 = vld [vmem:[#allocation7] sm:$0xf]
    %v387 = vperm.slane %v385, 0
    %v388 = vperm.slane %v385, 1
    %v389 = vperm.slane %v385, 2
    %v390 = vperm.slane %v385, 3
    %v591 = vunpack.c.l.b16 %v189
    %v592 = vunpack.c.h.b16 %v189
    %v593 = vunpack.c.l.b16 %v190
    %v594 = vunpack.c.h.b16 %v190
    %v595 = vunpack.c.l.b16 %v191
    %v596 = vunpack.c.h.b16 %v191
    %v597 = vunpack.c.l.b16 %v192
    %v598 = vunpack.c.h.b16 %v192
    %v599 = vunpack.c.l.b16 %v193
    %v600 = vunpack.c.h.b16 %v193
    %v601 = vunpack.c.l.b16 %v194
    %v602 = vunpack.c.h.b16 %v194
    %v603 = vunpack.c.l.b16 %v195
    %v604 = vunpack.c.h.b16 %v195
    %v605 = vunpack.c.l.b16 %v196
    %v606 = vunpack.c.h.b16 %v196
    %v607 = vunpack.c.l.b16 %v197
    %v608 = vunpack.c.h.b16 %v197
    %v609 = vunpack.c.l.b16 %v198
    %v610 = vunpack.c.h.b16 %v198
    %v611 = vunpack.c.l.b16 %v199
    %v612 = vunpack.c.h.b16 %v199
    %v613 = vunpack.c.l.b16 %v200
    %v614 = vunpack.c.h.b16 %v200
    %v615 = vunpack.c.l.b16 %v201
    %v616 = vunpack.c.h.b16 %v201
    %v617 = vunpack.c.l.b16 %v202
    %v618 = vunpack.c.h.b16 %v202
    %v619 = vunpack.c.l.b16 %v203
    %v620 = vunpack.c.h.b16 %v203
    %v621 = vunpack.c.l.b16 %v204
    %v622 = vunpack.c.h.b16 %v204
    %v623 = vunpack.c.l.b16 %v205
    %v624 = vunpack.c.h.b16 %v205
    %v625 = vunpack.c.l.b16 %v206
    %v626 = vunpack.c.h.b16 %v206
    %v627 = vunpack.c.l.b16 %v207
    %v628 = vunpack.c.h.b16 %v207
    %v629 = vunpack.c.l.b16 %v208
    %v630 = vunpack.c.h.b16 %v208
    %v631 = vunpack.c.l.b16 %v209
    %v632 = vunpack.c.h.b16 %v209
    %v633 = vunpack.c.l.b16 %v210
    %v634 = vunpack.c.h.b16 %v210
    %v635 = vunpack.c.l.b16 %v211
    %v636 = vunpack.c.h.b16 %v211
    %v637 = vunpack.c.l.b16 %v212
    %v638 = vunpack.c.h.b16 %v212
    %v639 = vunpack.c.l.b16 %v213
    %v640 = vunpack.c.h.b16 %v213
    %v641 = vunpack.c.l.b16 %v214
    %v642 = vunpack.c.h.b16 %v214
    %v643 = vunpack.c.l.b16 %v215
    %v644 = vunpack.c.h.b16 %v215
    %v645 = vunpack.c.l.b16 %v216
    %v646 = vunpack.c.h.b16 %v216
    %v647 = vunpack.c.l.b16 %v217
    %v648 = vunpack.c.h.b16 %v217
    %v649 = vunpack.c.l.b16 %v218
    %v650 = vunpack.c.h.b16 %v218
    %v651 = vunpack.c.l.b16 %v219
    %v652 = vunpack.c.h.b16 %v219
    %v653 = vunpack.c.l.b16 %v220
    %v654 = vunpack.c.h.b16 %v220
    %v655 = vunpack.c.l.b16 %v221
    %v656 = vunpack.c.h.b16 %v221
    %v657 = vunpack.c.l.b16 %v222
    %v658 = vunpack.c.h.b16 %v222
    %v659 = vunpack.c.l.b16 %v223
    %v660 = vunpack.c.h.b16 %v223
    %v661 = vunpack.c.l.b16 %v224
    %v662 = vunpack.c.h.b16 %v224
    %v663 = vunpack.c.l.b16 %v225
    %v664 = vunpack.c.h.b16 %v225
    %v665 = vunpack.c.l.b16 %v226
    %v666 = vunpack.c.h.b16 %v226
    %v667 = vunpack.c.l.b16 %v227
    %v668 = vunpack.c.h.b16 %v227
    %v669 = vunpack.c.l.b16 %v228
    %v670 = vunpack.c.h.b16 %v228
    %v671 = vunpack.c.l.b16 %v229
    %v672 = vunpack.c.h.b16 %v229
    %v673 = vunpack.c.l.b16 %v230
    %v674 = vunpack.c.h.b16 %v230
    %v675 = vunpack.c.l.b16 %v231
    %v676 = vunpack.c.h.b16 %v231
    %v677 = vunpack.c.l.b16 %v232
    %v678 = vunpack.c.h.b16 %v232
    %v679 = vunpack.c.l.b16 %v233
    %v680 = vunpack.c.h.b16 %v233
    %v681 = vunpack.c.l.b16 %v234
    %v682 = vunpack.c.h.b16 %v234
    %v683 = vunpack.c.l.b16 %v235
    %v684 = vunpack.c.h.b16 %v235
    %v685 = vunpack.c.l.b16 %v236
    %v686 = vunpack.c.h.b16 %v236
    %v687 = vunpack.c.l.b16 %v237
    %v688 = vunpack.c.h.b16 %v237
    %v689 = vunpack.c.l.b16 %v238
    %v690 = vunpack.c.h.b16 %v238
    %v691 = vunpack.c.l.b16 %v239
    %v692 = vunpack.c.h.b16 %v239
    %v693 = vunpack.c.l.b16 %v240
    %v694 = vunpack.c.h.b16 %v240
    %v695 = vunpack.c.l.b16 %v241
    %v696 = vunpack.c.h.b16 %v241
    %v697 = vunpack.c.l.b16 %v242
    %v698 = vunpack.c.h.b16 %v242
    %v699 = vunpack.c.l.b16 %v243
    %v700 = vunpack.c.h.b16 %v243
    %v701 = vunpack.c.l.b16 %v244
    %v702 = vunpack.c.h.b16 %v244
    %v703 = vunpack.c.l.b16 %v245
    %v704 = vunpack.c.h.b16 %v245
    %v705 = vunpack.c.l.b16 %v246
    %v706 = vunpack.c.h.b16 %v246
    %v707 = vunpack.c.l.b16 %v247
    %v708 = vunpack.c.h.b16 %v247
    %v709 = vunpack.c.l.b16 %v248
    %v710 = vunpack.c.h.b16 %v248
    %v711 = vunpack.c.l.b16 %v249
    %v712 = vunpack.c.h.b16 %v249
    %v713 = vunpack.c.l.b16 %v250
    %v714 = vunpack.c.h.b16 %v250
    %v715 = vunpack.c.l.b16 %v251
    %v716 = vunpack.c.h.b16 %v251
    %v717 = vunpack.c.l.b16 %v252
    %v718 = vunpack.c.h.b16 %v252
    %v719 = vunpack.c.l.b16 %v253
    %v720 = vunpack.c.h.b16 %v253
    %v721 = vunpack.c.l.b16 %v254
    %v722 = vunpack.c.h.b16 %v254
    %v723 = vunpack.c.l.b16 %v255
    %v724 = vunpack.c.h.b16 %v255
    %v725 = vunpack.c.l.b16 %v256
    %v726 = vunpack.c.h.b16 %v256
    %v727 = vunpack.c.l.b16 %v257
    %v728 = vunpack.c.h.b16 %v257
    %v729 = vunpack.c.l.b16 %v258
    %v730 = vunpack.c.h.b16 %v258
    %v731 = vunpack.c.l.b16 %v259
    %v732 = vunpack.c.h.b16 %v259
    %v733 = vunpack.c.l.b16 %v260
    %v734 = vunpack.c.h.b16 %v260
    %v735 = vunpack.c.l.b16 %v261
    %v736 = vunpack.c.h.b16 %v261
    %v737 = vunpack.c.l.b16 %v262
    %v738 = vunpack.c.h.b16 %v262
    %v739 = vunpack.c.l.b16 %v263
    %v740 = vunpack.c.h.b16 %v263
    %v741 = vunpack.c.l.b16 %v264
    %v742 = vunpack.c.h.b16 %v264
    %v743 = vunpack.c.l.b16 %v265
    %v744 = vunpack.c.h.b16 %v265
    %v745 = vunpack.c.l.b16 %v266
    %v746 = vunpack.c.h.b16 %v266
    %v747 = vunpack.c.l.b16 %v267
    %v748 = vunpack.c.h.b16 %v267
    %v749 = vunpack.c.l.b16 %v268
    %v750 = vunpack.c.h.b16 %v268
    %v751 = vunpack.c.l.b16 %v269
    %v752 = vunpack.c.h.b16 %v269
    %v753 = vunpack.c.l.b16 %v270
    %v754 = vunpack.c.h.b16 %v270
    %v755 = vunpack.c.l.b16 %v271
    %v756 = vunpack.c.h.b16 %v271
    %v757 = vunpack.c.l.b16 %v272
    %v758 = vunpack.c.h.b16 %v272
    %v759 = vunpack.c.l.b16 %v273
    %v760 = vunpack.c.h.b16 %v273
    %v761 = vunpack.c.l.b16 %v274
    %v762 = vunpack.c.h.b16 %v274
    %v763 = vunpack.c.l.b16 %v275
    %v764 = vunpack.c.h.b16 %v275
    %v765 = vunpack.c.l.b16 %v276
    %v766 = vunpack.c.h.b16 %v276
    %v767 = vunpack.c.l.b16 %v277
    %v768 = vunpack.c.h.b16 %v277
    %v769 = vunpack.c.l.b16 %v278
    %v770 = vunpack.c.h.b16 %v278
    %v771 = vunpack.c.l.b16 %v279
    %v772 = vunpack.c.h.b16 %v279
    %v773 = vunpack.c.l.b16 %v280
    %v774 = vunpack.c.h.b16 %v280
    %v775 = vunpack.c.l.b16 %v281
    %v776 = vunpack.c.h.b16 %v281
    %v777 = vunpack.c.l.b16 %v282
    %v778 = vunpack.c.h.b16 %v282
    %v779 = vunpack.c.l.b16 %v283
    %v780 = vunpack.c.h.b16 %v283
    %v781 = vunpack.c.l.b16 %v284
    %v782 = vunpack.c.h.b16 %v284
    %v783 = vunpack.c.l.b16 %v285
    %v784 = vunpack.c.h.b16 %v285
    %v785 = vunpack.c.l.b16 %v286
    %v786 = vunpack.c.h.b16 %v286
    %v787 = vunpack.c.l.b16 %v287
    %v788 = vunpack.c.h.b16 %v287
    %v789 = vunpack.c.l.b16 %v288
    %v790 = vunpack.c.h.b16 %v288
    %v791 = vunpack.c.l.b16 %v289
    %v792 = vunpack.c.h.b16 %v289
    %v793 = vunpack.c.l.b16 %v290
    %v794 = vunpack.c.h.b16 %v290
    %v795 = vunpack.c.l.b16 %v291
    %v796 = vunpack.c.h.b16 %v291
    %v797 = vunpack.c.l.b16 %v292
    %v798 = vunpack.c.h.b16 %v292
    %v799 = vunpack.c.l.b16 %v293
    %v800 = vunpack.c.h.b16 %v293
    %v801 = vunpack.c.l.b16 %v294
    %v802 = vunpack.c.h.b16 %v294
    %v803 = vunpack.c.l.b16 %v295
    %v804 = vunpack.c.h.b16 %v295
    %v805 = vunpack.c.l.b16 %v296
    %v806 = vunpack.c.h.b16 %v296
    %v807 = vunpack.c.l.b16 %v297
    %v808 = vunpack.c.h.b16 %v297
    %v809 = vunpack.c.l.b16 %v298
    %v810 = vunpack.c.h.b16 %v298
    %v811 = vunpack.c.l.b16 %v299
    %v812 = vunpack.c.h.b16 %v299
    %v813 = vunpack.c.l.b16 %v300
    %v814 = vunpack.c.h.b16 %v300
    %v815 = vunpack.c.l.b16 %v301
    %v816 = vunpack.c.h.b16 %v301
    %v817 = vunpack.c.l.b16 %v302
    %v818 = vunpack.c.h.b16 %v302
    %v819 = vunpack.c.l.b16 %v303
    %v820 = vunpack.c.h.b16 %v303
    %v821 = vunpack.c.l.b16 %v304
    %v822 = vunpack.c.h.b16 %v304
    %v823 = vunpack.c.l.b16 %v305
    %v824 = vunpack.c.h.b16 %v305
    %v825 = vunpack.c.l.b16 %v306
    %v826 = vunpack.c.h.b16 %v306
    %v827 = vunpack.c.l.b16 %v307
    %v828 = vunpack.c.h.b16 %v307
    %v829 = vunpack.c.l.b16 %v308
    %v830 = vunpack.c.h.b16 %v308
    %v831 = vunpack.c.l.b16 %v309
    %v832 = vunpack.c.h.b16 %v309
    %v833 = vunpack.c.l.b16 %v310
    %v834 = vunpack.c.h.b16 %v310
    %v835 = vunpack.c.l.b16 %v311
    %v836 = vunpack.c.h.b16 %v311
    %v837 = vunpack.c.l.b16 %v312
    %v838 = vunpack.c.h.b16 %v312
    %v839 = vunpack.c.l.b16 %v313
    %v840 = vunpack.c.h.b16 %v313
    %v841 = vunpack.c.l.b16 %v314
    %v842 = vunpack.c.h.b16 %v314
    %v843 = vunpack.c.l.b16 %v315
    %v844 = vunpack.c.h.b16 %v315
    %v845 = vunpack.c.l.b16 %v316
    %v846 = vunpack.c.h.b16 %v316
    %v847 = vunpack.c.l.b16 %v317
    %v848 = vunpack.c.h.b16 %v317
    %v849 = vunpack.c.l.b16 %v318
    %v850 = vunpack.c.h.b16 %v318
    %v851 = vunpack.c.l.b16 %v319
    %v852 = vunpack.c.h.b16 %v319
    %v853 = vunpack.c.l.b16 %v320
    %v854 = vunpack.c.h.b16 %v320
    %v855 = vunpack.c.l.b16 %v321
    %v856 = vunpack.c.h.b16 %v321
    %v857 = vunpack.c.l.b16 %v322
    %v858 = vunpack.c.h.b16 %v322
    %v859 = vunpack.c.l.b16 %v323
    %v860 = vunpack.c.h.b16 %v323
    %v861 = vunpack.c.l.b16 %v324
    %v862 = vunpack.c.h.b16 %v324
    %v863 = vunpack.c.l.b16 %v325
    %v864 = vunpack.c.h.b16 %v325
    %v865 = vunpack.c.l.b16 %v326
    %v866 = vunpack.c.h.b16 %v326
    %v867 = vunpack.c.l.b16 %v327
    %v868 = vunpack.c.h.b16 %v327
    %v869 = vunpack.c.l.b16 %v328
    %v870 = vunpack.c.h.b16 %v328
    %v871 = vunpack.c.l.b16 %v329
    %v872 = vunpack.c.h.b16 %v329
    %v873 = vunpack.c.l.b16 %v330
    %v874 = vunpack.c.h.b16 %v330
    %v875 = vunpack.c.l.b16 %v331
    %v876 = vunpack.c.h.b16 %v331
    %v877 = vunpack.c.l.b16 %v332
    %v878 = vunpack.c.h.b16 %v332
    %v879 = vunpack.c.l.b16 %v333
    %v880 = vunpack.c.h.b16 %v333
    %v881 = vunpack.c.l.b16 %v334
    %v882 = vunpack.c.h.b16 %v334
    %v883 = vunpack.c.l.b16 %v335
    %v884 = vunpack.c.h.b16 %v335
    %v885 = vunpack.c.l.b16 %v336
    %v886 = vunpack.c.h.b16 %v336
    %v887 = vunpack.c.l.b16 %v337
    %v888 = vunpack.c.h.b16 %v337
    %v889 = vunpack.c.l.b16 %v338
    %v890 = vunpack.c.h.b16 %v338
    %v891 = vunpack.c.l.b16 %v339
    %v892 = vunpack.c.h.b16 %v339
    %v893 = vunpack.c.l.b16 %v340
    %v894 = vunpack.c.h.b16 %v340
    %v895 = vunpack.c.l.b16 %v341
    %v896 = vunpack.c.h.b16 %v341
    %v897 = vunpack.c.l.b16 %v342
    %v898 = vunpack.c.h.b16 %v342
    %v899 = vunpack.c.l.b16 %v343
    %v900 = vunpack.c.h.b16 %v343
    %v901 = vunpack.c.l.b16 %v344
    %v902 = vunpack.c.h.b16 %v344
    %v903 = vunpack.c.l.b16 %v345
    %v904 = vunpack.c.h.b16 %v345
    %v905 = vunpack.c.l.b16 %v346
    %v906 = vunpack.c.h.b16 %v346
    %v907 = vunpack.c.l.b16 %v347
    %v908 = vunpack.c.h.b16 %v347
    %v909 = vunpack.c.l.b16 %v348
    %v910 = vunpack.c.h.b16 %v348
    %v911 = vunpack.c.l.b16 %v349
    %v912 = vunpack.c.h.b16 %v349
    %v913 = vunpack.c.l.b16 %v350
    %v914 = vunpack.c.h.b16 %v350
    %v915 = vunpack.c.l.b16 %v351
    %v916 = vunpack.c.h.b16 %v351
    %v917 = vunpack.c.l.b16 %v352
    %v918 = vunpack.c.h.b16 %v352
    %v919 = vunpack.c.l.b16 %v353
    %v920 = vunpack.c.h.b16 %v353
    %v921 = vunpack.c.l.b16 %v354
    %v922 = vunpack.c.h.b16 %v354
    %v923 = vunpack.c.l.b16 %v355
    %v924 = vunpack.c.h.b16 %v355
    %v925 = vunpack.c.l.b16 %v356
    %v926 = vunpack.c.h.b16 %v356
    %v927 = vunpack.c.l.b16 %v357
    %v928 = vunpack.c.h.b16 %v357
    %v929 = vunpack.c.l.b16 %v358
    %v930 = vunpack.c.h.b16 %v358
    %v931 = vunpack.c.l.b16 %v359
    %v932 = vunpack.c.h.b16 %v359
    %v933 = vunpack.c.l.b16 %v360
    %v934 = vunpack.c.h.b16 %v360
    %v935 = vunpack.c.l.b16 %v361
    %v936 = vunpack.c.h.b16 %v361
    %v937 = vunpack.c.l.b16 %v362
    %v938 = vunpack.c.h.b16 %v362
    %v939 = vunpack.c.l.b16 %v363
    %v940 = vunpack.c.h.b16 %v363
    %v941 = vunpack.c.l.b16 %v364
    %v942 = vunpack.c.h.b16 %v364
    %v943 = vunpack.c.l.b16 %v365
    %v944 = vunpack.c.h.b16 %v365
    %v945 = vunpack.c.l.b16 %v366
    %v946 = vunpack.c.h.b16 %v366
    %v947 = vunpack.c.l.b16 %v367
    %v948 = vunpack.c.h.b16 %v367
    %v949 = vunpack.c.l.b16 %v368
    %v950 = vunpack.c.h.b16 %v368
    %v951 = vunpack.c.l.b16 %v369
    %v952 = vunpack.c.h.b16 %v369
    %v953 = vunpack.c.l.b16 %v370
    %v954 = vunpack.c.h.b16 %v370
    %v955 = vunpack.c.l.b16 %v371
    %v956 = vunpack.c.h.b16 %v371
    %v957 = vunpack.c.l.b16 %v372
    %v958 = vunpack.c.h.b16 %v372
    %v959 = vunpack.c.l.b16 %v373
    %v960 = vunpack.c.h.b16 %v373
    %v961 = vunpack.c.l.b16 %v374
    %v962 = vunpack.c.h.b16 %v374
    %v963 = vunpack.c.l.b16 %v375
    %v964 = vunpack.c.h.b16 %v375
    %v965 = vunpack.c.l.b16 %v376
    %v966 = vunpack.c.h.b16 %v376
    %v967 = vunpack.c.l.b16 %v377
    %v968 = vunpack.c.h.b16 %v377
    %v969 = vunpack.c.l.b16 %v378
    %v970 = vunpack.c.h.b16 %v378
    %v971 = vunpack.c.l.b16 %v379
    %v972 = vunpack.c.h.b16 %v379
    %v973 = vunpack.c.l.b16 %v380
    %v974 = vunpack.c.h.b16 %v380
    %v975 = vunpack.c.l.b16 %v381
    %v976 = vunpack.c.h.b16 %v381
    %v977 = vunpack.c.l.b16 %v382
    %v978 = vunpack.c.h.b16 %v382
    %v979 = vunpack.c.l.b16 %v383
    %v980 = vunpack.c.h.b16 %v383
    %v981 = vunpack.c.l.b16 %v384
    %v982 = vunpack.c.h.b16 %v384
    %v983 = vpack.c.b16 %v595, %v591
    %v984 = vpack.c.b16 %v596, %v592
    %v985 = vpack.c.b16 %v597, %v593
    %v986 = vpack.c.b16 %v598, %v594
    %v987 = vpack.c.b16 %v603, %v599
    %v988 = vpack.c.b16 %v604, %v600
    %v989 = vpack.c.b16 %v605, %v601
    %v990 = vpack.c.b16 %v606, %v602
    %v991 = vpack.c.b16 %v611, %v607
    %v992 = vpack.c.b16 %v612, %v608
    %v993 = vpack.c.b16 %v613, %v609
    %v994 = vpack.c.b16 %v614, %v610
    %v995 = vpack.c.b16 %v619, %v615
    %v996 = vpack.c.b16 %v620, %v616
    %v997 = vpack.c.b16 %v621, %v617
    %v998 = vpack.c.b16 %v622, %v618
    %v999 = vpack.c.b16 %v627, %v623
    %v1000 = vpack.c.b16 %v628, %v624
    %v1001 = vpack.c.b16 %v629, %v625
    %v1002 = vpack.c.b16 %v630, %v626
    %v1003 = vpack.c.b16 %v635, %v631
    %v1004 = vpack.c.b16 %v636, %v632
    %v1005 = vpack.c.b16 %v637, %v633
    %v1006 = vpack.c.b16 %v638, %v634
    %v1007 = vpack.c.b16 %v643, %v639
    %v1008 = vpack.c.b16 %v644, %v640
    %v1009 = vpack.c.b16 %v645, %v641
    %v1010 = vpack.c.b16 %v646, %v642
    %v1011 = vpack.c.b16 %v651, %v647
    %v1012 = vpack.c.b16 %v652, %v648
    %v1013 = vpack.c.b16 %v653, %v649
    %v1014 = vpack.c.b16 %v654, %v650
    %v1015 = vpack.c.b16 %v659, %v655
    %v1016 = vpack.c.b16 %v660, %v656
    %v1017 = vpack.c.b16 %v661, %v657
    %v1018 = vpack.c.b16 %v662, %v658
    %v1019 = vpack.c.b16 %v667, %v663
    %v1020 = vpack.c.b16 %v668, %v664
    %v1021 = vpack.c.b16 %v669, %v665
    %v1022 = vpack.c.b16 %v670, %v666
    %v1023 = vpack.c.b16 %v675, %v671
    %v1024 = vpack.c.b16 %v676, %v672
    %v1025 = vpack.c.b16 %v677, %v673
    %v1026 = vpack.c.b16 %v678, %v674
    %v1027 = vpack.c.b16 %v683, %v679
    %v1028 = vpack.c.b16 %v684, %v680
    %v1029 = vpack.c.b16 %v685, %v681
    %v1030 = vpack.c.b16 %v686, %v682
    %v1031 = vpack.c.b16 %v691, %v687
    %v1032 = vpack.c.b16 %v692, %v688
    %v1033 = vpack.c.b16 %v693, %v689
    %v1034 = vpack.c.b16 %v694, %v690
    %v1035 = vpack.c.b16 %v699, %v695
    %v1036 = vpack.c.b16 %v700, %v696
    %v1037 = vpack.c.b16 %v701, %v697
    %v1038 = vpack.c.b16 %v702, %v698
    %v1039 = vpack.c.b16 %v707, %v703
    %v1040 = vpack.c.b16 %v708, %v704
    %v1041 = vpack.c.b16 %v709, %v705
    %v1042 = vpack.c.b16 %v710, %v706
    %v1043 = vpack.c.b16 %v715, %v711
    %v1044 = vpack.c.b16 %v716, %v712
    %v1045 = vpack.c.b16 %v717, %v713
    %v1046 = vpack.c.b16 %v718, %v714
    %v1047 = vpack.c.b16 %v723, %v719
    %v1048 = vpack.c.b16 %v724, %v720
    %v1049 = vpack.c.b16 %v725, %v721
    %v1050 = vpack.c.b16 %v726, %v722
    %v1051 = vpack.c.b16 %v731, %v727
    %v1052 = vpack.c.b16 %v732, %v728
    %v1053 = vpack.c.b16 %v733, %v729
    %v1054 = vpack.c.b16 %v734, %v730
    %v1055 = vpack.c.b16 %v739, %v735
    %v1056 = vpack.c.b16 %v740, %v736
    %v1057 = vpack.c.b16 %v741, %v737
    %v1058 = vpack.c.b16 %v742, %v738
    %v1059 = vpack.c.b16 %v747, %v743
    %v1060 = vpack.c.b16 %v748, %v744
    %v1061 = vpack.c.b16 %v749, %v745
    %v1062 = vpack.c.b16 %v750, %v746
    %v1063 = vpack.c.b16 %v755, %v751
    %v1064 = vpack.c.b16 %v756, %v752
    %v1065 = vpack.c.b16 %v757, %v753
    %v1066 = vpack.c.b16 %v758, %v754
    %v1067 = vpack.c.b16 %v763, %v759
    %v1068 = vpack.c.b16 %v764, %v760
    %v1069 = vpack.c.b16 %v765, %v761
    %v1070 = vpack.c.b16 %v766, %v762
    %v1071 = vpack.c.b16 %v771, %v767
    %v1072 = vpack.c.b16 %v772, %v768
    %v1073 = vpack.c.b16 %v773, %v769
    %v1074 = vpack.c.b16 %v774, %v770
    %v1075 = vpack.c.b16 %v779, %v775
    %v1076 = vpack.c.b16 %v780, %v776
    %v1077 = vpack.c.b16 %v781, %v777
    %v1078 = vpack.c.b16 %v782, %v778
    %v1079 = vpack.c.b16 %v787, %v783
    %v1080 = vpack.c.b16 %v788, %v784
    %v1081 = vpack.c.b16 %v789, %v785
    %v1082 = vpack.c.b16 %v790, %v786
    %v1083 = vpack.c.b16 %v795, %v791
    %v1084 = vpack.c.b16 %v796, %v792
    %v1085 = vpack.c.b16 %v797, %v793
    %v1086 = vpack.c.b16 %v798, %v794
    %v1087 = vpack.c.b16 %v803, %v799
    %v1088 = vpack.c.b16 %v804, %v800
    %v1089 = vpack.c.b16 %v805, %v801
    %v1090 = vpack.c.b16 %v806, %v802
    %v1091 = vpack.c.b16 %v811, %v807
    %v1092 = vpack.c.b16 %v812, %v808
    %v1093 = vpack.c.b16 %v813, %v809
    %v1094 = vpack.c.b16 %v814, %v810
    %v1095 = vpack.c.b16 %v819, %v815
    %v1096 = vpack.c.b16 %v820, %v816
    %v1097 = vpack.c.b16 %v821, %v817
    %v1098 = vpack.c.b16 %v822, %v818
    %v1099 = vpack.c.b16 %v827, %v823
    %v1100 = vpack.c.b16 %v828, %v824
    %v1101 = vpack.c.b16 %v829, %v825
    %v1102 = vpack.c.b16 %v830, %v826
    %v1103 = vpack.c.b16 %v835, %v831
    %v1104 = vpack.c.b16 %v836, %v832
    %v1105 = vpack.c.b16 %v837, %v833
    %v1106 = vpack.c.b16 %v838, %v834
    %v1107 = vpack.c.b16 %v843, %v839
    %v1108 = vpack.c.b16 %v844, %v840
    %v1109 = vpack.c.b16 %v845, %v841
    %v1110 = vpack.c.b16 %v846, %v842
    %v1111 = vpack.c.b16 %v851, %v847
    %v1112 = vpack.c.b16 %v852, %v848
    %v1113 = vpack.c.b16 %v853, %v849
    %v1114 = vpack.c.b16 %v854, %v850
    %v1115 = vpack.c.b16 %v859, %v855
    %v1116 = vpack.c.b16 %v860, %v856
    %v1117 = vpack.c.b16 %v861, %v857
    %v1118 = vpack.c.b16 %v862, %v858
    %v1119 = vpack.c.b16 %v867, %v863
    %v1120 = vpack.c.b16 %v868, %v864
    %v1121 = vpack.c.b16 %v869, %v865
    %v1122 = vpack.c.b16 %v870, %v866
    %v1123 = vpack.c.b16 %v875, %v871
    %v1124 = vpack.c.b16 %v876, %v872
    %v1125 = vpack.c.b16 %v877, %v873
    %v1126 = vpack.c.b16 %v878, %v874
    %v1127 = vpack.c.b16 %v883, %v879
    %v1128 = vpack.c.b16 %v884, %v880
    %v1129 = vpack.c.b16 %v885, %v881
    %v1130 = vpack.c.b16 %v886, %v882
    %v1131 = vpack.c.b16 %v891, %v887
    %v1132 = vpack.c.b16 %v892, %v888
    %v1133 = vpack.c.b16 %v893, %v889
    %v1134 = vpack.c.b16 %v894, %v890
    %v1135 = vpack.c.b16 %v899, %v895
    %v1136 = vpack.c.b16 %v900, %v896
    %v1137 = vpack.c.b16 %v901, %v897
    %v1138 = vpack.c.b16 %v902, %v898
    %v1139 = vpack.c.b16 %v907, %v903
    %v1140 = vpack.c.b16 %v908, %v904
    %v1141 = vpack.c.b16 %v909, %v905
    %v1142 = vpack.c.b16 %v910, %v906
    %v1143 = vpack.c.b16 %v915, %v911
    %v1144 = vpack.c.b16 %v916, %v912
    %v1145 = vpack.c.b16 %v917, %v913
    %v1146 = vpack.c.b16 %v918, %v914
    %v1147 = vpack.c.b16 %v923, %v919
    %v1148 = vpack.c.b16 %v924, %v920
    %v1149 = vpack.c.b16 %v925, %v921
    %v1150 = vpack.c.b16 %v926, %v922
    %v1151 = vpack.c.b16 %v931, %v927
    %v1152 = vpack.c.b16 %v932, %v928
    %v1153 = vpack.c.b16 %v933, %v929
    %v1154 = vpack.c.b16 %v934, %v930
    %v1155 = vpack.c.b16 %v939, %v935
    %v1156 = vpack.c.b16 %v940, %v936
    %v1157 = vpack.c.b16 %v941, %v937
    %v1158 = vpack.c.b16 %v942, %v938
    %v1159 = vpack.c.b16 %v947, %v943
    %v1160 = vpack.c.b16 %v948, %v944
    %v1161 = vpack.c.b16 %v949, %v945
    %v1162 = vpack.c.b16 %v950, %v946
    %v1163 = vpack.c.b16 %v955, %v951
    %v1164 = vpack.c.b16 %v956, %v952
    %v1165 = vpack.c.b16 %v957, %v953
    %v1166 = vpack.c.b16 %v958, %v954
    %v1167 = vpack.c.b16 %v963, %v959
    %v1168 = vpack.c.b16 %v964, %v960
    %v1169 = vpack.c.b16 %v965, %v961
    %v1170 = vpack.c.b16 %v966, %v962
    %v1171 = vpack.c.b16 %v971, %v967
    %v1172 = vpack.c.b16 %v972, %v968
    %v1173 = vpack.c.b16 %v973, %v969
    %v1174 = vpack.c.b16 %v974, %v970
    %v1175 = vpack.c.b16 %v979, %v975
    %v1176 = vpack.c.b16 %v980, %v976
    %v1177 = vpack.c.b16 %v981, %v977
    %v1178 = vpack.c.b16 %v982, %v978
    %vm1375 = vcmask 130048
    %v1377 = vsel %vm1375, %v181, 0
    %v1380 = vsel %vm1375, %v188, 0
    %1382 = vmatpush.bf16.msra.mxu0 %v1011
    %1383 = vmatpush.bf16.msra.mxu0 %v1007
    %1384 = vmatpush.bf16.msra.mxu0 %v1003
    %1385 = vmatpush.bf16.msra.mxu0 %v999
    %1386 = vmatpush.bf16.msra.mxu0 %v995
    %1387 = vmatpush.bf16.msra.mxu0 %v991
    %1388 = vmatpush.bf16.msra.mxu0 %v987
    %1389 = vmatpush.bf16.msra.mxu0 %v983
    %1390 = vmatmul.bf16.gmra.mxu0 %v175
    %v1391 = vpop.f32.mrf.mxu0
    %v1392 = vadd.f32 %v387, %v1391
    %v1393 = vpop.f32.mrf.mxu0
    %v1394 = vadd.f32 %v387, %v1393
    %1395 = vmatmul.bf16.gmra.mxu0 %v182
    %v1396 = vpop.f32.mrf.mxu0
    %v1397 = vadd.f32 %v387, %v1396
    %v1398 = vpop.f32.mrf.mxu0
    %v1399 = vadd.f32 %v387, %v1398
    %1400 = vdwg.mxu0
    %1401 = vmatpush.bf16.msra.mxu0 %v1043
    %1402 = vmatpush.bf16.msra.mxu0 %v1039
    %1403 = vmatpush.bf16.msra.mxu0 %v1035
    %1404 = vmatpush.bf16.msra.mxu0 %v1031
    %1405 = vmatpush.bf16.msra.mxu0 %v1027
    %1406 = vmatpush.bf16.msra.mxu0 %v1023
    %1407 = vmatpush.bf16.msra.mxu0 %v1019
    %1408 = vmatpush.bf16.msra.mxu0 %v1015
    %1409 = vmatmul.bf16.gmra.mxu0 %v176
    %v1410 = vpop.f32.mrf.mxu0
    %v1411 = vadd.f32 %v1392, %v1410
    %v1412 = vpop.f32.mrf.mxu0
    %v1413 = vadd.f32 %v1394, %v1412
    %1414 = vmatmul.bf16.gmra.mxu0 %v183
    %v1415 = vpop.f32.mrf.mxu0
    %v1416 = vadd.f32 %v1397, %v1415
    %v1417 = vpop.f32.mrf.mxu0
    %v1418 = vadd.f32 %v1399, %v1417
    %1419 = vdwg.mxu0
    %1420 = vmatpush.bf16.msra.mxu0 %v1075
    %1421 = vmatpush.bf16.msra.mxu0 %v1071
    %1422 = vmatpush.bf16.msra.mxu0 %v1067
    %1423 = vmatpush.bf16.msra.mxu0 %v1063
    %1424 = vmatpush.bf16.msra.mxu0 %v1059
    %1425 = vmatpush.bf16.msra.mxu0 %v1055
    %1426 = vmatpush.bf16.msra.mxu0 %v1051
    %1427 = vmatpush.bf16.msra.mxu0 %v1047
    %1428 = vmatmul.bf16.gmra.mxu0 %v177
    %v1429 = vpop.f32.mrf.mxu0
    %v1430 = vadd.f32 %v1411, %v1429
    %v1431 = vpop.f32.mrf.mxu0
    %v1432 = vadd.f32 %v1413, %v1431
    %1433 = vmatmul.bf16.gmra.mxu0 %v184
    %v1434 = vpop.f32.mrf.mxu0
    %v1435 = vadd.f32 %v1416, %v1434
    %v1436 = vpop.f32.mrf.mxu0
    %v1437 = vadd.f32 %v1418, %v1436
    %1438 = vdwg.mxu0
    %1439 = vmatpush.bf16.msra.mxu0 %v1107
    %1440 = vmatpush.bf16.msra.mxu0 %v1103
    %1441 = vmatpush.bf16.msra.mxu0 %v1099
    %1442 = vmatpush.bf16.msra.mxu0 %v1095
    %1443 = vmatpush.bf16.msra.mxu0 %v1091
    %1444 = vmatpush.bf16.msra.mxu0 %v1087
    %1445 = vmatpush.bf16.msra.mxu0 %v1083
    %1446 = vmatpush.bf16.msra.mxu0 %v1079
    %1447 = vmatmul.bf16.gmra.mxu0 %v178
    %v1448 = vpop.f32.mrf.mxu0
    %v1449 = vadd.f32 %v1430, %v1448
    %v1450 = vpop.f32.mrf.mxu0
    %v1451 = vadd.f32 %v1432, %v1450
    %1452 = vmatmul.bf16.gmra.mxu0 %v185
    %v1453 = vpop.f32.mrf.mxu0
    %v1454 = vadd.f32 %v1435, %v1453
    %v1455 = vpop.f32.mrf.mxu0
    %v1456 = vadd.f32 %v1437, %v1455
    %1457 = vdwg.mxu0
    %1458 = vmatpush.bf16.msra.mxu0 %v1139
    %1459 = vmatpush.bf16.msra.mxu0 %v1135
    %1460 = vmatpush.bf16.msra.mxu0 %v1131
    %1461 = vmatpush.bf16.msra.mxu0 %v1127
    %1462 = vmatpush.bf16.msra.mxu0 %v1123
    %1463 = vmatpush.bf16.msra.mxu0 %v1119
    %1464 = vmatpush.bf16.msra.mxu0 %v1115
    %1465 = vmatpush.bf16.msra.mxu0 %v1111
    %1466 = vmatmul.bf16.gmra.mxu0 %v179
    %v1467 = vpop.f32.mrf.mxu0
    %v1468 = vadd.f32 %v1449, %v1467
    %v1469 = vpop.f32.mrf.mxu0
    %v1470 = vadd.f32 %v1451, %v1469
    %1471 = vmatmul.bf16.gmra.mxu0 %v186
    %v1472 = vpop.f32.mrf.mxu0
    %v1473 = vadd.f32 %v1454, %v1472
    %v1474 = vpop.f32.mrf.mxu0
    %v1475 = vadd.f32 %v1456, %v1474
    %1476 = vdwg.mxu0
    %1477 = vmatpush.bf16.msra.mxu0 %v1171
    %1478 = vmatpush.bf16.msra.mxu0 %v1167
    %1479 = vmatpush.bf16.msra.mxu0 %v1163
    %1480 = vmatpush.bf16.msra.mxu0 %v1159
    %1481 = vmatpush.bf16.msra.mxu0 %v1155
    %1482 = vmatpush.bf16.msra.mxu0 %v1151
    %1483 = vmatpush.bf16.msra.mxu0 %v1147
    %1484 = vmatpush.bf16.msra.mxu0 %v1143
    %1485 = vmatmul.bf16.gmra.mxu0 %v180
    %v1486 = vpop.f32.mrf.mxu0
    %v1487 = vadd.f32 %v1468, %v1486
    %v1488 = vpop.f32.mrf.mxu0
    %v1489 = vadd.f32 %v1470, %v1488
    %1490 = vmatmul.bf16.gmra.mxu0 %v187
    %v1491 = vpop.f32.mrf.mxu0
    %v1492 = vadd.f32 %v1473, %v1491
    %v1493 = vpop.f32.mrf.mxu0
    %v1494 = vadd.f32 %v1475, %v1493
    %1495 = vdwg.mxu0
    %1496 = vmatpush.bf16.msra.mxu0 0
    %1497 = vmatpush.bf16.msra.mxu0 0
    %1498 = vmatpush.bf16.msra.mxu0 0
    %1499 = vmatpush.bf16.msra.mxu0 0
    %1500 = vmatpush.bf16.msra.mxu0 0
    %1501 = vmatpush.bf16.msra.mxu0 0
    %1502 = vmatpush.bf16.msra.mxu0 0
    %1503 = vmatpush.bf16.msra.mxu0 %v1175
    %1504 = vmatmul.bf16.gmra.mxu0 %v1377
    %v1505 = vpop.f32.mrf.mxu0
    %v1506 = vadd.f32 %v1487, %v1505
    %v1507 = vpop.f32.mrf.mxu0
    %v1508 = vadd.f32 %v1489, %v1507
    %1509 = vmatmul.bf16.gmra.mxu0 %v1380
    %v1510 = vpop.f32.mrf.mxu0
    %v1511 = vadd.f32 %v1492, %v1510
    %v1512 = vpop.f32.mrf.mxu0
    %v1513 = vadd.f32 %v1494, %v1512
    %1514 = vdwg.mxu0
    %1515 = vmatpush.bf16.msra.mxu0 %v1012
    %1516 = vmatpush.bf16.msra.mxu0 %v1008
    %1517 = vmatpush.bf16.msra.mxu0 %v1004
    %1518 = vmatpush.bf16.msra.mxu0 %v1000
    %1519 = vmatpush.bf16.msra.mxu0 %v996
    %1520 = vmatpush.bf16.msra.mxu0 %v992
    %1521 = vmatpush.bf16.msra.mxu0 %v988
    %1522 = vmatpush.bf16.msra.mxu0 %v984
    %1523 = vmatmul.bf16.gmra.mxu0 %v175
    %v1524 = vpop.f32.mrf.mxu0
    %v1525 = vadd.f32 %v388, %v1524
    %v1526 = vpop.f32.mrf.mxu0
    %v1527 = vadd.f32 %v388, %v1526
    %1528 = vmatmul.bf16.gmra.mxu0 %v182
    %v1529 = vpop.f32.mrf.mxu0
    %v1530 = vadd.f32 %v388, %v1529
    %v1531 = vpop.f32.mrf.mxu0
    %v1532 = vadd.f32 %v388, %v1531
    %1533 = vdwg.mxu0
    %1534 = vmatpush.bf16.msra.mxu0 %v1044
    %1535 = vmatpush.bf16.msra.mxu0 %v1040
    %1536 = vmatpush.bf16.msra.mxu0 %v1036
    %1537 = vmatpush.bf16.msra.mxu0 %v1032
    %1538 = vmatpush.bf16.msra.mxu0 %v1028
    %1539 = vmatpush.bf16.msra.mxu0 %v1024
    %1540 = vmatpush.bf16.msra.mxu0 %v1020
    %1541 = vmatpush.bf16.msra.mxu0 %v1016
    %1542 = vmatmul.bf16.gmra.mxu0 %v176
    %v1543 = vpop.f32.mrf.mxu0
    %v1544 = vadd.f32 %v1525, %v1543
    %v1545 = vpop.f32.mrf.mxu0
    %v1546 = vadd.f32 %v1527, %v1545
    %1547 = vmatmul.bf16.gmra.mxu0 %v183
    %v1548 = vpop.f32.mrf.mxu0
    %v1549 = vadd.f32 %v1530, %v1548
    %v1550 = vpop.f32.mrf.mxu0
    %v1551 = vadd.f32 %v1532, %v1550
    %1552 = vdwg.mxu0
    %1553 = vmatpush.bf16.msra.mxu0 %v1076
    %1554 = vmatpush.bf16.msra.mxu0 %v1072
    %1555 = vmatpush.bf16.msra.mxu0 %v1068
    %1556 = vmatpush.bf16.msra.mxu0 %v1064
    %1557 = vmatpush.bf16.msra.mxu0 %v1060
    %1558 = vmatpush.bf16.msra.mxu0 %v1056
    %1559 = vmatpush.bf16.msra.mxu0 %v1052
    %1560 = vmatpush.bf16.msra.mxu0 %v1048
    %1561 = vmatmul.bf16.gmra.mxu0 %v177
    %v1562 = vpop.f32.mrf.mxu0
    %v1563 = vadd.f32 %v1544, %v1562
    %v1564 = vpop.f32.mrf.mxu0
    %v1565 = vadd.f32 %v1546, %v1564
    %1566 = vmatmul.bf16.gmra.mxu0 %v184
    %v1567 = vpop.f32.mrf.mxu0
    %v1568 = vadd.f32 %v1549, %v1567
    %v1569 = vpop.f32.mrf.mxu0
    %v1570 = vadd.f32 %v1551, %v1569
    %1571 = vdwg.mxu0
    %1572 = vmatpush.bf16.msra.mxu0 %v1108
    %1573 = vmatpush.bf16.msra.mxu0 %v1104
    %1574 = vmatpush.bf16.msra.mxu0 %v1100
    %1575 = vmatpush.bf16.msra.mxu0 %v1096
    %1576 = vmatpush.bf16.msra.mxu0 %v1092
    %1577 = vmatpush.bf16.msra.mxu0 %v1088
    %1578 = vmatpush.bf16.msra.mxu0 %v1084
    %1579 = vmatpush.bf16.msra.mxu0 %v1080
    %1580 = vmatmul.bf16.gmra.mxu0 %v178
    %v1581 = vpop.f32.mrf.mxu0
    %v1582 = vadd.f32 %v1563, %v1581
    %v1583 = vpop.f32.mrf.mxu0
    %v1584 = vadd.f32 %v1565, %v1583
    %1585 = vmatmul.bf16.gmra.mxu0 %v185
    %v1586 = vpop.f32.mrf.mxu0
    %v1587 = vadd.f32 %v1568, %v1586
    %v1588 = vpop.f32.mrf.mxu0
    %v1589 = vadd.f32 %v1570, %v1588
    %1590 = vdwg.mxu0
    %1591 = vmatpush.bf16.msra.mxu0 %v1140
    %1592 = vmatpush.bf16.msra.mxu0 %v1136
    %1593 = vmatpush.bf16.msra.mxu0 %v1132
    %1594 = vmatpush.bf16.msra.mxu0 %v1128
    %1595 = vmatpush.bf16.msra.mxu0 %v1124
    %1596 = vmatpush.bf16.msra.mxu0 %v1120
    %1597 = vmatpush.bf16.msra.mxu0 %v1116
    %1598 = vmatpush.bf16.msra.mxu0 %v1112
    %1599 = vmatmul.bf16.gmra.mxu0 %v179
    %v1600 = vpop.f32.mrf.mxu0
    %v1601 = vadd.f32 %v1582, %v1600
    %v1602 = vpop.f32.mrf.mxu0
    %v1603 = vadd.f32 %v1584, %v1602
    %1604 = vmatmul.bf16.gmra.mxu0 %v186
    %v1605 = vpop.f32.mrf.mxu0
    %v1606 = vadd.f32 %v1587, %v1605
    %v1607 = vpop.f32.mrf.mxu0
    %v1608 = vadd.f32 %v1589, %v1607
    %1609 = vdwg.mxu0
    %1610 = vmatpush.bf16.msra.mxu0 %v1172
    %1611 = vmatpush.bf16.msra.mxu0 %v1168
    %1612 = vmatpush.bf16.msra.mxu0 %v1164
    %1613 = vmatpush.bf16.msra.mxu0 %v1160
    %1614 = vmatpush.bf16.msra.mxu0 %v1156
    %1615 = vmatpush.bf16.msra.mxu0 %v1152
    %1616 = vmatpush.bf16.msra.mxu0 %v1148
    %1617 = vmatpush.bf16.msra.mxu0 %v1144
    %1618 = vmatmul.bf16.gmra.mxu0 %v180
    %v1619 = vpop.f32.mrf.mxu0
    %v1620 = vadd.f32 %v1601, %v1619
    %v1621 = vpop.f32.mrf.mxu0
    %v1622 = vadd.f32 %v1603, %v1621
    %1623 = vmatmul.bf16.gmra.mxu0 %v187
    %v1624 = vpop.f32.mrf.mxu0
    %v1625 = vadd.f32 %v1606, %v1624
    %v1626 = vpop.f32.mrf.mxu0
    %v1627 = vadd.f32 %v1608, %v1626
    %1628 = vdwg.mxu0
    %1629 = vmatpush.bf16.msra.mxu0 0
    %1630 = vmatpush.bf16.msra.mxu0 0
    %1631 = vmatpush.bf16.msra.mxu0 0
    %1632 = vmatpush.bf16.msra.mxu0 0
    %1633 = vmatpush.bf16.msra.mxu0 0
    %1634 = vmatpush.bf16.msra.mxu0 0
    %1635 = vmatpush.bf16.msra.mxu0 0
    %1636 = vmatpush.bf16.msra.mxu0 %v1176
    %1637 = vmatmul.bf16.gmra.mxu0 %v1377
    %v1638 = vpop.f32.mrf.mxu0
    %v1639 = vadd.f32 %v1620, %v1638
    %v1640 = vpop.f32.mrf.mxu0
    %v1641 = vadd.f32 %v1622, %v1640
    %1642 = vmatmul.bf16.gmra.mxu0 %v1380
    %v1643 = vpop.f32.mrf.mxu0
    %v1644 = vadd.f32 %v1625, %v1643
    %v1645 = vpop.f32.mrf.mxu0
    %v1646 = vadd.f32 %v1627, %v1645
    %1647 = vdwg.mxu0
    %1648 = vmatpush.bf16.msra.mxu0 %v1013
    %1649 = vmatpush.bf16.msra.mxu0 %v1009
    %1650 = vmatpush.bf16.msra.mxu0 %v1005
    %1651 = vmatpush.bf16.msra.mxu0 %v1001
    %1652 = vmatpush.bf16.msra.mxu0 %v997
    %1653 = vmatpush.bf16.msra.mxu0 %v993
    %1654 = vmatpush.bf16.msra.mxu0 %v989
    %1655 = vmatpush.bf16.msra.mxu0 %v985
    %1656 = vmatmul.bf16.gmra.mxu0 %v175
    %v1657 = vpop.f32.mrf.mxu0
    %v1658 = vadd.f32 %v389, %v1657
    %v1659 = vpop.f32.mrf.mxu0
    %v1660 = vadd.f32 %v389, %v1659
    %1661 = vmatmul.bf16.gmra.mxu0 %v182
    %v1662 = vpop.f32.mrf.mxu0
    %v1663 = vadd.f32 %v389, %v1662
    %v1664 = vpop.f32.mrf.mxu0
    %v1665 = vadd.f32 %v389, %v1664
    %1666 = vdwg.mxu0
    %1667 = vmatpush.bf16.msra.mxu0 %v1045
    %1668 = vmatpush.bf16.msra.mxu0 %v1041
    %1669 = vmatpush.bf16.msra.mxu0 %v1037
    %1670 = vmatpush.bf16.msra.mxu0 %v1033
    %1671 = vmatpush.bf16.msra.mxu0 %v1029
    %1672 = vmatpush.bf16.msra.mxu0 %v1025
    %1673 = vmatpush.bf16.msra.mxu0 %v1021
    %1674 = vmatpush.bf16.msra.mxu0 %v1017
    %1675 = vmatmul.bf16.gmra.mxu0 %v176
    %v1676 = vpop.f32.mrf.mxu0
    %v1677 = vadd.f32 %v1658, %v1676
    %v1678 = vpop.f32.mrf.mxu0
    %v1679 = vadd.f32 %v1660, %v1678
    %1680 = vmatmul.bf16.gmra.mxu0 %v183
    %v1681 = vpop.f32.mrf.mxu0
    %v1682 = vadd.f32 %v1663, %v1681
    %v1683 = vpop.f32.mrf.mxu0
    %v1684 = vadd.f32 %v1665, %v1683
    %1685 = vdwg.mxu0
    %1686 = vmatpush.bf16.msra.mxu0 %v1077
    %1687 = vmatpush.bf16.msra.mxu0 %v1073
    %1688 = vmatpush.bf16.msra.mxu0 %v1069
    %1689 = vmatpush.bf16.msra.mxu0 %v1065
    %1690 = vmatpush.bf16.msra.mxu0 %v1061
    %1691 = vmatpush.bf16.msra.mxu0 %v1057
    %1692 = vmatpush.bf16.msra.mxu0 %v1053
    %1693 = vmatpush.bf16.msra.mxu0 %v1049
    %1694 = vmatmul.bf16.gmra.mxu0 %v177
    %v1695 = vpop.f32.mrf.mxu0
    %v1696 = vadd.f32 %v1677, %v1695
    %v1697 = vpop.f32.mrf.mxu0
    %v1698 = vadd.f32 %v1679, %v1697
    %1699 = vmatmul.bf16.gmra.mxu0 %v184
    %v1700 = vpop.f32.mrf.mxu0
    %v1701 = vadd.f32 %v1682, %v1700
    %v1702 = vpop.f32.mrf.mxu0
    %v1703 = vadd.f32 %v1684, %v1702
    %1704 = vdwg.mxu0
    %1705 = vmatpush.bf16.msra.mxu0 %v1109
    %1706 = vmatpush.bf16.msra.mxu0 %v1105
    %1707 = vmatpush.bf16.msra.mxu0 %v1101
    %1708 = vmatpush.bf16.msra.mxu0 %v1097
    %1709 = vmatpush.bf16.msra.mxu0 %v1093
    %1710 = vmatpush.bf16.msra.mxu0 %v1089
    %1711 = vmatpush.bf16.msra.mxu0 %v1085
    %1712 = vmatpush.bf16.msra.mxu0 %v1081
    %1713 = vmatmul.bf16.gmra.mxu0 %v178
    %v1714 = vpop.f32.mrf.mxu0
    %v1715 = vadd.f32 %v1696, %v1714
    %v1716 = vpop.f32.mrf.mxu0
    %v1717 = vadd.f32 %v1698, %v1716
    %1718 = vmatmul.bf16.gmra.mxu0 %v185
    %v1719 = vpop.f32.mrf.mxu0
    %v1720 = vadd.f32 %v1701, %v1719
    %v1721 = vpop.f32.mrf.mxu0
    %v1722 = vadd.f32 %v1703, %v1721
    %1723 = vdwg.mxu0
    %1724 = vmatpush.bf16.msra.mxu0 %v1141
    %1725 = vmatpush.bf16.msra.mxu0 %v1137
    %1726 = vmatpush.bf16.msra.mxu0 %v1133
    %1727 = vmatpush.bf16.msra.mxu0 %v1129
    %1728 = vmatpush.bf16.msra.mxu0 %v1125
    %1729 = vmatpush.bf16.msra.mxu0 %v1121
    %1730 = vmatpush.bf16.msra.mxu0 %v1117
    %1731 = vmatpush.bf16.msra.mxu0 %v1113
    %1732 = vmatmul.bf16.gmra.mxu0 %v179
    %v1733 = vpop.f32.mrf.mxu0
    %v1734 = vadd.f32 %v1715, %v1733
    %v1735 = vpop.f32.mrf.mxu0
    %v1736 = vadd.f32 %v1717, %v1735
    %1737 = vmatmul.bf16.gmra.mxu0 %v186
    %v1738 = vpop.f32.mrf.mxu0
    %v1739 = vadd.f32 %v1720, %v1738
    %v1740 = vpop.f32.mrf.mxu0
    %v1741 = vadd.f32 %v1722, %v1740
    %1742 = vdwg.mxu0
    %1743 = vmatpush.bf16.msra.mxu0 %v1173
    %1744 = vmatpush.bf16.msra.mxu0 %v1169
    %1745 = vmatpush.bf16.msra.mxu0 %v1165
    %1746 = vmatpush.bf16.msra.mxu0 %v1161
    %1747 = vmatpush.bf16.msra.mxu0 %v1157
    %1748 = vmatpush.bf16.msra.mxu0 %v1153
    %1749 = vmatpush.bf16.msra.mxu0 %v1149
    %1750 = vmatpush.bf16.msra.mxu0 %v1145
    %1751 = vmatmul.bf16.gmra.mxu0 %v180
    %v1752 = vpop.f32.mrf.mxu0
    %v1753 = vadd.f32 %v1734, %v1752
    %v1754 = vpop.f32.mrf.mxu0
    %v1755 = vadd.f32 %v1736, %v1754
    %1756 = vmatmul.bf16.gmra.mxu0 %v187
    %v1757 = vpop.f32.mrf.mxu0
    %v1758 = vadd.f32 %v1739, %v1757
    %v1759 = vpop.f32.mrf.mxu0
    %v1760 = vadd.f32 %v1741, %v1759
    %1761 = vdwg.mxu0
    %1762 = vmatpush.bf16.msra.mxu0 0
    %1763 = vmatpush.bf16.msra.mxu0 0
    %1764 = vmatpush.bf16.msra.mxu0 0
    %1765 = vmatpush.bf16.msra.mxu0 0
    %1766 = vmatpush.bf16.msra.mxu0 0
    %1767 = vmatpush.bf16.msra.mxu0 0
    %1768 = vmatpush.bf16.msra.mxu0 0
    %1769 = vmatpush.bf16.msra.mxu0 %v1177
    %1770 = vmatmul.bf16.gmra.mxu0 %v1377
    %v1771 = vpop.f32.mrf.mxu0
    %v1772 = vadd.f32 %v1753, %v1771
    %v1773 = vpop.f32.mrf.mxu0
    %v1774 = vadd.f32 %v1755, %v1773
    %1775 = vmatmul.bf16.gmra.mxu0 %v1380
    %v1776 = vpop.f32.mrf.mxu0
    %v1777 = vadd.f32 %v1758, %v1776
    %v1778 = vpop.f32.mrf.mxu0
    %v1779 = vadd.f32 %v1760, %v1778
    %1780 = vdwg.mxu0
    %1781 = vmatpush.bf16.msra.mxu0 %v1014
    %1782 = vmatpush.bf16.msra.mxu0 %v1010
    %1783 = vmatpush.bf16.msra.mxu0 %v1006
    %1784 = vmatpush.bf16.msra.mxu0 %v1002
    %1785 = vmatpush.bf16.msra.mxu0 %v998
    %1786 = vmatpush.bf16.msra.mxu0 %v994
    %1787 = vmatpush.bf16.msra.mxu0 %v990
    %1788 = vmatpush.bf16.msra.mxu0 %v986
    %1789 = vmatmul.bf16.gmra.mxu0 %v175
    %v1790 = vpop.f32.mrf.mxu0
    %v1791 = vadd.f32 %v390, %v1790
    %v1792 = vpop.f32.mrf.mxu0
    %v1793 = vadd.f32 %v390, %v1792
    %1794 = vmatmul.bf16.gmra.mxu0 %v182
    %v1795 = vpop.f32.mrf.mxu0
    %v1796 = vadd.f32 %v390, %v1795
    %v1797 = vpop.f32.mrf.mxu0
    %v1798 = vadd.f32 %v390, %v1797
    %1799 = vdwg.mxu0
    %1800 = vmatpush.bf16.msra.mxu0 %v1046
    %1801 = vmatpush.bf16.msra.mxu0 %v1042
    %1802 = vmatpush.bf16.msra.mxu0 %v1038
    %1803 = vmatpush.bf16.msra.mxu0 %v1034
    %1804 = vmatpush.bf16.msra.mxu0 %v1030
    %1805 = vmatpush.bf16.msra.mxu0 %v1026
    %1806 = vmatpush.bf16.msra.mxu0 %v1022
    %1807 = vmatpush.bf16.msra.mxu0 %v1018
    %1808 = vmatmul.bf16.gmra.mxu0 %v176
    %v1809 = vpop.f32.mrf.mxu0
    %v1810 = vadd.f32 %v1791, %v1809
    %v1811 = vpop.f32.mrf.mxu0
    %v1812 = vadd.f32 %v1793, %v1811
    %1813 = vmatmul.bf16.gmra.mxu0 %v183
    %v1814 = vpop.f32.mrf.mxu0
    %v1815 = vadd.f32 %v1796, %v1814
    %v1816 = vpop.f32.mrf.mxu0
    %v1817 = vadd.f32 %v1798, %v1816
    %1818 = vdwg.mxu0
    %1819 = vmatpush.bf16.msra.mxu0 %v1078
    %1820 = vmatpush.bf16.msra.mxu0 %v1074
    %1821 = vmatpush.bf16.msra.mxu0 %v1070
    %1822 = vmatpush.bf16.msra.mxu0 %v1066
    %1823 = vmatpush.bf16.msra.mxu0 %v1062
    %1824 = vmatpush.bf16.msra.mxu0 %v1058
    %1825 = vmatpush.bf16.msra.mxu0 %v1054
    %1826 = vmatpush.bf16.msra.mxu0 %v1050
    %1827 = vmatmul.bf16.gmra.mxu0 %v177
    %v1828 = vpop.f32.mrf.mxu0
    %v1829 = vadd.f32 %v1810, %v1828
    %v1830 = vpop.f32.mrf.mxu0
    %v1831 = vadd.f32 %v1812, %v1830
    %1832 = vmatmul.bf16.gmra.mxu0 %v184
    %v1833 = vpop.f32.mrf.mxu0
    %v1834 = vadd.f32 %v1815, %v1833
    %v1835 = vpop.f32.mrf.mxu0
    %v1836 = vadd.f32 %v1817, %v1835
    %1837 = vdwg.mxu0
    %1838 = vmatpush.bf16.msra.mxu0 %v1110
    %1839 = vmatpush.bf16.msra.mxu0 %v1106
    %1840 = vmatpush.bf16.msra.mxu0 %v1102
    %1841 = vmatpush.bf16.msra.mxu0 %v1098
    %1842 = vmatpush.bf16.msra.mxu0 %v1094
    %1843 = vmatpush.bf16.msra.mxu0 %v1090
    %1844 = vmatpush.bf16.msra.mxu0 %v1086
    %1845 = vmatpush.bf16.msra.mxu0 %v1082
    %1846 = vmatmul.bf16.gmra.mxu0 %v178
    %v1847 = vpop.f32.mrf.mxu0
    %v1848 = vadd.f32 %v1829, %v1847
    %v1849 = vpop.f32.mrf.mxu0
    %v1850 = vadd.f32 %v1831, %v1849
    %1851 = vmatmul.bf16.gmra.mxu0 %v185
    %v1852 = vpop.f32.mrf.mxu0
    %v1853 = vadd.f32 %v1834, %v1852
    %v1854 = vpop.f32.mrf.mxu0
    %v1855 = vadd.f32 %v1836, %v1854
    %1856 = vdwg.mxu0
    %1857 = vmatpush.bf16.msra.mxu0 %v1142
    %1858 = vmatpush.bf16.msra.mxu0 %v1138
    %1859 = vmatpush.bf16.msra.mxu0 %v1134
    %1860 = vmatpush.bf16.msra.mxu0 %v1130
    %1861 = vmatpush.bf16.msra.mxu0 %v1126
    %1862 = vmatpush.bf16.msra.mxu0 %v1122
    %1863 = vmatpush.bf16.msra.mxu0 %v1118
    %1864 = vmatpush.bf16.msra.mxu0 %v1114
    %1865 = vmatmul.bf16.gmra.mxu0 %v179
    %v1866 = vpop.f32.mrf.mxu0
    %v1867 = vadd.f32 %v1848, %v1866
    %v1868 = vpop.f32.mrf.mxu0
    %v1869 = vadd.f32 %v1850, %v1868
    %1870 = vmatmul.bf16.gmra.mxu0 %v186
    %v1871 = vpop.f32.mrf.mxu0
    %v1872 = vadd.f32 %v1853, %v1871
    %v1873 = vpop.f32.mrf.mxu0
    %v1874 = vadd.f32 %v1855, %v1873
    %1875 = vdwg.mxu0
    %1876 = vmatpush.bf16.msra.mxu0 %v1174
    %1877 = vmatpush.bf16.msra.mxu0 %v1170
    %1878 = vmatpush.bf16.msra.mxu0 %v1166
    %1879 = vmatpush.bf16.msra.mxu0 %v1162
    %1880 = vmatpush.bf16.msra.mxu0 %v1158
    %1881 = vmatpush.bf16.msra.mxu0 %v1154
    %1882 = vmatpush.bf16.msra.mxu0 %v1150
    %1883 = vmatpush.bf16.msra.mxu0 %v1146
    %1884 = vmatmul.bf16.gmra.mxu0 %v180
    %v1885 = vpop.f32.mrf.mxu0
    %v1886 = vadd.f32 %v1867, %v1885
    %v1887 = vpop.f32.mrf.mxu0
    %v1888 = vadd.f32 %v1869, %v1887
    %1889 = vmatmul.bf16.gmra.mxu0 %v187
    %v1890 = vpop.f32.mrf.mxu0
    %v1891 = vadd.f32 %v1872, %v1890
    %v1892 = vpop.f32.mrf.mxu0
    %v1893 = vadd.f32 %v1874, %v1892
    %1894 = vdwg.mxu0
    %1895 = vmatpush.bf16.msra.mxu0 0
    %1896 = vmatpush.bf16.msra.mxu0 0
    %1897 = vmatpush.bf16.msra.mxu0 0
    %1898 = vmatpush.bf16.msra.mxu0 0
    %1899 = vmatpush.bf16.msra.mxu0 0
    %1900 = vmatpush.bf16.msra.mxu0 0
    %1901 = vmatpush.bf16.msra.mxu0 0
    %1902 = vmatpush.bf16.msra.mxu0 %v1178
    %1903 = vmatmul.bf16.gmra.mxu0 %v1377
    %v1904 = vpop.f32.mrf.mxu0
    %v1905 = vadd.f32 %v1886, %v1904
    %v1906 = vpop.f32.mrf.mxu0
    %v1907 = vadd.f32 %v1888, %v1906
    %1908 = vmatmul.bf16.gmra.mxu0 %v1380
    %v1909 = vpop.f32.mrf.mxu0
    %v1910 = vadd.f32 %v1891, %v1909
    %v1911 = vpop.f32.mrf.mxu0
    %v1912 = vadd.f32 %v1893, %v1911
    %1913 = vdwg.mxu0
    %v1914 = vmax.f32 %v1506, 0.0
    %v1915 = vmax.f32 %v1639, 0.0
    %v1916 = vmax.f32 %v1772, 0.0
    %v1917 = vmax.f32 %v1905, 0.0
    %v1918 = vmax.f32 %v1508, 0.0
    %v1919 = vmax.f32 %v1641, 0.0
    %v1920 = vmax.f32 %v1774, 0.0
    %v1921 = vmax.f32 %v1907, 0.0
    %v1922 = vmax.f32 %v1511, 0.0
    %v1923 = vmax.f32 %v1644, 0.0
    %v1924 = vmax.f32 %v1777, 0.0
    %v1925 = vmax.f32 %v1910, 0.0
    %v1926 = vmax.f32 %v1513, 0.0
    %v1927 = vmax.f32 %v1646, 0.0
    %v1928 = vmax.f32 %v1779, 0.0
    %v1929 = vmax.f32 %v1912, 0.0
    %v1930 = vpack.c.bf16 %v1918, %v1914
    %v1931 = vpack.c.bf16 %v1919, %v1915
    %v1932 = vpack.c.bf16 %v1920, %v1916
    %v1933 = vpack.c.bf16 %v1921, %v1917
    %v1934 = vpack.c.bf16 %v1926, %v1922
    %v1935 = vpack.c.bf16 %v1927, %v1923
    %v1936 = vpack.c.bf16 %v1928, %v1924
    %v1937 = vpack.c.bf16 %v1929, %v1925
    %v1938 = vld [vmem:[#allocation8] sm:$0xff]
    %v1939 = vld [vmem:[#allocation8 + $0x8] sm:$0xff]
    %v1940 = vld [vmem:[#allocation8 + $0x10] sm:$0xff]
    %v1941 = vld [vmem:[#allocation8 + $0x18] sm:$0xff]
    %v1942 = vld [vmem:[#allocation8 + $0x20] sm:$0xff]
    %v1943 = vld [vmem:[#allocation8 + $0x28] sm:$0xff]
    %v1944 = vld [vmem:[#allocation8 + $0x30] sm:$0xff]
    %v1945 = vld [vmem:[#allocation8 + $0x38] sm:$0xff]
    %v1946 = vld [vmem:[#allocation8 + $0x40] sm:$0xff]
    %v1947 = vld [vmem:[#allocation8 + $0x48] sm:$0xff]
    %v1948 = vld [vmem:[#allocation8 + $0x50] sm:$0xff]
    %v1949 = vld [vmem:[#allocation8 + $0x58] sm:$0xff]
    %v1950 = vld [vmem:[#allocation8 + $0x60] sm:$0xff]
    %v1951 = vld [vmem:[#allocation8 + $0x68] sm:$0xff]
    %v1952 = vld [vmem:[#allocation8 + $0x70] sm:$0xff]
    %v1953 = vld [vmem:[#allocation8 + $0x78] sm:$0xff]
    %v1954 = vld [vmem:[#allocation8 + $0x80] sm:$0xff]
    %v1955 = vld [vmem:[#allocation8 + $0x88] sm:$0xff]
    %v1956 = vld [vmem:[#allocation8 + $0x90] sm:$0xff]
    %v1957 = vld [vmem:[#allocation8 + $0x98] sm:$0xff]
    %v1958 = vld [vmem:[#allocation8 + $0xa0] sm:$0xff]
    %v1959 = vld [vmem:[#allocation8 + $0xa8] sm:$0xff]
    %v1960 = vld [vmem:[#allocation8 + $0xb0] sm:$0xff]
    %v1961 = vld [vmem:[#allocation8 + $0xb8] sm:$0xff]
    %v1962 = vld [vmem:[#allocation8 + $0xc0] sm:$0xff]
    %v1963 = vld [vmem:[#allocation8 + $0xc8] sm:$0xff]
    %v1964 = vld [vmem:[#allocation8 + $0xd0] sm:$0xff]
    %v1965 = vld [vmem:[#allocation8 + $0xd8] sm:$0xff]
    %v1966 = vld [vmem:[#allocation8 + $0xe0] sm:$0xff]
    %v1967 = vld [vmem:[#allocation8 + $0xe8] sm:$0xff]
    %v1968 = vld [vmem:[#allocation8 + $0xf0] sm:$0xff]
    %v1969 = vld [vmem:[#allocation8 + $0xf8] sm:$0xff]
    %v1970 = vld [vmem:[#allocation8 + $0x100] sm:$0xff]
    %v1971 = vld [vmem:[#allocation8 + $0x108] sm:$0xff]
    %v1972 = vld [vmem:[#allocation8 + $0x110] sm:$0xff]
    %v1973 = vld [vmem:[#allocation8 + $0x118] sm:$0xff]
    %v1974 = vld [vmem:[#allocation8 + $0x120] sm:$0xff]
    %v1975 = vld [vmem:[#allocation8 + $0x128] sm:$0xff]
    %v1976 = vld [vmem:[#allocation8 + $0x130] sm:$0xff]
    %v1977 = vld [vmem:[#allocation8 + $0x138] sm:$0xff]
    %v1978 = vld [vmem:[#allocation8 + $0x140] sm:$0xff]
    %v1979 = vld [vmem:[#allocation8 + $0x148] sm:$0xff]
    %v1980 = vld [vmem:[#allocation8 + $0x150] sm:$0xff]
    %v1981 = vld [vmem:[#allocation8 + $0x158] sm:$0xff]
    %v1982 = vld [vmem:[#allocation8 + $0x160] sm:$0xff]
    %v1983 = vld [vmem:[#allocation8 + $0x168] sm:$0xff]
    %v1984 = vld [vmem:[#allocation8 + $0x170] sm:$0xff]
    %v1985 = vld [vmem:[#allocation8 + $0x178] sm:$0xff]
    %v1986 = vld [vmem:[#allocation8 + $0x180] sm:$0xff]
    %v1987 = vld [vmem:[#allocation8 + $0x188] sm:$0xff]
    %v1988 = vld [vmem:[#allocation8 + $0x190] sm:$0xff]
    %v1989 = vld [vmem:[#allocation8 + $0x198] sm:$0xff]
    %v1990 = vld [vmem:[#allocation8 + $0x1a0] sm:$0xff]
    %v1991 = vld [vmem:[#allocation8 + $0x1a8] sm:$0xff]
    %v1992 = vld [vmem:[#allocation8 + $0x1b0] sm:$0xff]
    %v1993 = vld [vmem:[#allocation8 + $0x1b8] sm:$0xff]
    %v1994 = vld [vmem:[#allocation8 + $0x1c0] sm:$0xff]
    %v1995 = vld [vmem:[#allocation8 + $0x1c8] sm:$0xff]
    %v1996 = vld [vmem:[#allocation8 + $0x1d0] sm:$0xff]
    %v1997 = vld [vmem:[#allocation8 + $0x1d8] sm:$0xff]
    %v1998 = vld [vmem:[#allocation8 + $0x1e0] sm:$0xff]
    %v1999 = vld [vmem:[#allocation8 + $0x1e8] sm:$0xff]
    %v2000 = vld [vmem:[#allocation8 + $0x1f0] sm:$0xff]
    %v2001 = vld [vmem:[#allocation8 + $0x1f8] sm:$0xff]
    %v2002 = vld [vmem:[%s4] sm:$0x3]
    %v2004 = vperm.slane %v2002, 0
    %v2005 = vperm.slane %v2002, 1
    %v2072 = vunpack.c.l.b16 %v1938
    %v2073 = vunpack.c.h.b16 %v1938
    %v2074 = vunpack.c.l.b16 %v1939
    %v2075 = vunpack.c.h.b16 %v1939
    %v2076 = vunpack.c.l.b16 %v1940
    %v2077 = vunpack.c.h.b16 %v1940
    %v2078 = vunpack.c.l.b16 %v1941
    %v2079 = vunpack.c.h.b16 %v1941
    %v2080 = vunpack.c.l.b16 %v1942
    %v2081 = vunpack.c.h.b16 %v1942
    %v2082 = vunpack.c.l.b16 %v1943
    %v2083 = vunpack.c.h.b16 %v1943
    %v2084 = vunpack.c.l.b16 %v1944
    %v2085 = vunpack.c.h.b16 %v1944
    %v2086 = vunpack.c.l.b16 %v1945
    %v2087 = vunpack.c.h.b16 %v1945
    %v2088 = vunpack.c.l.b16 %v1946
    %v2089 = vunpack.c.h.b16 %v1946
    %v2090 = vunpack.c.l.b16 %v1947
    %v2091 = vunpack.c.h.b16 %v1947
    %v2092 = vunpack.c.l.b16 %v1948
    %v2093 = vunpack.c.h.b16 %v1948
    %v2094 = vunpack.c.l.b16 %v1949
    %v2095 = vunpack.c.h.b16 %v1949
    %v2096 = vunpack.c.l.b16 %v1950
    %v2097 = vunpack.c.h.b16 %v1950
    %v2098 = vunpack.c.l.b16 %v1951
    %v2099 = vunpack.c.h.b16 %v1951
    %v2100 = vunpack.c.l.b16 %v1952
    %v2101 = vunpack.c.h.b16 %v1952
    %v2102 = vunpack.c.l.b16 %v1953
    %v2103 = vunpack.c.h.b16 %v1953
    %v2104 = vunpack.c.l.b16 %v1954
    %v2105 = vunpack.c.h.b16 %v1954
    %v2106 = vunpack.c.l.b16 %v1955
    %v2107 = vunpack.c.h.b16 %v1955
    %v2108 = vunpack.c.l.b16 %v1956
    %v2109 = vunpack.c.h.b16 %v1956
    %v2110 = vunpack.c.l.b16 %v1957
    %v2111 = vunpack.c.h.b16 %v1957
    %v2112 = vunpack.c.l.b16 %v1958
    %v2113 = vunpack.c.h.b16 %v1958
    %v2114 = vunpack.c.l.b16 %v1959
    %v2115 = vunpack.c.h.b16 %v1959
    %v2116 = vunpack.c.l.b16 %v1960
    %v2117 = vunpack.c.h.b16 %v1960
    %v2118 = vunpack.c.l.b16 %v1961
    %v2119 = vunpack.c.h.b16 %v1961
    %v2120 = vunpack.c.l.b16 %v1962
    %v2121 = vunpack.c.h.b16 %v1962
    %v2122 = vunpack.c.l.b16 %v1963
    %v2123 = vunpack.c.h.b16 %v1963
    %v2124 = vunpack.c.l.b16 %v1964
    %v2125 = vunpack.c.h.b16 %v1964
    %v2126 = vunpack.c.l.b16 %v1965
    %v2127 = vunpack.c.h.b16 %v1965
    %v2128 = vunpack.c.l.b16 %v1966
    %v2129 = vunpack.c.h.b16 %v1966
    %v2130 = vunpack.c.l.b16 %v1967
    %v2131 = vunpack.c.h.b16 %v1967
    %v2132 = vunpack.c.l.b16 %v1968
    %v2133 = vunpack.c.h.b16 %v1968
    %v2134 = vunpack.c.l.b16 %v1969
    %v2135 = vunpack.c.h.b16 %v1969
    %v2136 = vunpack.c.l.b16 %v1970
    %v2137 = vunpack.c.h.b16 %v1970
    %v2138 = vunpack.c.l.b16 %v1971
    %v2139 = vunpack.c.h.b16 %v1971
    %v2140 = vunpack.c.l.b16 %v1972
    %v2141 = vunpack.c.h.b16 %v1972
    %v2142 = vunpack.c.l.b16 %v1973
    %v2143 = vunpack.c.h.b16 %v1973
    %v2144 = vunpack.c.l.b16 %v1974
    %v2145 = vunpack.c.h.b16 %v1974
    %v2146 = vunpack.c.l.b16 %v1975
    %v2147 = vunpack.c.h.b16 %v1975
    %v2148 = vunpack.c.l.b16 %v1976
    %v2149 = vunpack.c.h.b16 %v1976
    %v2150 = vunpack.c.l.b16 %v1977
    %v2151 = vunpack.c.h.b16 %v1977
    %v2152 = vunpack.c.l.b16 %v1978
    %v2153 = vunpack.c.h.b16 %v1978
    %v2154 = vunpack.c.l.b16 %v1979
    %v2155 = vunpack.c.h.b16 %v1979
    %v2156 = vunpack.c.l.b16 %v1980
    %v2157 = vunpack.c.h.b16 %v1980
    %v2158 = vunpack.c.l.b16 %v1981
    %v2159 = vunpack.c.h.b16 %v1981
    %v2160 = vunpack.c.l.b16 %v1982
    %v2161 = vunpack.c.h.b16 %v1982
    %v2162 = vunpack.c.l.b16 %v1983
    %v2163 = vunpack.c.h.b16 %v1983
    %v2164 = vunpack.c.l.b16 %v1984
    %v2165 = vunpack.c.h.b16 %v1984
    %v2166 = vunpack.c.l.b16 %v1985
    %v2167 = vunpack.c.h.b16 %v1985
    %v2168 = vunpack.c.l.b16 %v1986
    %v2169 = vunpack.c.h.b16 %v1986
    %v2170 = vunpack.c.l.b16 %v1987
    %v2171 = vunpack.c.h.b16 %v1987
    %v2172 = vunpack.c.l.b16 %v1988
    %v2173 = vunpack.c.h.b16 %v1988
    %v2174 = vunpack.c.l.b16 %v1989
    %v2175 = vunpack.c.h.b16 %v1989
    %v2176 = vunpack.c.l.b16 %v1990
    %v2177 = vunpack.c.h.b16 %v1990
    %v2178 = vunpack.c.l.b16 %v1991
    %v2179 = vunpack.c.h.b16 %v1991
    %v2180 = vunpack.c.l.b16 %v1992
    %v2181 = vunpack.c.h.b16 %v1992
    %v2182 = vunpack.c.l.b16 %v1993
    %v2183 = vunpack.c.h.b16 %v1993
    %v2184 = vunpack.c.l.b16 %v1994
    %v2185 = vunpack.c.h.b16 %v1994
    %v2186 = vunpack.c.l.b16 %v1995
    %v2187 = vunpack.c.h.b16 %v1995
    %v2188 = vunpack.c.l.b16 %v1996
    %v2189 = vunpack.c.h.b16 %v1996
    %v2190 = vunpack.c.l.b16 %v1997
    %v2191 = vunpack.c.h.b16 %v1997
    %v2192 = vunpack.c.l.b16 %v1998
    %v2193 = vunpack.c.h.b16 %v1998
    %v2194 = vunpack.c.l.b16 %v1999
    %v2195 = vunpack.c.h.b16 %v1999
    %v2196 = vunpack.c.l.b16 %v2000
    %v2197 = vunpack.c.h.b16 %v2000
    %v2198 = vunpack.c.l.b16 %v2001
    %v2199 = vunpack.c.h.b16 %v2001
    %v2200 = vpack.c.b16 %v2074, %v2072
    %v2201 = vpack.c.b16 %v2075, %v2073
    %v2202 = vpack.c.b16 %v2078, %v2076
    %v2203 = vpack.c.b16 %v2079, %v2077
    %v2204 = vpack.c.b16 %v2082, %v2080
    %v2205 = vpack.c.b16 %v2083, %v2081
    %v2206 = vpack.c.b16 %v2086, %v2084
    %v2207 = vpack.c.b16 %v2087, %v2085
    %v2208 = vpack.c.b16 %v2090, %v2088
    %v2209 = vpack.c.b16 %v2091, %v2089
    %v2210 = vpack.c.b16 %v2094, %v2092
    %v2211 = vpack.c.b16 %v2095, %v2093
    %v2212 = vpack.c.b16 %v2098, %v2096
    %v2213 = vpack.c.b16 %v2099, %v2097
    %v2214 = vpack.c.b16 %v2102, %v2100
    %v2215 = vpack.c.b16 %v2103, %v2101
    %v2216 = vpack.c.b16 %v2106, %v2104
    %v2217 = vpack.c.b16 %v2107, %v2105
    %v2218 = vpack.c.b16 %v2110, %v2108
    %v2219 = vpack.c.b16 %v2111, %v2109
    %v2220 = vpack.c.b16 %v2114, %v2112
    %v2221 = vpack.c.b16 %v2115, %v2113
    %v2222 = vpack.c.b16 %v2118, %v2116
    %v2223 = vpack.c.b16 %v2119, %v2117
    %v2224 = vpack.c.b16 %v2122, %v2120
    %v2225 = vpack.c.b16 %v2123, %v2121
    %v2226 = vpack.c.b16 %v2126, %v2124
    %v2227 = vpack.c.b16 %v2127, %v2125
    %v2228 = vpack.c.b16 %v2130, %v2128
    %v2229 = vpack.c.b16 %v2131, %v2129
    %v2230 = vpack.c.b16 %v2134, %v2132
    %v2231 = vpack.c.b16 %v2135, %v2133
    %v2232 = vpack.c.b16 %v2138, %v2136
    %v2233 = vpack.c.b16 %v2139, %v2137
    %v2234 = vpack.c.b16 %v2142, %v2140
    %v2235 = vpack.c.b16 %v2143, %v2141
    %v2236 = vpack.c.b16 %v2146, %v2144
    %v2237 = vpack.c.b16 %v2147, %v2145
    %v2238 = vpack.c.b16 %v2150, %v2148
    %v2239 = vpack.c.b16 %v2151, %v2149
    %v2240 = vpack.c.b16 %v2154, %v2152
    %v2241 = vpack.c.b16 %v2155, %v2153
    %v2242 = vpack.c.b16 %v2158, %v2156
    %v2243 = vpack.c.b16 %v2159, %v2157
    %v2244 = vpack.c.b16 %v2162, %v2160
    %v2245 = vpack.c.b16 %v2163, %v2161
    %v2246 = vpack.c.b16 %v2166, %v2164
    %v2247 = vpack.c.b16 %v2167, %v2165
    %v2248 = vpack.c.b16 %v2170, %v2168
    %v2249 = vpack.c.b16 %v2171, %v2169
    %v2250 = vpack.c.b16 %v2174, %v2172
    %v2251 = vpack.c.b16 %v2175, %v2173
    %v2252 = vpack.c.b16 %v2178, %v2176
    %v2253 = vpack.c.b16 %v2179, %v2177
    %v2254 = vpack.c.b16 %v2182, %v2180
    %v2255 = vpack.c.b16 %v2183, %v2181
    %v2256 = vpack.c.b16 %v2186, %v2184
    %v2257 = vpack.c.b16 %v2187, %v2185
    %v2258 = vpack.c.b16 %v2190, %v2188
    %v2259 = vpack.c.b16 %v2191, %v2189
    %v2260 = vpack.c.b16 %v2194, %v2192
    %v2261 = vpack.c.b16 %v2195, %v2193
    %v2262 = vpack.c.b16 %v2198, %v2196
    %v2263 = vpack.c.b16 %v2199, %v2197
    %2328 = vmatpush.bf16.msra.mxu0 %v2214
    %2329 = vmatpush.bf16.msra.mxu0 %v2212
    %2330 = vmatpush.bf16.msra.mxu0 %v2210
    %2331 = vmatpush.bf16.msra.mxu0 %v2208
    %2332 = vmatpush.bf16.msra.mxu0 %v2206
    %2333 = vmatpush.bf16.msra.mxu0 %v2204
    %2334 = vmatpush.bf16.msra.mxu0 %v2202
    %2335 = vmatpush.bf16.msra.mxu0 %v2200
    %2336 = vmatmul.bf16.gmra.mxu0 %v1930
    %v2337 = vpop.f32.mrf.mxu0
    %v2338 = vadd.f32 %v2004, %v2337
    %v2339 = vpop.f32.mrf.mxu0
    %v2340 = vadd.f32 %v2004, %v2339
    %2341 = vmatmul.bf16.gmra.mxu0 %v1934
    %v2342 = vpop.f32.mrf.mxu0
    %v2343 = vadd.f32 %v2004, %v2342
    %v2344 = vpop.f32.mrf.mxu0
    %v2345 = vadd.f32 %v2004, %v2344
    %2346 = vdwg.mxu0
    %2347 = vmatpush.bf16.msra.mxu0 %v2230
    %2348 = vmatpush.bf16.msra.mxu0 %v2228
    %2349 = vmatpush.bf16.msra.mxu0 %v2226
    %2350 = vmatpush.bf16.msra.mxu0 %v2224
    %2351 = vmatpush.bf16.msra.mxu0 %v2222
    %2352 = vmatpush.bf16.msra.mxu0 %v2220
    %2353 = vmatpush.bf16.msra.mxu0 %v2218
    %2354 = vmatpush.bf16.msra.mxu0 %v2216
    %2355 = vmatmul.bf16.gmra.mxu0 %v1931
    %v2356 = vpop.f32.mrf.mxu0
    %v2357 = vadd.f32 %v2338, %v2356
    %v2358 = vpop.f32.mrf.mxu0
    %v2359 = vadd.f32 %v2340, %v2358
    %2360 = vmatmul.bf16.gmra.mxu0 %v1935
    %v2361 = vpop.f32.mrf.mxu0
    %v2362 = vadd.f32 %v2343, %v2361
    %v2363 = vpop.f32.mrf.mxu0
    %v2364 = vadd.f32 %v2345, %v2363
    %2365 = vdwg.mxu0
    %2366 = vmatpush.bf16.msra.mxu0 %v2246
    %2367 = vmatpush.bf16.msra.mxu0 %v2244
    %2368 = vmatpush.bf16.msra.mxu0 %v2242
    %2369 = vmatpush.bf16.msra.mxu0 %v2240
    %2370 = vmatpush.bf16.msra.mxu0 %v2238
    %2371 = vmatpush.bf16.msra.mxu0 %v2236
    %2372 = vmatpush.bf16.msra.mxu0 %v2234
    %2373 = vmatpush.bf16.msra.mxu0 %v2232
    %2374 = vmatmul.bf16.gmra.mxu0 %v1932
    %v2375 = vpop.f32.mrf.mxu0
    %v2376 = vadd.f32 %v2357, %v2375
    %v2377 = vpop.f32.mrf.mxu0
    %v2378 = vadd.f32 %v2359, %v2377
    %2379 = vmatmul.bf16.gmra.mxu0 %v1936
    %v2380 = vpop.f32.mrf.mxu0
    %v2381 = vadd.f32 %v2362, %v2380
    %v2382 = vpop.f32.mrf.mxu0
    %v2383 = vadd.f32 %v2364, %v2382
    %2384 = vdwg.mxu0
    %2385 = vmatpush.bf16.msra.mxu0 %v2262
    %2386 = vmatpush.bf16.msra.mxu0 %v2260
    %2387 = vmatpush.bf16.msra.mxu0 %v2258
    %2388 = vmatpush.bf16.msra.mxu0 %v2256
    %2389 = vmatpush.bf16.msra.mxu0 %v2254
    %2390 = vmatpush.bf16.msra.mxu0 %v2252
    %2391 = vmatpush.bf16.msra.mxu0 %v2250
    %2392 = vmatpush.bf16.msra.mxu0 %v2248
    %2393 = vmatmul.bf16.gmra.mxu0 %v1933
    %v2394 = vpop.f32.mrf.mxu0
    %v2395 = vadd.f32 %v2376, %v2394
    %v2396 = vpop.f32.mrf.mxu0
    %v2397 = vadd.f32 %v2378, %v2396
    %2398 = vmatmul.bf16.gmra.mxu0 %v1937
    %v2399 = vpop.f32.mrf.mxu0
    %v2400 = vadd.f32 %v2381, %v2399
    %v2401 = vpop.f32.mrf.mxu0
    %v2402 = vadd.f32 %v2383, %v2401
    %2403 = vdwg.mxu0
    %2404 = vmatpush.bf16.msra.mxu0 %v2215
    %2405 = vmatpush.bf16.msra.mxu0 %v2213
    %2406 = vmatpush.bf16.msra.mxu0 %v2211
    %2407 = vmatpush.bf16.msra.mxu0 %v2209
    %2408 = vmatpush.bf16.msra.mxu0 %v2207
    %2409 = vmatpush.bf16.msra.mxu0 %v2205
    %2410 = vmatpush.bf16.msra.mxu0 %v2203
    %2411 = vmatpush.bf16.msra.mxu0 %v2201
    %2412 = vmatmul.bf16.gmra.mxu0 %v1930
    %v2413 = vpop.f32.mrf.mxu0
    %v2414 = vadd.f32 %v2005, %v2413
    %v2415 = vpop.f32.mrf.mxu0
    %v2416 = vadd.f32 %v2005, %v2415
    %2417 = vmatmul.bf16.gmra.mxu0 %v1934
    %v2418 = vpop.f32.mrf.mxu0
    %v2419 = vadd.f32 %v2005, %v2418
    %v2420 = vpop.f32.mrf.mxu0
    %v2421 = vadd.f32 %v2005, %v2420
    %2422 = vdwg.mxu0
    %2423 = vmatpush.bf16.msra.mxu0 %v2231
    %2424 = vmatpush.bf16.msra.mxu0 %v2229
    %2425 = vmatpush.bf16.msra.mxu0 %v2227
    %2426 = vmatpush.bf16.msra.mxu0 %v2225
    %2427 = vmatpush.bf16.msra.mxu0 %v2223
    %2428 = vmatpush.bf16.msra.mxu0 %v2221
    %2429 = vmatpush.bf16.msra.mxu0 %v2219
    %2430 = vmatpush.bf16.msra.mxu0 %v2217
    %2431 = vmatmul.bf16.gmra.mxu0 %v1931
    %v2432 = vpop.f32.mrf.mxu0
    %v2433 = vadd.f32 %v2414, %v2432
    %v2434 = vpop.f32.mrf.mxu0
    %v2435 = vadd.f32 %v2416, %v2434
    %2436 = vmatmul.bf16.gmra.mxu0 %v1935
    %v2437 = vpop.f32.mrf.mxu0
    %v2438 = vadd.f32 %v2419, %v2437
    %v2439 = vpop.f32.mrf.mxu0
    %v2440 = vadd.f32 %v2421, %v2439
    %2441 = vdwg.mxu0
    %2442 = vmatpush.bf16.msra.mxu0 %v2247
    %2443 = vmatpush.bf16.msra.mxu0 %v2245
    %2444 = vmatpush.bf16.msra.mxu0 %v2243
    %2445 = vmatpush.bf16.msra.mxu0 %v2241
    %2446 = vmatpush.bf16.msra.mxu0 %v2239
    %2447 = vmatpush.bf16.msra.mxu0 %v2237
    %2448 = vmatpush.bf16.msra.mxu0 %v2235
    %2449 = vmatpush.bf16.msra.mxu0 %v2233
    %2450 = vmatmul.bf16.gmra.mxu0 %v1932
    %v2451 = vpop.f32.mrf.mxu0
    %v2452 = vadd.f32 %v2433, %v2451
    %v2453 = vpop.f32.mrf.mxu0
    %v2454 = vadd.f32 %v2435, %v2453
    %2455 = vmatmul.bf16.gmra.mxu0 %v1936
    %v2456 = vpop.f32.mrf.mxu0
    %v2457 = vadd.f32 %v2438, %v2456
    %v2458 = vpop.f32.mrf.mxu0
    %v2459 = vadd.f32 %v2440, %v2458
    %2460 = vdwg.mxu0
    %2461 = vmatpush.bf16.msra.mxu0 %v2263
    %2462 = vmatpush.bf16.msra.mxu0 %v2261
    %2463 = vmatpush.bf16.msra.mxu0 %v2259
    %2464 = vmatpush.bf16.msra.mxu0 %v2257
    %2465 = vmatpush.bf16.msra.mxu0 %v2255
    %2466 = vmatpush.bf16.msra.mxu0 %v2253
    %2467 = vmatpush.bf16.msra.mxu0 %v2251
    %2468 = vmatpush.bf16.msra.mxu0 %v2249
    %2469 = vmatmul.bf16.gmra.mxu0 %v1933
    %v2470 = vpop.f32.mrf.mxu0
    %v2471 = vadd.f32 %v2452, %v2470
    %v2472 = vpop.f32.mrf.mxu0
    %v2473 = vadd.f32 %v2454, %v2472
    %2474 = vmatmul.bf16.gmra.mxu0 %v1937
    %v2475 = vpop.f32.mrf.mxu0
    %v2476 = vadd.f32 %v2457, %v2475
    %v2477 = vpop.f32.mrf.mxu0
    %v2478 = vadd.f32 %v2459, %v2477
    %2479 = vdwg.mxu0
    %v2480 = vmax.f32 %v2395, 0.0
    %v2481 = vmax.f32 %v2471, 0.0
    %v2482 = vmax.f32 %v2397, 0.0
    %v2483 = vmax.f32 %v2473, 0.0
    %v2484 = vmax.f32 %v2400, 0.0
    %v2485 = vmax.f32 %v2476, 0.0
    %v2486 = vmax.f32 %v2402, 0.0
    %v2487 = vmax.f32 %v2478, 0.0
    %v2488 = vpack.c.bf16 %v2482, %v2480
    %v2489 = vpack.c.bf16 %v2483, %v2481
    %v2490 = vpack.c.bf16 %v2486, %v2484
    %v2491 = vpack.c.bf16 %v2487, %v2485
    %v2492 = vld [vmem:[#allocation10] sm:$0xff]
    %v2493 = vld [vmem:[#allocation10 + $0x8] sm:$0xff]
    %v2494 = vld [vmem:[#allocation10 + $0x10] sm:$0xff]
    %v2495 = vld [vmem:[#allocation10 + $0x18] sm:$0xff]
    %v2496 = vld [vmem:[#allocation10 + $0x20] sm:$0xff]
    %v2497 = vld [vmem:[#allocation10 + $0x28] sm:$0xff]
    %v2498 = vld [vmem:[#allocation10 + $0x30] sm:$0xff]
    %v2499 = vld [vmem:[#allocation10 + $0x38] sm:$0xff]
    %v2500 = vld [vmem:[#allocation10 + $0x40] sm:$0xff]
    %v2501 = vld [vmem:[#allocation10 + $0x48] sm:$0xff]
    %v2502 = vld [vmem:[#allocation10 + $0x50] sm:$0xff]
    %v2503 = vld [vmem:[#allocation10 + $0x58] sm:$0xff]
    %v2504 = vld [vmem:[#allocation10 + $0x60] sm:$0xff]
    %v2505 = vld [vmem:[#allocation10 + $0x68] sm:$0xff]
    %v2506 = vld [vmem:[#allocation10 + $0x70] sm:$0xff]
    %v2507 = vld [vmem:[#allocation10 + $0x78] sm:$0xff]
    %v2508 = vld [vmem:[#allocation10 + $0x80] sm:$0xff]
    %v2509 = vld [vmem:[#allocation10 + $0x88] sm:$0xff]
    %v2510 = vld [vmem:[#allocation10 + $0x90] sm:$0xff]
    %v2511 = vld [vmem:[#allocation10 + $0x98] sm:$0xff]
    %v2512 = vld [vmem:[#allocation10 + $0xa0] sm:$0xff]
    %v2513 = vld [vmem:[#allocation10 + $0xa8] sm:$0xff]
    %v2514 = vld [vmem:[#allocation10 + $0xb0] sm:$0xff]
    %v2515 = vld [vmem:[#allocation10 + $0xb8] sm:$0xff]
    %v2516 = vld [vmem:[#allocation10 + $0xc0] sm:$0xff]
    %v2517 = vld [vmem:[#allocation10 + $0xc8] sm:$0xff]
    %v2518 = vld [vmem:[#allocation10 + $0xd0] sm:$0xff]
    %v2519 = vld [vmem:[#allocation10 + $0xd8] sm:$0xff]
    %v2520 = vld [vmem:[#allocation10 + $0xe0] sm:$0xff]
    %v2521 = vld [vmem:[#allocation10 + $0xe8] sm:$0xff]
    %v2522 = vld [vmem:[#allocation10 + $0xf0] sm:$0xff]
    %v2523 = vld [vmem:[#allocation10 + $0xf8] sm:$0xff]
    %v2524 = vld [vmem:[%s6] sm:$0x3]
    %v2526 = vperm.slane %v2524, 0
    %v2527 = vperm.slane %v2524, 1
    %v2562 = vunpack.c.l.b16 %v2492
    %v2563 = vunpack.c.h.b16 %v2492
    %v2564 = vunpack.c.l.b16 %v2493
    %v2565 = vunpack.c.h.b16 %v2493
    %v2566 = vunpack.c.l.b16 %v2494
    %v2567 = vunpack.c.h.b16 %v2494
    %v2568 = vunpack.c.l.b16 %v2495
    %v2569 = vunpack.c.h.b16 %v2495
    %v2570 = vunpack.c.l.b16 %v2496
    %v2571 = vunpack.c.h.b16 %v2496
    %v2572 = vunpack.c.l.b16 %v2497
    %v2573 = vunpack.c.h.b16 %v2497
    %v2574 = vunpack.c.l.b16 %v2498
    %v2575 = vunpack.c.h.b16 %v2498
    %v2576 = vunpack.c.l.b16 %v2499
    %v2577 = vunpack.c.h.b16 %v2499
    %v2578 = vunpack.c.l.b16 %v2500
    %v2579 = vunpack.c.h.b16 %v2500
    %v2580 = vunpack.c.l.b16 %v2501
    %v2581 = vunpack.c.h.b16 %v2501
    %v2582 = vunpack.c.l.b16 %v2502
    %v2583 = vunpack.c.h.b16 %v2502
    %v2584 = vunpack.c.l.b16 %v2503
    %v2585 = vunpack.c.h.b16 %v2503
    %v2586 = vunpack.c.l.b16 %v2504
    %v2587 = vunpack.c.h.b16 %v2504
    %v2588 = vunpack.c.l.b16 %v2505
    %v2589 = vunpack.c.h.b16 %v2505
    %v2590 = vunpack.c.l.b16 %v2506
    %v2591 = vunpack.c.h.b16 %v2506
    %v2592 = vunpack.c.l.b16 %v2507
    %v2593 = vunpack.c.h.b16 %v2507
    %v2594 = vunpack.c.l.b16 %v2508
    %v2595 = vunpack.c.h.b16 %v2508
    %v2596 = vunpack.c.l.b16 %v2509
    %v2597 = vunpack.c.h.b16 %v2509
    %v2598 = vunpack.c.l.b16 %v2510
    %v2599 = vunpack.c.h.b16 %v2510
    %v2600 = vunpack.c.l.b16 %v2511
    %v2601 = vunpack.c.h.b16 %v2511
    %v2602 = vunpack.c.l.b16 %v2512
    %v2603 = vunpack.c.h.b16 %v2512
    %v2604 = vunpack.c.l.b16 %v2513
    %v2605 = vunpack.c.h.b16 %v2513
    %v2606 = vunpack.c.l.b16 %v2514
    %v2607 = vunpack.c.h.b16 %v2514
    %v2608 = vunpack.c.l.b16 %v2515
    %v2609 = vunpack.c.h.b16 %v2515
    %v2610 = vunpack.c.l.b16 %v2516
    %v2611 = vunpack.c.h.b16 %v2516
    %v2612 = vunpack.c.l.b16 %v2517
    %v2613 = vunpack.c.h.b16 %v2517
    %v2614 = vunpack.c.l.b16 %v2518
    %v2615 = vunpack.c.h.b16 %v2518
    %v2616 = vunpack.c.l.b16 %v2519
    %v2617 = vunpack.c.h.b16 %v2519
    %v2618 = vunpack.c.l.b16 %v2520
    %v2619 = vunpack.c.h.b16 %v2520
    %v2620 = vunpack.c.l.b16 %v2521
    %v2621 = vunpack.c.h.b16 %v2521
    %v2622 = vunpack.c.l.b16 %v2522
    %v2623 = vunpack.c.h.b16 %v2522
    %v2624 = vunpack.c.l.b16 %v2523
    %v2625 = vunpack.c.h.b16 %v2523
    %v2626 = vpack.c.b16 %v2564, %v2562
    %v2627 = vpack.c.b16 %v2565, %v2563
    %v2628 = vpack.c.b16 %v2568, %v2566
    %v2629 = vpack.c.b16 %v2569, %v2567
    %v2630 = vpack.c.b16 %v2572, %v2570
    %v2631 = vpack.c.b16 %v2573, %v2571
    %v2632 = vpack.c.b16 %v2576, %v2574
    %v2633 = vpack.c.b16 %v2577, %v2575
    %v2634 = vpack.c.b16 %v2580, %v2578
    %v2635 = vpack.c.b16 %v2581, %v2579
    %v2636 = vpack.c.b16 %v2584, %v2582
    %v2637 = vpack.c.b16 %v2585, %v2583
    %v2638 = vpack.c.b16 %v2588, %v2586
    %v2639 = vpack.c.b16 %v2589, %v2587
    %v2640 = vpack.c.b16 %v2592, %v2590
    %v2641 = vpack.c.b16 %v2593, %v2591
    %v2642 = vpack.c.b16 %v2596, %v2594
    %v2643 = vpack.c.b16 %v2597, %v2595
    %v2644 = vpack.c.b16 %v2600, %v2598
    %v2645 = vpack.c.b16 %v2601, %v2599
    %v2646 = vpack.c.b16 %v2604, %v2602
    %v2647 = vpack.c.b16 %v2605, %v2603
    %v2648 = vpack.c.b16 %v2608, %v2606
    %v2649 = vpack.c.b16 %v2609, %v2607
    %v2650 = vpack.c.b16 %v2612, %v2610
    %v2651 = vpack.c.b16 %v2613, %v2611
    %v2652 = vpack.c.b16 %v2616, %v2614
    %v2653 = vpack.c.b16 %v2617, %v2615
    %v2654 = vpack.c.b16 %v2620, %v2618
    %v2655 = vpack.c.b16 %v2621, %v2619
    %v2656 = vpack.c.b16 %v2624, %v2622
    %v2657 = vpack.c.b16 %v2625, %v2623
    %2690 = vmatpush.bf16.msra.mxu0 %v2640
    %2691 = vmatpush.bf16.msra.mxu0 %v2638
    %2692 = vmatpush.bf16.msra.mxu0 %v2636
    %2693 = vmatpush.bf16.msra.mxu0 %v2634
    %2694 = vmatpush.bf16.msra.mxu0 %v2632
    %2695 = vmatpush.bf16.msra.mxu0 %v2630
    %2696 = vmatpush.bf16.msra.mxu0 %v2628
    %2697 = vmatpush.bf16.msra.mxu0 %v2626
    %2698 = vmatmul.bf16.gmra.mxu0 %v2488
    %v2699 = vpop.f32.mrf.mxu0
    %v2700 = vadd.f32 %v2526, %v2699
    %v2701 = vpop.f32.mrf.mxu0
    %v2702 = vadd.f32 %v2526, %v2701
    %2703 = vmatmul.bf16.gmra.mxu0 %v2490
    %v2704 = vpop.f32.mrf.mxu0
    %v2705 = vadd.f32 %v2526, %v2704
    %v2706 = vpop.f32.mrf.mxu0
    %v2707 = vadd.f32 %v2526, %v2706
    %2708 = vdwg.mxu0
    %2709 = vmatpush.bf16.msra.mxu0 %v2656
    %2710 = vmatpush.bf16.msra.mxu0 %v2654
    %2711 = vmatpush.bf16.msra.mxu0 %v2652
    %2712 = vmatpush.bf16.msra.mxu0 %v2650
    %2713 = vmatpush.bf16.msra.mxu0 %v2648
    %2714 = vmatpush.bf16.msra.mxu0 %v2646
    %2715 = vmatpush.bf16.msra.mxu0 %v2644
    %2716 = vmatpush.bf16.msra.mxu0 %v2642
    %2717 = vmatmul.bf16.gmra.mxu0 %v2489
    %v2718 = vpop.f32.mrf.mxu0
    %v2719 = vadd.f32 %v2700, %v2718
    %v2720 = vpop.f32.mrf.mxu0
    %v2721 = vadd.f32 %v2702, %v2720
    %2722 = vmatmul.bf16.gmra.mxu0 %v2491
    %v2723 = vpop.f32.mrf.mxu0
    %v2724 = vadd.f32 %v2705, %v2723
    %v2725 = vpop.f32.mrf.mxu0
    %v2726 = vadd.f32 %v2707, %v2725
    %2727 = vdwg.mxu0
    %2728 = vmatpush.bf16.msra.mxu0 %v2641
    %2729 = vmatpush.bf16.msra.mxu0 %v2639
    %2730 = vmatpush.bf16.msra.mxu0 %v2637
    %2731 = vmatpush.bf16.msra.mxu0 %v2635
    %2732 = vmatpush.bf16.msra.mxu0 %v2633
    %2733 = vmatpush.bf16.msra.mxu0 %v2631
    %2734 = vmatpush.bf16.msra.mxu0 %v2629
    %2735 = vmatpush.bf16.msra.mxu0 %v2627
    %2736 = vmatmul.bf16.gmra.mxu0 %v2488
    %v2737 = vpop.f32.mrf.mxu0
    %v2738 = vadd.f32 %v2527, %v2737
    %v2739 = vpop.f32.mrf.mxu0
    %v2740 = vadd.f32 %v2527, %v2739
    %2741 = vmatmul.bf16.gmra.mxu0 %v2490
    %v2742 = vpop.f32.mrf.mxu0
    %v2743 = vadd.f32 %v2527, %v2742
    %v2744 = vpop.f32.mrf.mxu0
    %v2745 = vadd.f32 %v2527, %v2744
    %2746 = vdwg.mxu0
    %2747 = vmatpush.bf16.msra.mxu0 %v2657
    %2748 = vmatpush.bf16.msra.mxu0 %v2655
    %2749 = vmatpush.bf16.msra.mxu0 %v2653
    %2750 = vmatpush.bf16.msra.mxu0 %v2651
    %2751 = vmatpush.bf16.msra.mxu0 %v2649
    %2752 = vmatpush.bf16.msra.mxu0 %v2647
    %2753 = vmatpush.bf16.msra.mxu0 %v2645
    %2754 = vmatpush.bf16.msra.mxu0 %v2643
    %2755 = vmatmul.bf16.gmra.mxu0 %v2489
    %v2756 = vpop.f32.mrf.mxu0
    %v2757 = vadd.f32 %v2738, %v2756
    %v2758 = vpop.f32.mrf.mxu0
    %v2759 = vadd.f32 %v2740, %v2758
    %2760 = vmatmul.bf16.gmra.mxu0 %v2491
    %v2761 = vpop.f32.mrf.mxu0
    %v2762 = vadd.f32 %v2743, %v2761
    %v2763 = vpop.f32.mrf.mxu0
    %v2764 = vadd.f32 %v2745, %v2763
    %2765 = vdwg.mxu0
    %v2766 = vmax.f32 %v2719, 0.0
    %v2767 = vmax.f32 %v2757, 0.0
    %v2768 = vmax.f32 %v2721, 0.0
    %v2769 = vmax.f32 %v2759, 0.0
    %v2770 = vmax.f32 %v2724, 0.0
    %v2771 = vmax.f32 %v2762, 0.0
    %v2772 = vmax.f32 %v2726, 0.0
    %v2773 = vmax.f32 %v2764, 0.0
    %v2774 = vpack.c.bf16 %v2768, %v2766
    %v2775 = vpack.c.bf16 %v2769, %v2767
    %v2776 = vpack.c.bf16 %v2772, %v2770
    %v2777 = vpack.c.bf16 %v2773, %v2771
    %v2778 = vld [vmem:[#allocation11] sm:$0xf]
    %v2779 = vld [vmem:[#allocation11 + $0x4] sm:$0xf]
    %v2780 = vld [vmem:[#allocation11 + $0x8] sm:$0xf]
    %v2781 = vld [vmem:[#allocation11 + $0xc] sm:$0xf]
    %v2782 = vld [vmem:[#allocation11 + $0x10] sm:$0xf]
    %v2783 = vld [vmem:[#allocation11 + $0x14] sm:$0xf]
    %v2784 = vld [vmem:[#allocation11 + $0x18] sm:$0xf]
    %v2785 = vld [vmem:[#allocation11 + $0x1c] sm:$0xf]
    %v2786 = vld [vmem:[#allocation11 + $0x20] sm:$0xf]
    %v2787 = vld [vmem:[#allocation11 + $0x24] sm:$0xf]
    %v2788 = vld [vmem:[#allocation11 + $0x28] sm:$0xf]
    %v2789 = vld [vmem:[#allocation11 + $0x2c] sm:$0xf]
    %v2790 = vld [vmem:[#allocation11 + $0x30] sm:$0xf]
    %v2791 = vld [vmem:[#allocation11 + $0x34] sm:$0xf]
    %v2792 = vld [vmem:[#allocation11 + $0x38] sm:$0xf]
    %v2793 = vld [vmem:[#allocation11 + $0x3c] sm:$0xf]
    %v2794 = vld [vmem:[#allocation11 + $0x40] sm:$0xf]
    %v2795 = vld [vmem:[#allocation11 + $0x44] sm:$0xf]
    %v2796 = vld [vmem:[#allocation11 + $0x48] sm:$0xf]
    %v2797 = vld [vmem:[#allocation11 + $0x4c] sm:$0xf]
    %v2798 = vld [vmem:[#allocation11 + $0x50] sm:$0xf]
    %v2799 = vld [vmem:[#allocation11 + $0x54] sm:$0xf]
    %v2800 = vld [vmem:[#allocation11 + $0x58] sm:$0xf]
    %v2801 = vld [vmem:[#allocation11 + $0x5c] sm:$0xf]
    %v2802 = vld [vmem:[#allocation11 + $0x60] sm:$0xf]
    %v2803 = vld [vmem:[#allocation11 + $0x64] sm:$0xf]
    %v2804 = vld [vmem:[#allocation11 + $0x68] sm:$0xf]
    %v2805 = vld [vmem:[#allocation11 + $0x6c] sm:$0xf]
    %v2806 = vld [vmem:[#allocation11 + $0x70] sm:$0xf]
    %v2807 = vld [vmem:[#allocation11 + $0x74] sm:$0xf]
    %v2808 = vld [vmem:[#allocation11 + $0x78] sm:$0xf]
    %v2809 = vld [vmem:[#allocation11 + $0x7c] sm:$0xf]
    %v2810 = vld [vmem:[%s8] sm:$0x1]
    %v2812 = vperm.slane %v2810, 0
    %v2846 = vunpack.c.l.b16 %v2778
    %v2847 = vunpack.c.l.b16 %v2779
    %v2848 = vunpack.c.l.b16 %v2780
    %v2849 = vunpack.c.l.b16 %v2781
    %v2850 = vunpack.c.l.b16 %v2782
    %v2851 = vunpack.c.l.b16 %v2783
    %v2852 = vunpack.c.l.b16 %v2784
    %v2853 = vunpack.c.l.b16 %v2785
    %v2854 = vunpack.c.l.b16 %v2786
    %v2855 = vunpack.c.l.b16 %v2787
    %v2856 = vunpack.c.l.b16 %v2788
    %v2857 = vunpack.c.l.b16 %v2789
    %v2858 = vunpack.c.l.b16 %v2790
    %v2859 = vunpack.c.l.b16 %v2791
    %v2860 = vunpack.c.l.b16 %v2792
    %v2861 = vunpack.c.l.b16 %v2793
    %v2862 = vunpack.c.l.b16 %v2794
    %v2863 = vunpack.c.l.b16 %v2795
    %v2864 = vunpack.c.l.b16 %v2796
    %v2865 = vunpack.c.l.b16 %v2797
    %v2866 = vunpack.c.l.b16 %v2798
    %v2867 = vunpack.c.l.b16 %v2799
    %v2868 = vunpack.c.l.b16 %v2800
    %v2869 = vunpack.c.l.b16 %v2801
    %v2870 = vunpack.c.l.b16 %v2802
    %v2871 = vunpack.c.l.b16 %v2803
    %v2872 = vunpack.c.l.b16 %v2804
    %v2873 = vunpack.c.l.b16 %v2805
    %v2874 = vunpack.c.l.b16 %v2806
    %v2875 = vunpack.c.l.b16 %v2807
    %v2876 = vunpack.c.l.b16 %v2808
    %v2877 = vunpack.c.l.b16 %v2809
    %v2878 = vpack.c.b16 %v2847, %v2846
    %v2879 = vpack.c.b16 %v2849, %v2848
    %v2880 = vpack.c.b16 %v2851, %v2850
    %v2881 = vpack.c.b16 %v2853, %v2852
    %v2882 = vpack.c.b16 %v2855, %v2854
    %v2883 = vpack.c.b16 %v2857, %v2856
    %v2884 = vpack.c.b16 %v2859, %v2858
    %v2885 = vpack.c.b16 %v2861, %v2860
    %v2886 = vpack.c.b16 %v2863, %v2862
    %v2887 = vpack.c.b16 %v2865, %v2864
    %v2888 = vpack.c.b16 %v2867, %v2866
    %v2889 = vpack.c.b16 %v2869, %v2868
    %v2890 = vpack.c.b16 %v2871, %v2870
    %v2891 = vpack.c.b16 %v2873, %v2872
    %v2892 = vpack.c.b16 %v2875, %v2874
    %v2893 = vpack.c.b16 %v2877, %v2876
    %2910 = vmatpush.bf16.msra.mxu0 %v2885
    %2911 = vmatpush.bf16.msra.mxu0 %v2884
    %2912 = vmatpush.bf16.msra.mxu0 %v2883
    %2913 = vmatpush.bf16.msra.mxu0 %v2882
    %2914 = vmatpush.bf16.msra.mxu0 %v2881
    %2915 = vmatpush.bf16.msra.mxu0 %v2880
    %2916 = vmatpush.bf16.msra.mxu0 %v2879
    %2917 = vmatpush.bf16.msra.mxu0 %v2878
    %2918 = vmatmul.bf16.gmra.mxu0 %v2774
    %v2919 = vpop.f32.mrf.mxu0
    %v2920 = vadd.f32 %v2812, %v2919
    %v2921 = vpop.f32.mrf.mxu0
    %v2922 = vadd.f32 %v2812, %v2921
    %2923 = vmatmul.bf16.gmra.mxu0 %v2776
    %v2924 = vpop.f32.mrf.mxu0
    %v2925 = vadd.f32 %v2812, %v2924
    %v2926 = vpop.f32.mrf.mxu0
    %v2927 = vadd.f32 %v2812, %v2926
    %2928 = vdwg.mxu0
    %2929 = vmatpush.bf16.msra.mxu0 %v2893
    %2930 = vmatpush.bf16.msra.mxu0 %v2892
    %2931 = vmatpush.bf16.msra.mxu0 %v2891
    %2932 = vmatpush.bf16.msra.mxu0 %v2890
    %2933 = vmatpush.bf16.msra.mxu0 %v2889
    %2934 = vmatpush.bf16.msra.mxu0 %v2888
    %2935 = vmatpush.bf16.msra.mxu0 %v2887
    %2936 = vmatpush.bf16.msra.mxu0 %v2886
    %2937 = vmatmul.bf16.gmra.mxu0 %v2775
    %v2938 = vpop.f32.mrf.mxu0
    %v2939 = vadd.f32 %v2920, %v2938
    %v2940 = vpop.f32.mrf.mxu0
    %v2941 = vadd.f32 %v2922, %v2940
    %2942 = vmatmul.bf16.gmra.mxu0 %v2777
    %v2943 = vpop.f32.mrf.mxu0
    %v2944 = vadd.f32 %v2925, %v2943
    %v2945 = vpop.f32.mrf.mxu0
    %v2946 = vadd.f32 %v2927, %v2945
    %2947 = vdwg.mxu0
    %v2948 = vmax.f32 %v2939, 0.0
    %v2949 = vmax.f32 %v2941, 0.0
    %v2950 = vmax.f32 %v2944, 0.0
    %v2951 = vmax.f32 %v2946, 0.0
    %v2952 = vpack.c.bf16 %v2949, %v2948
    %v2953 = vpack.c.bf16 %v2951, %v2950
    %v2954 = vld [vmem:[#allocation13] sm:$0xf]
    %v2955 = vld [vmem:[#allocation13 + $0x4] sm:$0xf]
    %v2956 = vld [vmem:[#allocation13 + $0x8] sm:$0xf]
    %v2957 = vld [vmem:[#allocation13 + $0xc] sm:$0xf]
    %v2958 = vld [vmem:[#allocation13 + $0x10] sm:$0xf]
    %v2959 = vld [vmem:[#allocation13 + $0x14] sm:$0xf]
    %v2960 = vld [vmem:[#allocation13 + $0x18] sm:$0xf]
    %v2961 = vld [vmem:[#allocation13 + $0x1c] sm:$0xf]
    %v2962 = vld [vmem:[#allocation13 + $0x20] sm:$0xf]
    %v2963 = vld [vmem:[#allocation13 + $0x24] sm:$0xf]
    %v2964 = vld [vmem:[#allocation13 + $0x28] sm:$0xf]
    %v2965 = vld [vmem:[#allocation13 + $0x2c] sm:$0xf]
    %v2966 = vld [vmem:[#allocation13 + $0x30] sm:$0xf]
    %v2967 = vld [vmem:[#allocation13 + $0x34] sm:$0xf]
    %v2968 = vld [vmem:[#allocation13 + $0x38] sm:$0xf]
    %v2969 = vld [vmem:[#allocation13 + $0x3c] sm:$0xf]
    %v2970 = vld [vmem:[%s10] sm:$0x1]
    %v2972 = vperm.slane %v2970, 0
    %v2990 = vunpack.c.l.b16 %v2954
    %v2991 = vunpack.c.l.b16 %v2955
    %v2992 = vunpack.c.l.b16 %v2956
    %v2993 = vunpack.c.l.b16 %v2957
    %v2994 = vunpack.c.l.b16 %v2958
    %v2995 = vunpack.c.l.b16 %v2959
    %v2996 = vunpack.c.l.b16 %v2960
    %v2997 = vunpack.c.l.b16 %v2961
    %v2998 = vunpack.c.l.b16 %v2962
    %v2999 = vunpack.c.l.b16 %v2963
    %v3000 = vunpack.c.l.b16 %v2964
    %v3001 = vunpack.c.l.b16 %v2965
    %v3002 = vunpack.c.l.b16 %v2966
    %v3003 = vunpack.c.l.b16 %v2967
    %v3004 = vunpack.c.l.b16 %v2968
    %v3005 = vunpack.c.l.b16 %v2969
    %v3006 = vpack.c.b16 %v2991, %v2990
    %v3007 = vpack.c.b16 %v2993, %v2992
    %v3008 = vpack.c.b16 %v2995, %v2994
    %v3009 = vpack.c.b16 %v2997, %v2996
    %v3010 = vpack.c.b16 %v2999, %v2998
    %v3011 = vpack.c.b16 %v3001, %v3000
    %v3012 = vpack.c.b16 %v3003, %v3002
    %v3013 = vpack.c.b16 %v3005, %v3004
    %3022 = vmatpush.bf16.msra.mxu0 %v3013
    %3023 = vmatpush.bf16.msra.mxu0 %v3012
    %3024 = vmatpush.bf16.msra.mxu0 %v3011
    %3025 = vmatpush.bf16.msra.mxu0 %v3010
    %3026 = vmatpush.bf16.msra.mxu0 %v3009
    %3027 = vmatpush.bf16.msra.mxu0 %v3008
    %3028 = vmatpush.bf16.msra.mxu0 %v3007
    %3029 = vmatpush.bf16.msra.mxu0 %v3006
    %3030 = vmatmul.bf16.gmra.mxu0 %v2952
    %v3031 = vpop.f32.mrf.mxu0
    %v3032 = vadd.f32 %v2972, %v3031
    %v3033 = vpop.f32.mrf.mxu0
    %v3034 = vadd.f32 %v2972, %v3033
    %3035 = vmatmul.bf16.gmra.mxu0 %v2953
    %v3036 = vpop.f32.mrf.mxu0
    %v3037 = vadd.f32 %v2972, %v3036
    %v3038 = vpop.f32.mrf.mxu0
    %v3039 = vadd.f32 %v2972, %v3038
    %3040 = vdwg.mxu0
    %3041 = vst [vmem:[#allocation14] sm:$0xff] %v3032
    %3042 = vst [vmem:[#allocation14 + $0x8] sm:$0xff] %v3034
    %3043 = vst [vmem:[#allocation14 + $0x10] sm:$0xff] %v3037
    %3044 = vst [vmem:[#allocation14 + $0x18] sm:$0xff] %v3039
    // Predicated region
    $region74: #{tpu_custom_call.1} parent=1 // pred_check
      _
    $region75: #{tpu_custom_call.1} parent=1 // pred_check_branch
      %3046 = sbr.rel (0) target = $region77
    $region76: #{tpu_custom_call.1} parent=1 // pred_region
      %3048 = vsyncadd [#allocation4], 0
      %s3049 = sshll.u32 [#allocation14], 4
      %s3050 = int_to_ptr.vmem [resolvable:$true] %s3049
      %s3051 = sshll.u32 %s11, 4
      %s3052 = int_to_ptr.hbm [resolvable:$true] %s3051
      %3057 = dma.vmem_to_hbm [thread:$0]  %s3050, 512, %s3052, [#allocation4], 128, 128, 8
    $region77: #{tpu_custom_call.1} parent=1 // pred_fallthru
      _
    // Predicated region
    $region78: #{tpu_custom_call.1} parent=1 // pred_check
      _
    $region79: #{tpu_custom_call.1} parent=1 // pred_check_branch
      %3059 = sbr.rel (0) target = $region81
    $region80: #{tpu_custom_call.1} parent=1 // pred_region
      %3061 = dma.done [#allocation4], 512
    $region81: #{tpu_custom_call.1} parent=1 // pred_fallthru
      _
    %3062 = vsyncpa [#allocation3], 1
    %3063 = vsyncpa [#allocation6], 1
    %3064 = vsyncpa [#allocation9], 1
    %3065 = vsyncpa [#allocation12], 1
    %3066 = vsyncpa [#allocation4], 1

// kernel: tpu_custom_call.1
$region0: #{tpu_custom_call.1}
  #allocation0 [shape = 'u32[]', space=smem, size = 0x4, offset = 0x4, fixed_abs, tag = 'smem constant byte address 0x4 - core index']
  #allocation1 [shape = 'u32[72,128]{1,0:T(1,128)}', space=vmem, size = 0x9000, scoped, tag = 'internal scratch']
  %s0 = inlined_call_operand.hbm [shape: f32[32,784], index: 0, kind: input, shape index: {}]
  %s1 = inlined_call_operand.hbm [shape: bf16[784,512], index: 1, kind: input, shape index: {}]
  %s2 = inlined_call_operand.hbm [shape: f32[1,512], index: 2, kind: input, shape index: {}]
  %s3 = inlined_call_operand.hbm [shape: bf16[512,256], index: 3, kind: input, shape index: {}]
  %s4 = inlined_call_operand.vmem [shape: f32[1,256], index: 4, kind: input, shape index: {}]
  %s5 = inlined_call_operand.hbm [shape: bf16[256,256], index: 5, kind: input, shape index: {}]
  %s6 = inlined_call_operand.vmem [shape: f32[1,256], index: 6, kind: input, shape index: {}]
  %s7 = inlined_call_operand.hbm [shape: bf16[256,128], index: 7, kind: input, shape index: {}]
  %s8 = inlined_call_operand.vmem [shape: f32[1,128], index: 8, kind: input, shape index: {}]
  %s9 = inlined_call_operand.hbm [shape: bf16[128,128], index: 9, kind: input, shape index: {}]
  %s10 = inlined_call_operand.vmem [shape: f32[1,128], index: 10, kind: input, shape index: {}]
  %s11 = inlined_call_operand.hbm [shape: f32[32,128], index: 11, kind: output, shape index: {}]
  %s12 = sld [smem:[#allocation0]]
  $region82: #{tpu_custom_call.1} parent=0
    _
  %s14 = ssub.s32 1, %s12
  %s15 = scalar_select 0, %s14, %s12
  $region1: #{tpu_custom_call.1} parent=0
    #allocation2 [shape = 'u8[114688]{0}', space=vmem, size = 0x1c000, scoped, tag = 'input window, operand 0, single buffered']
    #allocation3 [shape = 's32[1]{0}', space=sflag, size = 0x4, scoped, tag = 'scoped memory for tpu_custom_call.1']
    #allocation4 [shape = 's32[1]{0}', space=sflag, size = 0x4, scoped, tag = 'scoped memory for tpu_custom_call.1']
    #allocation5 [shape = 'u8[802816]{0}', space=vmem, size = 0xc4000, scoped, tag = 'input window, operand 1, single buffered']
    #allocation6 [shape = 's32[1]{0}', space=sflag, size = 0x4, scoped, tag = 'scoped memory for tpu_custom_call.1']
    #allocation7 [shape = 'u8[2048]{0}', space=vmem, size = 0x800, scoped, tag = 'input window, operand 2, single buffered']
    #allocation8 [shape = 'u8[262144]{0}', space=vmem, size = 0x40000, scoped, tag = 'input window, operand 3, single buffered']
    #allocation9 [shape = 's32[1]{0}', space=sflag, size = 0x4, scoped, tag = 'scoped memory for tpu_custom_call.1']
    #allocation10 [shape = 'u8[131072]{0}', space=vmem, size = 0x20000, scoped, tag = 'input window, operand 5, single buffered']
    #allocation11 [shape = 'u8[65536]{0}', space=vmem, size = 0x10000, scoped, tag = 'input window, operand 7, single buffered']
    #allocation12 [shape = 's32[1]{0}', space=sflag, size = 0x4, scoped, tag = 'scoped memory for tpu_custom_call.1']
    #allocation13 [shape = 'u8[32768]{0}', space=vmem, size = 0x8000, scoped, tag = 'input window, operand 9, single buffered']
    #allocation14 [shape = 'u8[16384]{0}', space=vmem, size = 0x4000, scoped, tag = 'output window, operand 0, single buffered']
    %16 = vsyncpa [#allocation3], 0
    %17 = vsyncpa [#allocation6], 0
    %18 = vsyncpa [#allocation9], 0
    %19 = vsyncpa [#allocation12], 0
    %20 = vsyncpa [#allocation4], 0
    // Predicated region
    $region2: #{tpu_custom_call.1} parent=1 // pred_check
      _
    $region3: #{tpu_custom_call.1} parent=1 // pred_check_branch
      %22 = sbr.rel (0) target = $region5
    $region4: #{tpu_custom_call.1} parent=1 // pred_region
      %24 = vsyncadd [#allocation3], 0
      %s25 = sshll.u32 %s0, 4
      %s26 = int_to_ptr.hbm [resolvable:$true] %s25
      %s27 = sshll.u32 [#allocation2], 4
      %s28 = int_to_ptr.vmem [resolvable:$true] %s27
      %33 = dma.hbm_to_vmem [thread:$0]  %s26, 3584, %s28, [#allocation3], 896, 896, 56
    $region5: #{tpu_custom_call.1} parent=1 // pred_fallthru
      _
    // Predicated region
    $region6: #{tpu_custom_call.1} parent=1 // pred_check
      _
    $region7: #{tpu_custom_call.1} parent=1 // pred_check_branch
      %35 = sbr.rel (0) target = $region9
    $region8: #{tpu_custom_call.1} parent=1 // pred_region
      %37 = vsyncadd [#allocation6], 0
      %s38 = sshll.u32 %s1, 4
      %s39 = int_to_ptr.hbm [resolvable:$true] %s38
      %s40 = sshll.u32 [#allocation5], 4
      %s41 = int_to_ptr.vmem [resolvable:$true] %s40
      %46 = dma.hbm_to_vmem [thread:$0]  %s39, 25088, %s41, [#allocation6], 256, 256, 16
    $region9: #{tpu_custom_call.1} parent=1 // pred_fallthru
      _
    // Predicated region
    $region10: #{tpu_custom_call.1} parent=1 // pred_check
      _
    $region11: #{tpu_custom_call.1} parent=1 // pred_check_branch
      %48 = sbr.rel (0) target = $region13
    $region12: #{tpu_custom_call.1} parent=1 // pred_region
      %50 = vsyncadd [#allocation6], 0
      %s52 = sshll.u32 %s2, 4
      %s53 = int_to_ptr.hbm [resolvable:$true] %s52
      %s54 = sshll.u32 [#allocation7], 4
      %s55 = int_to_ptr.vmem [resolvable:$true] %s54
      %57 = dma.hbm_to_vmem [thread:$0]  %s53, 64, %s55, [#allocation6]
    $region13: #{tpu_custom_call.1} parent=1 // pred_fallthru
      _
    // Predicated region
    $region14: #{tpu_custom_call.1} parent=1 // pred_check
      _
    $region15: #{tpu_custom_call.1} parent=1 // pred_check_branch
      %59 = sbr.rel (0) target = $region17
    $region16: #{tpu_custom_call.1} parent=1 // pred_region
      %61 = vsyncadd [#allocation9], 0
      %s62 = sshll.u32 %s3, 4
      %s63 = int_to_ptr.hbm [resolvable:$true] %s62
      %s64 = sshll.u32 [#allocation8], 4
      %s65 = int_to_ptr.vmem [resolvable:$true] %s64
      %70 = dma.hbm_to_vmem [thread:$0]  %s63, 8192, %s65, [#allocation9], 128, 128, 8
    $region17: #{tpu_custom_call.1} parent=1 // pred_fallthru
      _
    // Predicated region
    $region18: #{tpu_custom_call.1} parent=1 // pred_check
      _
    $region19: #{tpu_custom_call.1} parent=1 // pred_check_branch
      %72 = sbr.rel (0) target = $region21
    $region20: #{tpu_custom_call.1} parent=1 // pred_region
      _
    $region21: #{tpu_custom_call.1} parent=1 // pred_fallthru
      _
    // Predicated region
    $region22: #{tpu_custom_call.1} parent=1 // pred_check
      _
    $region23: #{tpu_custom_call.1} parent=1 // pred_check_branch
      %74 = sbr.rel (0) target = $region25
    $region24: #{tpu_custom_call.1} parent=1 // pred_region
      %76 = vsyncadd [#allocation9], 0
      %s77 = sshll.u32 %s5, 4
      %s78 = int_to_ptr.hbm [resolvable:$true] %s77
      %s79 = sshll.u32 [#allocation10], 4
      %s80 = int_to_ptr.vmem [resolvable:$true] %s79
      %85 = dma.hbm_to_vmem [thread:$0]  %s78, 4096, %s80, [#allocation9], 128, 128, 8
    $region25: #{tpu_custom_call.1} parent=1 // pred_fallthru
      _
    // Predicated region
    $region26: #{tpu_custom_call.1} parent=1 // pred_check
      _
    $region27: #{tpu_custom_call.1} parent=1 // pred_check_branch
      %87 = sbr.rel (0) target = $region29
    $region28: #{tpu_custom_call.1} parent=1 // pred_region
      _
    $region29: #{tpu_custom_call.1} parent=1 // pred_fallthru
      _
    // Predicated region
    $region30: #{tpu_custom_call.1} parent=1 // pred_check
      _
    $region31: #{tpu_custom_call.1} parent=1 // pred_check_branch
      %89 = sbr.rel (0) target = $region33
    $region32: #{tpu_custom_call.1} parent=1 // pred_region
      %91 = vsyncadd [#allocation12], 0
      %s92 = sshll.u32 %s7, 4
      %s93 = int_to_ptr.hbm [resolvable:$true] %s92
      %s94 = sshll.u32 [#allocation11], 4
      %s95 = int_to_ptr.vmem [resolvable:$true] %s94
      %100 = dma.hbm_to_vmem [thread:$0]  %s93, 2048, %s95, [#allocation12], 64, 64, 4
    $region33: #{tpu_custom_call.1} parent=1 // pred_fallthru
      _
    // Predicated region
    $region34: #{tpu_custom_call.1} parent=1 // pred_check
      _
    $region35: #{tpu_custom_call.1} parent=1 // pred_check_branch
      %102 = sbr.rel (0) target = $region37
    $region36: #{tpu_custom_call.1} parent=1 // pred_region
      _
    $region37: #{tpu_custom_call.1} parent=1 // pred_fallthru
      _
    // Predicated region
    $region38: #{tpu_custom_call.1} parent=1 // pred_check
      _
    $region39: #{tpu_custom_call.1} parent=1 // pred_check_branch
      %104 = sbr.rel (0) target = $region41
    $region40: #{tpu_custom_call.1} parent=1 // pred_region
      %106 = vsyncadd [#allocation12], 0
      %s107 = sshll.u32 %s9, 4
      %s108 = int_to_ptr.hbm [resolvable:$true] %s107
      %s109 = sshll.u32 [#allocation13], 4
      %s110 = int_to_ptr.vmem [resolvable:$true] %s109
      %115 = dma.hbm_to_vmem [thread:$0]  %s108, 1024, %s110, [#allocation12], 64, 64, 4
    $region41: #{tpu_custom_call.1} parent=1 // pred_fallthru
      _
    // Predicated region
    $region42: #{tpu_custom_call.1} parent=1 // pred_check
      _
    $region43: #{tpu_custom_call.1} parent=1 // pred_check_branch
      %117 = sbr.rel (0) target = $region45
    $region44: #{tpu_custom_call.1} parent=1 // pred_region
      _
    $region45: #{tpu_custom_call.1} parent=1 // pred_fallthru
      _
    // Predicated region
    $region46: #{tpu_custom_call.1} parent=1 // pred_check
      _
    $region47: #{tpu_custom_call.1} parent=1 // pred_check_branch
      %119 = sbr.rel (0) target = $region49
    $region48: #{tpu_custom_call.1} parent=1 // pred_region
      %121 = dma.done [#allocation3], 3584
    $region49: #{tpu_custom_call.1} parent=1 // pred_fallthru
      _
    // Predicated region
    $region50: #{tpu_custom_call.1} parent=1 // pred_check
      _
    $region51: #{tpu_custom_call.1} parent=1 // pred_check_branch
      %123 = sbr.rel (0) target = $region53
    $region52: #{tpu_custom_call.1} parent=1 // pred_region
      %125 = dma.done [#allocation6], 25088
    $region53: #{tpu_custom_call.1} parent=1 // pred_fallthru
      _
    // Predicated region
    $region54: #{tpu_custom_call.1} parent=1 // pred_check
      _
    $region55: #{tpu_custom_call.1} parent=1 // pred_check_branch
      %127 = sbr.rel (0) target = $region57
    $region56: #{tpu_custom_call.1} parent=1 // pred_region
      %129 = dma.done [#allocation6], 64
    $region57: #{tpu_custom_call.1} parent=1 // pred_fallthru
      _
    // Predicated region
    $region58: #{tpu_custom_call.1} parent=1 // pred_check
      _
    $region59: #{tpu_custom_call.1} parent=1 // pred_check_branch
      %131 = sbr.rel (0) target = $region61
    $region60: #{tpu_custom_call.1} parent=1 // pred_region
      %133 = dma.done [#allocation9], 8192
    $region61: #{tpu_custom_call.1} parent=1 // pred_fallthru
      _
    // Predicated region
    $region62: #{tpu_custom_call.1} parent=1 // pred_check
      _
    $region63: #{tpu_custom_call.1} parent=1 // pred_check_branch
      %135 = sbr.rel (0) target = $region65
    $region64: #{tpu_custom_call.1} parent=1 // pred_region
      %137 = dma.done [#allocation9], 4096
    $region65: #{tpu_custom_call.1} parent=1 // pred_fallthru
      _
    // Predicated region
    $region66: #{tpu_custom_call.1} parent=1 // pred_check
      _
    $region67: #{tpu_custom_call.1} parent=1 // pred_check_branch
      %139 = sbr.rel (0) target = $region69
    $region68: #{tpu_custom_call.1} parent=1 // pred_region
      %141 = dma.done [#allocation12], 2048
    $region69: #{tpu_custom_call.1} parent=1 // pred_fallthru
      _
    // Predicated region
    $region70: #{tpu_custom_call.1} parent=1 // pred_check
      _
    $region71: #{tpu_custom_call.1} parent=1 // pred_check_branch
      %143 = sbr.rel (0) target = $region73
    $region72: #{tpu_custom_call.1} parent=1 // pred_region
      %145 = dma.done [#allocation12], 1024
    $region73: #{tpu_custom_call.1} parent=1 // pred_fallthru
      _
    %v147 = vld [vmem:[#allocation2] sm:$0xff]
    %v148 = vld [vmem:[#allocation2 + $0x8] sm:$0xff]
    %v149 = vld [vmem:[#allocation2 + $0x10] sm:$0xff]
    %v150 = vld [vmem:[#allocation2 + $0x18] sm:$0xff]
    %v151 = vld [vmem:[#allocation2 + $0x20] sm:$0xff]
    %v152 = vld [vmem:[#allocation2 + $0x28] sm:$0xff]
    %v153 = vld [vmem:[#allocation2 + $0x30] sm:$0xff]
    %v154 = vld [vmem:[#allocation2 + $0x38] sm:$0xff]
    %v155 = vld [vmem:[#allocation2 + $0x40] sm:$0xff]
    %v156 = vld [vmem:[#allocation2 + $0x48] sm:$0xff]
    %v157 = vld [vmem:[#allocation2 + $0x50] sm:$0xff]
    %v158 = vld [vmem:[#allocation2 + $0x58] sm:$0xff]
    %v159 = vld [vmem:[#allocation2 + $0x60] sm:$0xff]
    %v160 = vld [vmem:[#allocation2 + $0x68] sm:$0xff]
    %v161 = vld [vmem:[#allocation2 + $0x70] sm:$0xff]
    %v162 = vld [vmem:[#allocation2 + $0x78] sm:$0xff]
    %v163 = vld [vmem:[#allocation2 + $0x80] sm:$0xff]
    %v164 = vld [vmem:[#allocation2 + $0x88] sm:$0xff]
    %v165 = vld [vmem:[#allocation2 + $0x90] sm:$0xff]
    %v166 = vld [vmem:[#allocation2 + $0x98] sm:$0xff]
    %v167 = vld [vmem:[#allocation2 + $0xa0] sm:$0xff]
    %v168 = vld [vmem:[#allocation2 + $0xa8] sm:$0xff]
    %v169 = vld [vmem:[#allocation2 + $0xb0] sm:$0xff]
    %v170 = vld [vmem:[#allocation2 + $0xb8] sm:$0xff]
    %v171 = vld [vmem:[#allocation2 + $0xc0] sm:$0xff]
    %v172 = vld [vmem:[#allocation2 + $0xc8] sm:$0xff]
    %v173 = vld [vmem:[#allocation2 + $0xd0] sm:$0xff]
    %v174 = vld [vmem:[#allocation2 + $0xd8] sm:$0xff]
    %v175 = vpack.c.bf16 %v154, %v147
    %v176 = vpack.c.bf16 %v155, %v148
    %v177 = vpack.c.bf16 %v156, %v149
    %v178 = vpack.c.bf16 %v157, %v150
    %v179 = vpack.c.bf16 %v158, %v151
    %v180 = vpack.c.bf16 %v159, %v152
    %v181 = vpack.c.bf16 %v160, %v153
    %v182 = vpack.c.bf16 %v168, %v161
    %v183 = vpack.c.bf16 %v169, %v162
    %v184 = vpack.c.bf16 %v170, %v163
    %v185 = vpack.c.bf16 %v171, %v164
    %v186 = vpack.c.bf16 %v172, %v165
    %v187 = vpack.c.bf16 %v173, %v166
    %v188 = vpack.c.bf16 %v174, %v167
    %v189 = vld [vmem:[#allocation5] sm:$0xff]
    %v190 = vld [vmem:[#allocation5 + $0x8] sm:$0xff]
    %v191 = vld [vmem:[#allocation5 + $0x10] sm:$0xff]
    %v192 = vld [vmem:[#allocation5 + $0x18] sm:$0xff]
    %v193 = vld [vmem:[#allocation5 + $0x20] sm:$0xff]
    %v194 = vld [vmem:[#allocation5 + $0x28] sm:$0xff]
    %v195 = vld [vmem:[#allocation5 + $0x30] sm:$0xff]
    %v196 = vld [vmem:[#allocation5 + $0x38] sm:$0xff]
    %v197 = vld [vmem:[#allocation5 + $0x40] sm:$0xff]
    %v198 = vld [vmem:[#allocation5 + $0x48] sm:$0xff]
    %v199 = vld [vmem:[#allocation5 + $0x50] sm:$0xff]
    %v200 = vld [vmem:[#allocation5 + $0x58] sm:$0xff]
    %v201 = vld [vmem:[#allocation5 + $0x60] sm:$0xff]
    %v202 = vld [vmem:[#allocation5 + $0x68] sm:$0xff]
    %v203 = vld [vmem:[#allocation5 + $0x70] sm:$0xff]
    %v204 = vld [vmem:[#allocation5 + $0x78] sm:$0xff]
    %v205 = vld [vmem:[#allocation5 + $0x80] sm:$0xff]
    %v206 = vld [vmem:[#allocation5 + $0x88] sm:$0xff]
    %v207 = vld [vmem:[#allocation5 + $0x90] sm:$0xff]
    %v208 = vld [vmem:[#allocation5 + $0x98] sm:$0xff]
    %v209 = vld [vmem:[#allocation5 + $0xa0] sm:$0xff]
    %v210 = vld [vmem:[#allocation5 + $0xa8] sm:$0xff]
    %v211 = vld [vmem:[#allocation5 + $0xb0] sm:$0xff]
    %v212 = vld [vmem:[#allocation5 + $0xb8] sm:$0xff]
    %v213 = vld [vmem:[#allocation5 + $0xc0] sm:$0xff]
    %v214 = vld [vmem:[#allocation5 + $0xc8] sm:$0xff]
    %v215 = vld [vmem:[#allocation5 + $0xd0] sm:$0xff]
    %v216 = vld [vmem:[#allocation5 + $0xd8] sm:$0xff]
    %v217 = vld [vmem:[#allocation5 + $0xe0] sm:$0xff]
    %v218 = vld [vmem:[#allocation5 + $0xe8] sm:$0xff]
    %v219 = vld [vmem:[#allocation5 + $0xf0] sm:$0xff]
    %v220 = vld [vmem:[#allocation5 + $0xf8] sm:$0xff]
    %v221 = vld [vmem:[#allocation5 + $0x100] sm:$0xff]
    %v222 = vld [vmem:[#allocation5 + $0x108] sm:$0xff]
    %v223 = vld [vmem:[#allocation5 + $0x110] sm:$0xff]
    %v224 = vld [vmem:[#allocation5 + $0x118] sm:$0xff]
    %v225 = vld [vmem:[#allocation5 + $0x120] sm:$0xff]
    %v226 = vld [vmem:[#allocation5 + $0x128] sm:$0xff]
    %v227 = vld [vmem:[#allocation5 + $0x130] sm:$0xff]
    %v228 = vld [vmem:[#allocation5 + $0x138] sm:$0xff]
    %v229 = vld [vmem:[#allocation5 + $0x140] sm:$0xff]
    %v230 = vld [vmem:[#allocation5 + $0x148] sm:$0xff]
    %v231 = vld [vmem:[#allocation5 + $0x150] sm:$0xff]
    %v232 = vld [vmem:[#allocation5 + $0x158] sm:$0xff]
    %v233 = vld [vmem:[#allocation5 + $0x160] sm:$0xff]
    %v234 = vld [vmem:[#allocation5 + $0x168] sm:$0xff]
    %v235 = vld [vmem:[#allocation5 + $0x170] sm:$0xff]
    %v236 = vld [vmem:[#allocation5 + $0x178] sm:$0xff]
    %v237 = vld [vmem:[#allocation5 + $0x180] sm:$0xff]
    %v238 = vld [vmem:[#allocation5 + $0x188] sm:$0xff]
    %v239 = vld [vmem:[#allocation5 + $0x190] sm:$0xff]
    %v240 = vld [vmem:[#allocation5 + $0x198] sm:$0xff]
    %v241 = vld [vmem:[#allocation5 + $0x1a0] sm:$0xff]
    %v242 = vld [vmem:[#allocation5 + $0x1a8] sm:$0xff]
    %v243 = vld [vmem:[#allocation5 + $0x1b0] sm:$0xff]
    %v244 = vld [vmem:[#allocation5 + $0x1b8] sm:$0xff]
    %v245 = vld [vmem:[#allocation5 + $0x1c0] sm:$0xff]
    %v246 = vld [vmem:[#allocation5 + $0x1c8] sm:$0xff]
    %v247 = vld [vmem:[#allocation5 + $0x1d0] sm:$0xff]
    %v248 = vld [vmem:[#allocation5 + $0x1d8] sm:$0xff]
    %v249 = vld [vmem:[#allocation5 + $0x1e0] sm:$0xff]
    %v250 = vld [vmem:[#allocation5 + $0x1e8] sm:$0xff]
    %v251 = vld [vmem:[#allocation5 + $0x1f0] sm:$0xff]
    %v252 = vld [vmem:[#allocation5 + $0x1f8] sm:$0xff]
    %v253 = vld [vmem:[#allocation5 + $0x200] sm:$0xff]
    %v254 = vld [vmem:[#allocation5 + $0x208] sm:$0xff]
    %v255 = vld [vmem:[#allocation5 + $0x210] sm:$0xff]
    %v256 = vld [vmem:[#allocation5 + $0x218] sm:$0xff]
    %v257 = vld [vmem:[#allocation5 + $0x220] sm:$0xff]
    %v258 = vld [vmem:[#allocation5 + $0x228] sm:$0xff]
    %v259 = vld [vmem:[#allocation5 + $0x230] sm:$0xff]
    %v260 = vld [vmem:[#allocation5 + $0x238] sm:$0xff]
    %v261 = vld [vmem:[#allocation5 + $0x240] sm:$0xff]
    %v262 = vld [vmem:[#allocation5 + $0x248] sm:$0xff]
    %v263 = vld [vmem:[#allocation5 + $0x250] sm:$0xff]
    %v264 = vld [vmem:[#allocation5 + $0x258] sm:$0xff]
    %v265 = vld [vmem:[#allocation5 + $0x260] sm:$0xff]
    %v266 = vld [vmem:[#allocation5 + $0x268] sm:$0xff]
    %v267 = vld [vmem:[#allocation5 + $0x270] sm:$0xff]
    %v268 = vld [vmem:[#allocation5 + $0x278] sm:$0xff]
    %v269 = vld [vmem:[#allocation5 + $0x280] sm:$0xff]
    %v270 = vld [vmem:[#allocation5 + $0x288] sm:$0xff]
    %v271 = vld [vmem:[#allocation5 + $0x290] sm:$0xff]
    %v272 = vld [vmem:[#allocation5 + $0x298] sm:$0xff]
    %v273 = vld [vmem:[#allocation5 + $0x2a0] sm:$0xff]
    %v274 = vld [vmem:[#allocation5 + $0x2a8] sm:$0xff]
    %v275 = vld [vmem:[#allocation5 + $0x2b0] sm:$0xff]
    %v276 = vld [vmem:[#allocation5 + $0x2b8] sm:$0xff]
    %v277 = vld [vmem:[#allocation5 + $0x2c0] sm:$0xff]
    %v278 = vld [vmem:[#allocation5 + $0x2c8] sm:$0xff]
    %v279 = vld [vmem:[#allocation5 + $0x2d0] sm:$0xff]
    %v280 = vld [vmem:[#allocation5 + $0x2d8] sm:$0xff]
    %v281 = vld [vmem:[#allocation5 + $0x2e0] sm:$0xff]
    %v282 = vld [vmem:[#allocation5 + $0x2e8] sm:$0xff]
    %v283 = vld [vmem:[#allocation5 + $0x2f0] sm:$0xff]
    %v284 = vld [vmem:[#allocation5 + $0x2f8] sm:$0xff]
    %v285 = vld [vmem:[#allocation5 + $0x300] sm:$0xff]
    %v286 = vld [vmem:[#allocation5 + $0x308] sm:$0xff]
    %v287 = vld [vmem:[#allocation5 + $0x310] sm:$0xff]
    %v288 = vld [vmem:[#allocation5 + $0x318] sm:$0xff]
    %v289 = vld [vmem:[#allocation5 + $0x320] sm:$0xff]
    %v290 = vld [vmem:[#allocation5 + $0x328] sm:$0xff]
    %v291 = vld [vmem:[#allocation5 + $0x330] sm:$0xff]
    %v292 = vld [vmem:[#allocation5 + $0x338] sm:$0xff]
    %v293 = vld [vmem:[#allocation5 + $0x340] sm:$0xff]
    %v294 = vld [vmem:[#allocation5 + $0x348] sm:$0xff]
    %v295 = vld [vmem:[#allocation5 + $0x350] sm:$0xff]
    %v296 = vld [vmem:[#allocation5 + $0x358] sm:$0xff]
    %v297 = vld [vmem:[#allocation5 + $0x360] sm:$0xff]
    %v298 = vld [vmem:[#allocation5 + $0x368] sm:$0xff]
    %v299 = vld [vmem:[#allocation5 + $0x370] sm:$0xff]
    %v300 = vld [vmem:[#allocation5 + $0x378] sm:$0xff]
    %v301 = vld [vmem:[#allocation5 + $0x380] sm:$0xff]
    %v302 = vld [vmem:[#allocation5 + $0x388] sm:$0xff]
    %v303 = vld [vmem:[#allocation5 + $0x390] sm:$0xff]
    %v304 = vld [vmem:[#allocation5 + $0x398] sm:$0xff]
    %v305 = vld [vmem:[#allocation5 + $0x3a0] sm:$0xff]
    %v306 = vld [vmem:[#allocation5 + $0x3a8] sm:$0xff]
    %v307 = vld [vmem:[#allocation5 + $0x3b0] sm:$0xff]
    %v308 = vld [vmem:[#allocation5 + $0x3b8] sm:$0xff]
    %v309 = vld [vmem:[#allocation5 + $0x3c0] sm:$0xff]
    %v310 = vld [vmem:[#allocation5 + $0x3c8] sm:$0xff]
    %v311 = vld [vmem:[#allocation5 + $0x3d0] sm:$0xff]
    %v312 = vld [vmem:[#allocation5 + $0x3d8] sm:$0xff]
    %v313 = vld [vmem:[#allocation5 + $0x3e0] sm:$0xff]
    %v314 = vld [vmem:[#allocation5 + $0x3e8] sm:$0xff]
    %v315 = vld [vmem:[#allocation5 + $0x3f0] sm:$0xff]
    %v316 = vld [vmem:[#allocation5 + $0x3f8] sm:$0xff]
    %v317 = vld [vmem:[#allocation5 + $0x400] sm:$0xff]
    %v318 = vld [vmem:[#allocation5 + $0x408] sm:$0xff]
    %v319 = vld [vmem:[#allocation5 + $0x410] sm:$0xff]
    %v320 = vld [vmem:[#allocation5 + $0x418] sm:$0xff]
    %v321 = vld [vmem:[#allocation5 + $0x420] sm:$0xff]
    %v322 = vld [vmem:[#allocation5 + $0x428] sm:$0xff]
    %v323 = vld [vmem:[#allocation5 + $0x430] sm:$0xff]
    %v324 = vld [vmem:[#allocation5 + $0x438] sm:$0xff]
    %v325 = vld [vmem:[#allocation5 + $0x440] sm:$0xff]
    %v326 = vld [vmem:[#allocation5 + $0x448] sm:$0xff]
    %v327 = vld [vmem:[#allocation5 + $0x450] sm:$0xff]
    %v328 = vld [vmem:[#allocation5 + $0x458] sm:$0xff]
    %v329 = vld [vmem:[#allocation5 + $0x460] sm:$0xff]
    %v330 = vld [vmem:[#allocation5 + $0x468] sm:$0xff]
    %v331 = vld [vmem:[#allocation5 + $0x470] sm:$0xff]
    %v332 = vld [vmem:[#allocation5 + $0x478] sm:$0xff]
    %v333 = vld [vmem:[#allocation5 + $0x480] sm:$0xff]
    %v334 = vld [vmem:[#allocation5 + $0x488] sm:$0xff]
    %v335 = vld [vmem:[#allocation5 + $0x490] sm:$0xff]
    %v336 = vld [vmem:[#allocation5 + $0x498] sm:$0xff]
    %v337 = vld [vmem:[#allocation5 + $0x4a0] sm:$0xff]
    %v338 = vld [vmem:[#allocation5 + $0x4a8] sm:$0xff]
    %v339 = vld [vmem:[#allocation5 + $0x4b0] sm:$0xff]
    %v340 = vld [vmem:[#allocation5 + $0x4b8] sm:$0xff]
    %v341 = vld [vmem:[#allocation5 + $0x4c0] sm:$0xff]
    %v342 = vld [vmem:[#allocation5 + $0x4c8] sm:$0xff]
    %v343 = vld [vmem:[#allocation5 + $0x4d0] sm:$0xff]
    %v344 = vld [vmem:[#allocation5 + $0x4d8] sm:$0xff]
    %v345 = vld [vmem:[#allocation5 + $0x4e0] sm:$0xff]
    %v346 = vld [vmem:[#allocation5 + $0x4e8] sm:$0xff]
    %v347 = vld [vmem:[#allocation5 + $0x4f0] sm:$0xff]
    %v348 = vld [vmem:[#allocation5 + $0x4f8] sm:$0xff]
    %v349 = vld [vmem:[#allocation5 + $0x500] sm:$0xff]
    %v350 = vld [vmem:[#allocation5 + $0x508] sm:$0xff]
    %v351 = vld [vmem:[#allocation5 + $0x510] sm:$0xff]
    %v352 = vld [vmem:[#allocation5 + $0x518] sm:$0xff]
    %v353 = vld [vmem:[#allocation5 + $0x520] sm:$0xff]
    %v354 = vld [vmem:[#allocation5 + $0x528] sm:$0xff]
    %v355 = vld [vmem:[#allocation5 + $0x530] sm:$0xff]
    %v356 = vld [vmem:[#allocation5 + $0x538] sm:$0xff]
    %v357 = vld [vmem:[#allocation5 + $0x540] sm:$0xff]
    %v358 = vld [vmem:[#allocation5 + $0x548] sm:$0xff]
    %v359 = vld [vmem:[#allocation5 + $0x550] sm:$0xff]
    %v360 = vld [vmem:[#allocation5 + $0x558] sm:$0xff]
    %v361 = vld [vmem:[#allocation5 + $0x560] sm:$0xff]
    %v362 = vld [vmem:[#allocation5 + $0x568] sm:$0xff]
    %v363 = vld [vmem:[#allocation5 + $0x570] sm:$0xff]
    %v364 = vld [vmem:[#allocation5 + $0x578] sm:$0xff]
    %v365 = vld [vmem:[#allocation5 + $0x580] sm:$0xff]
    %v366 = vld [vmem:[#allocation5 + $0x588] sm:$0xff]
    %v367 = vld [vmem:[#allocation5 + $0x590] sm:$0xff]
    %v368 = vld [vmem:[#allocation5 + $0x598] sm:$0xff]
    %v369 = vld [vmem:[#allocation5 + $0x5a0] sm:$0xff]
    %v370 = vld [vmem:[#allocation5 + $0x5a8] sm:$0xff]
    %v371 = vld [vmem:[#allocation5 + $0x5b0] sm:$0xff]
    %v372 = vld [vmem:[#allocation5 + $0x5b8] sm:$0xff]
    %v373 = vld [vmem:[#allocation5 + $0x5c0] sm:$0xff]
    %v374 = vld [vmem:[#allocation5 + $0x5c8] sm:$0xff]
    %v375 = vld [vmem:[#allocation5 + $0x5d0] sm:$0xff]
    %v376 = vld [vmem:[#allocation5 + $0x5d8] sm:$0xff]
    %v377 = vld [vmem:[#allocation5 + $0x5e0] sm:$0xff]
    %v378 = vld [vmem:[#allocation5 + $0x5e8] sm:$0xff]
    %v379 = vld [vmem:[#allocation5 + $0x5f0] sm:$0xff]
    %v380 = vld [vmem:[#allocation5 + $0x5f8] sm:$0xff]
    %v381 = vld [vmem:[#allocation5 + $0x600] sm:$0xff]
    %v382 = vld [vmem:[#allocation5 + $0x608] sm:$0xff]
    %v383 = vld [vmem:[#allocation5 + $0x610] sm:$0xff]
    %v384 = vld [vmem:[#allocation5 + $0x618] sm:$0xff]
    %v385 = vld [vmem:[#allocation7] sm:$0xf]
    %v387 = vperm.slane %v385, 0
    %v388 = vperm.slane %v385, 1
    %v389 = vperm.slane %v385, 2
    %v390 = vperm.slane %v385, 3
    %v591 = vunpack.c.l.b16 %v189
    %v592 = vunpack.c.h.b16 %v189
    %v593 = vunpack.c.l.b16 %v190
    %v594 = vunpack.c.h.b16 %v190
    %v595 = vunpack.c.l.b16 %v191
    %v596 = vunpack.c.h.b16 %v191
    %v597 = vunpack.c.l.b16 %v192
    %v598 = vunpack.c.h.b16 %v192
    %v599 = vunpack.c.l.b16 %v193
    %v600 = vunpack.c.h.b16 %v193
    %v601 = vunpack.c.l.b16 %v194
    %v602 = vunpack.c.h.b16 %v194
    %v603 = vunpack.c.l.b16 %v195
    %v604 = vunpack.c.h.b16 %v195
    %v605 = vunpack.c.l.b16 %v196
    %v606 = vunpack.c.h.b16 %v196
    %v607 = vunpack.c.l.b16 %v197
    %v608 = vunpack.c.h.b16 %v197
    %v609 = vunpack.c.l.b16 %v198
    %v610 = vunpack.c.h.b16 %v198
    %v611 = vunpack.c.l.b16 %v199
    %v612 = vunpack.c.h.b16 %v199
    %v613 = vunpack.c.l.b16 %v200
    %v614 = vunpack.c.h.b16 %v200
    %v615 = vunpack.c.l.b16 %v201
    %v616 = vunpack.c.h.b16 %v201
    %v617 = vunpack.c.l.b16 %v202
    %v618 = vunpack.c.h.b16 %v202
    %v619 = vunpack.c.l.b16 %v203
    %v620 = vunpack.c.h.b16 %v203
    %v621 = vunpack.c.l.b16 %v204
    %v622 = vunpack.c.h.b16 %v204
    %v623 = vunpack.c.l.b16 %v205
    %v624 = vunpack.c.h.b16 %v205
    %v625 = vunpack.c.l.b16 %v206
    %v626 = vunpack.c.h.b16 %v206
    %v627 = vunpack.c.l.b16 %v207
    %v628 = vunpack.c.h.b16 %v207
    %v629 = vunpack.c.l.b16 %v208
    %v630 = vunpack.c.h.b16 %v208
    %v631 = vunpack.c.l.b16 %v209
    %v632 = vunpack.c.h.b16 %v209
    %v633 = vunpack.c.l.b16 %v210
    %v634 = vunpack.c.h.b16 %v210
    %v635 = vunpack.c.l.b16 %v211
    %v636 = vunpack.c.h.b16 %v211
    %v637 = vunpack.c.l.b16 %v212
    %v638 = vunpack.c.h.b16 %v212
    %v639 = vunpack.c.l.b16 %v213
    %v640 = vunpack.c.h.b16 %v213
    %v641 = vunpack.c.l.b16 %v214
    %v642 = vunpack.c.h.b16 %v214
    %v643 = vunpack.c.l.b16 %v215
    %v644 = vunpack.c.h.b16 %v215
    %v645 = vunpack.c.l.b16 %v216
    %v646 = vunpack.c.h.b16 %v216
    %v647 = vunpack.c.l.b16 %v217
    %v648 = vunpack.c.h.b16 %v217
    %v649 = vunpack.c.l.b16 %v218
    %v650 = vunpack.c.h.b16 %v218
    %v651 = vunpack.c.l.b16 %v219
    %v652 = vunpack.c.h.b16 %v219
    %v653 = vunpack.c.l.b16 %v220
    %v654 = vunpack.c.h.b16 %v220
    %v655 = vunpack.c.l.b16 %v221
    %v656 = vunpack.c.h.b16 %v221
    %v657 = vunpack.c.l.b16 %v222
    %v658 = vunpack.c.h.b16 %v222
    %v659 = vunpack.c.l.b16 %v223
    %v660 = vunpack.c.h.b16 %v223
    %v661 = vunpack.c.l.b16 %v224
    %v662 = vunpack.c.h.b16 %v224
    %v663 = vunpack.c.l.b16 %v225
    %v664 = vunpack.c.h.b16 %v225
    %v665 = vunpack.c.l.b16 %v226
    %v666 = vunpack.c.h.b16 %v226
    %v667 = vunpack.c.l.b16 %v227
    %v668 = vunpack.c.h.b16 %v227
    %v669 = vunpack.c.l.b16 %v228
    %v670 = vunpack.c.h.b16 %v228
    %v671 = vunpack.c.l.b16 %v229
    %v672 = vunpack.c.h.b16 %v229
    %v673 = vunpack.c.l.b16 %v230
    %v674 = vunpack.c.h.b16 %v230
    %v675 = vunpack.c.l.b16 %v231
    %v676 = vunpack.c.h.b16 %v231
    %v677 = vunpack.c.l.b16 %v232
    %v678 = vunpack.c.h.b16 %v232
    %v679 = vunpack.c.l.b16 %v233
    %v680 = vunpack.c.h.b16 %v233
    %v681 = vunpack.c.l.b16 %v234
    %v682 = vunpack.c.h.b16 %v234
    %v683 = vunpack.c.l.b16 %v235
    %v684 = vunpack.c.h.b16 %v235
    %v685 = vunpack.c.l.b16 %v236
    %v686 = vunpack.c.h.b16 %v236
    %v687 = vunpack.c.l.b16 %v237
    %v688 = vunpack.c.h.b16 %v237
    %v689 = vunpack.c.l.b16 %v238
    %v690 = vunpack.c.h.b16 %v238
    %v691 = vunpack.c.l.b16 %v239
    %v692 = vunpack.c.h.b16 %v239
    %v693 = vunpack.c.l.b16 %v240
    %v694 = vunpack.c.h.b16 %v240
    %v695 = vunpack.c.l.b16 %v241
    %v696 = vunpack.c.h.b16 %v241
    %v697 = vunpack.c.l.b16 %v242
    %v698 = vunpack.c.h.b16 %v242
    %v699 = vunpack.c.l.b16 %v243
    %v700 = vunpack.c.h.b16 %v243
    %v701 = vunpack.c.l.b16 %v244
    %v702 = vunpack.c.h.b16 %v244
    %v703 = vunpack.c.l.b16 %v245
    %v704 = vunpack.c.h.b16 %v245
    %v705 = vunpack.c.l.b16 %v246
    %v706 = vunpack.c.h.b16 %v246
    %v707 = vunpack.c.l.b16 %v247
    %v708 = vunpack.c.h.b16 %v247
    %v709 = vunpack.c.l.b16 %v248
    %v710 = vunpack.c.h.b16 %v248
    %v711 = vunpack.c.l.b16 %v249
    %v712 = vunpack.c.h.b16 %v249
    %v713 = vunpack.c.l.b16 %v250
    %v714 = vunpack.c.h.b16 %v250
    %v715 = vunpack.c.l.b16 %v251
    %v716 = vunpack.c.h.b16 %v251
    %v717 = vunpack.c.l.b16 %v252
    %v718 = vunpack.c.h.b16 %v252
    %v719 = vunpack.c.l.b16 %v253
    %v720 = vunpack.c.h.b16 %v253
    %v721 = vunpack.c.l.b16 %v254
    %v722 = vunpack.c.h.b16 %v254
    %v723 = vunpack.c.l.b16 %v255
    %v724 = vunpack.c.h.b16 %v255
    %v725 = vunpack.c.l.b16 %v256
    %v726 = vunpack.c.h.b16 %v256
    %v727 = vunpack.c.l.b16 %v257
    %v728 = vunpack.c.h.b16 %v257
    %v729 = vunpack.c.l.b16 %v258
    %v730 = vunpack.c.h.b16 %v258
    %v731 = vunpack.c.l.b16 %v259
    %v732 = vunpack.c.h.b16 %v259
    %v733 = vunpack.c.l.b16 %v260
    %v734 = vunpack.c.h.b16 %v260
    %v735 = vunpack.c.l.b16 %v261
    %v736 = vunpack.c.h.b16 %v261
    %v737 = vunpack.c.l.b16 %v262
    %v738 = vunpack.c.h.b16 %v262
    %v739 = vunpack.c.l.b16 %v263
    %v740 = vunpack.c.h.b16 %v263
    %v741 = vunpack.c.l.b16 %v264
    %v742 = vunpack.c.h.b16 %v264
    %v743 = vunpack.c.l.b16 %v265
    %v744 = vunpack.c.h.b16 %v265
    %v745 = vunpack.c.l.b16 %v266
    %v746 = vunpack.c.h.b16 %v266
    %v747 = vunpack.c.l.b16 %v267
    %v748 = vunpack.c.h.b16 %v267
    %v749 = vunpack.c.l.b16 %v268
    %v750 = vunpack.c.h.b16 %v268
    %v751 = vunpack.c.l.b16 %v269
    %v752 = vunpack.c.h.b16 %v269
    %v753 = vunpack.c.l.b16 %v270
    %v754 = vunpack.c.h.b16 %v270
    %v755 = vunpack.c.l.b16 %v271
    %v756 = vunpack.c.h.b16 %v271
    %v757 = vunpack.c.l.b16 %v272
    %v758 = vunpack.c.h.b16 %v272
    %v759 = vunpack.c.l.b16 %v273
    %v760 = vunpack.c.h.b16 %v273
    %v761 = vunpack.c.l.b16 %v274
    %v762 = vunpack.c.h.b16 %v274
    %v763 = vunpack.c.l.b16 %v275
    %v764 = vunpack.c.h.b16 %v275
    %v765 = vunpack.c.l.b16 %v276
    %v766 = vunpack.c.h.b16 %v276
    %v767 = vunpack.c.l.b16 %v277
    %v768 = vunpack.c.h.b16 %v277
    %v769 = vunpack.c.l.b16 %v278
    %v770 = vunpack.c.h.b16 %v278
    %v771 = vunpack.c.l.b16 %v279
    %v772 = vunpack.c.h.b16 %v279
    %v773 = vunpack.c.l.b16 %v280
    %v774 = vunpack.c.h.b16 %v280
    %v775 = vunpack.c.l.b16 %v281
    %v776 = vunpack.c.h.b16 %v281
    %v777 = vunpack.c.l.b16 %v282
    %v778 = vunpack.c.h.b16 %v282
    %v779 = vunpack.c.l.b16 %v283
    %v780 = vunpack.c.h.b16 %v283
    %v781 = vunpack.c.l.b16 %v284
    %v782 = vunpack.c.h.b16 %v284
    %v783 = vunpack.c.l.b16 %v285
    %v784 = vunpack.c.h.b16 %v285
    %v785 = vunpack.c.l.b16 %v286
    %v786 = vunpack.c.h.b16 %v286
    %v787 = vunpack.c.l.b16 %v287
    %v788 = vunpack.c.h.b16 %v287
    %v789 = vunpack.c.l.b16 %v288
    %v790 = vunpack.c.h.b16 %v288
    %v791 = vunpack.c.l.b16 %v289
    %v792 = vunpack.c.h.b16 %v289
    %v793 = vunpack.c.l.b16 %v290
    %v794 = vunpack.c.h.b16 %v290
    %v795 = vunpack.c.l.b16 %v291
    %v796 = vunpack.c.h.b16 %v291
    %v797 = vunpack.c.l.b16 %v292
    %v798 = vunpack.c.h.b16 %v292
    %v799 = vunpack.c.l.b16 %v293
    %v800 = vunpack.c.h.b16 %v293
    %v801 = vunpack.c.l.b16 %v294
    %v802 = vunpack.c.h.b16 %v294
    %v803 = vunpack.c.l.b16 %v295
    %v804 = vunpack.c.h.b16 %v295
    %v805 = vunpack.c.l.b16 %v296
    %v806 = vunpack.c.h.b16 %v296
    %v807 = vunpack.c.l.b16 %v297
    %v808 = vunpack.c.h.b16 %v297
    %v809 = vunpack.c.l.b16 %v298
    %v810 = vunpack.c.h.b16 %v298
    %v811 = vunpack.c.l.b16 %v299
    %v812 = vunpack.c.h.b16 %v299
    %v813 = vunpack.c.l.b16 %v300
    %v814 = vunpack.c.h.b16 %v300
    %v815 = vunpack.c.l.b16 %v301
    %v816 = vunpack.c.h.b16 %v301
    %v817 = vunpack.c.l.b16 %v302
    %v818 = vunpack.c.h.b16 %v302
    %v819 = vunpack.c.l.b16 %v303
    %v820 = vunpack.c.h.b16 %v303
    %v821 = vunpack.c.l.b16 %v304
    %v822 = vunpack.c.h.b16 %v304
    %v823 = vunpack.c.l.b16 %v305
    %v824 = vunpack.c.h.b16 %v305
    %v825 = vunpack.c.l.b16 %v306
    %v826 = vunpack.c.h.b16 %v306
    %v827 = vunpack.c.l.b16 %v307
    %v828 = vunpack.c.h.b16 %v307
    %v829 = vunpack.c.l.b16 %v308
    %v830 = vunpack.c.h.b16 %v308
    %v831 = vunpack.c.l.b16 %v309
    %v832 = vunpack.c.h.b16 %v309
    %v833 = vunpack.c.l.b16 %v310
    %v834 = vunpack.c.h.b16 %v310
    %v835 = vunpack.c.l.b16 %v311
    %v836 = vunpack.c.h.b16 %v311
    %v837 = vunpack.c.l.b16 %v312
    %v838 = vunpack.c.h.b16 %v312
    %v839 = vunpack.c.l.b16 %v313
    %v840 = vunpack.c.h.b16 %v313
    %v841 = vunpack.c.l.b16 %v314
    %v842 = vunpack.c.h.b16 %v314
    %v843 = vunpack.c.l.b16 %v315
    %v844 = vunpack.c.h.b16 %v315
    %v845 = vunpack.c.l.b16 %v316
    %v846 = vunpack.c.h.b16 %v316
    %v847 = vunpack.c.l.b16 %v317
    %v848 = vunpack.c.h.b16 %v317
    %v849 = vunpack.c.l.b16 %v318
    %v850 = vunpack.c.h.b16 %v318
    %v851 = vunpack.c.l.b16 %v319
    %v852 = vunpack.c.h.b16 %v319
    %v853 = vunpack.c.l.b16 %v320
    %v854 = vunpack.c.h.b16 %v320
    %v855 = vunpack.c.l.b16 %v321
    %v856 = vunpack.c.h.b16 %v321
    %v857 = vunpack.c.l.b16 %v322
    %v858 = vunpack.c.h.b16 %v322
    %v859 = vunpack.c.l.b16 %v323
    %v860 = vunpack.c.h.b16 %v323
    %v861 = vunpack.c.l.b16 %v324
    %v862 = vunpack.c.h.b16 %v324
    %v863 = vunpack.c.l.b16 %v325
    %v864 = vunpack.c.h.b16 %v325
    %v865 = vunpack.c.l.b16 %v326
    %v866 = vunpack.c.h.b16 %v326
    %v867 = vunpack.c.l.b16 %v327
    %v868 = vunpack.c.h.b16 %v327
    %v869 = vunpack.c.l.b16 %v328
    %v870 = vunpack.c.h.b16 %v328
    %v871 = vunpack.c.l.b16 %v329
    %v872 = vunpack.c.h.b16 %v329
    %v873 = vunpack.c.l.b16 %v330
    %v874 = vunpack.c.h.b16 %v330
    %v875 = vunpack.c.l.b16 %v331
    %v876 = vunpack.c.h.b16 %v331
    %v877 = vunpack.c.l.b16 %v332
    %v878 = vunpack.c.h.b16 %v332
    %v879 = vunpack.c.l.b16 %v333
    %v880 = vunpack.c.h.b16 %v333
    %v881 = vunpack.c.l.b16 %v334
    %v882 = vunpack.c.h.b16 %v334
    %v883 = vunpack.c.l.b16 %v335
    %v884 = vunpack.c.h.b16 %v335
    %v885 = vunpack.c.l.b16 %v336
    %v886 = vunpack.c.h.b16 %v336
    %v887 = vunpack.c.l.b16 %v337
    %v888 = vunpack.c.h.b16 %v337
    %v889 = vunpack.c.l.b16 %v338
    %v890 = vunpack.c.h.b16 %v338
    %v891 = vunpack.c.l.b16 %v339
    %v892 = vunpack.c.h.b16 %v339
    %v893 = vunpack.c.l.b16 %v340
    %v894 = vunpack.c.h.b16 %v340
    %v895 = vunpack.c.l.b16 %v341
    %v896 = vunpack.c.h.b16 %v341
    %v897 = vunpack.c.l.b16 %v342
    %v898 = vunpack.c.h.b16 %v342
    %v899 = vunpack.c.l.b16 %v343
    %v900 = vunpack.c.h.b16 %v343
    %v901 = vunpack.c.l.b16 %v344
    %v902 = vunpack.c.h.b16 %v344
    %v903 = vunpack.c.l.b16 %v345
    %v904 = vunpack.c.h.b16 %v345
    %v905 = vunpack.c.l.b16 %v346
    %v906 = vunpack.c.h.b16 %v346
    %v907 = vunpack.c.l.b16 %v347
    %v908 = vunpack.c.h.b16 %v347
    %v909 = vunpack.c.l.b16 %v348
    %v910 = vunpack.c.h.b16 %v348
    %v911 = vunpack.c.l.b16 %v349
    %v912 = vunpack.c.h.b16 %v349
    %v913 = vunpack.c.l.b16 %v350
    %v914 = vunpack.c.h.b16 %v350
    %v915 = vunpack.c.l.b16 %v351
    %v916 = vunpack.c.h.b16 %v351
    %v917 = vunpack.c.l.b16 %v352
    %v918 = vunpack.c.h.b16 %v352
    %v919 = vunpack.c.l.b16 %v353
    %v920 = vunpack.c.h.b16 %v353
    %v921 = vunpack.c.l.b16 %v354
    %v922 = vunpack.c.h.b16 %v354
    %v923 = vunpack.c.l.b16 %v355
    %v924 = vunpack.c.h.b16 %v355
    %v925 = vunpack.c.l.b16 %v356
    %v926 = vunpack.c.h.b16 %v356
    %v927 = vunpack.c.l.b16 %v357
    %v928 = vunpack.c.h.b16 %v357
    %v929 = vunpack.c.l.b16 %v358
    %v930 = vunpack.c.h.b16 %v358
    %v931 = vunpack.c.l.b16 %v359
    %v932 = vunpack.c.h.b16 %v359
    %v933 = vunpack.c.l.b16 %v360
    %v934 = vunpack.c.h.b16 %v360
    %v935 = vunpack.c.l.b16 %v361
    %v936 = vunpack.c.h.b16 %v361
    %v937 = vunpack.c.l.b16 %v362
    %v938 = vunpack.c.h.b16 %v362
    %v939 = vunpack.c.l.b16 %v363
    %v940 = vunpack.c.h.b16 %v363
    %v941 = vunpack.c.l.b16 %v364
    %v942 = vunpack.c.h.b16 %v364
    %v943 = vunpack.c.l.b16 %v365
    %v944 = vunpack.c.h.b16 %v365
    %v945 = vunpack.c.l.b16 %v366
    %v946 = vunpack.c.h.b16 %v366
    %v947 = vunpack.c.l.b16 %v367
    %v948 = vunpack.c.h.b16 %v367
    %v949 = vunpack.c.l.b16 %v368
    %v950 = vunpack.c.h.b16 %v368
    %v951 = vunpack.c.l.b16 %v369
    %v952 = vunpack.c.h.b16 %v369
    %v953 = vunpack.c.l.b16 %v370
    %v954 = vunpack.c.h.b16 %v370
    %v955 = vunpack.c.l.b16 %v371
    %v956 = vunpack.c.h.b16 %v371
    %v957 = vunpack.c.l.b16 %v372
    %v958 = vunpack.c.h.b16 %v372
    %v959 = vunpack.c.l.b16 %v373
    %v960 = vunpack.c.h.b16 %v373
    %v961 = vunpack.c.l.b16 %v374
    %v962 = vunpack.c.h.b16 %v374
    %v963 = vunpack.c.l.b16 %v375
    %v964 = vunpack.c.h.b16 %v375
    %v965 = vunpack.c.l.b16 %v376
    %v966 = vunpack.c.h.b16 %v376
    %v967 = vunpack.c.l.b16 %v377
    %v968 = vunpack.c.h.b16 %v377
    %v969 = vunpack.c.l.b16 %v378
    %v970 = vunpack.c.h.b16 %v378
    %v971 = vunpack.c.l.b16 %v379
    %v972 = vunpack.c.h.b16 %v379
    %v973 = vunpack.c.l.b16 %v380
    %v974 = vunpack.c.h.b16 %v380
    %v975 = vunpack.c.l.b16 %v381
    %v976 = vunpack.c.h.b16 %v381
    %v977 = vunpack.c.l.b16 %v382
    %v978 = vunpack.c.h.b16 %v382
    %v979 = vunpack.c.l.b16 %v383
    %v980 = vunpack.c.h.b16 %v383
    %v981 = vunpack.c.l.b16 %v384
    %v982 = vunpack.c.h.b16 %v384
    %v983 = vpack.c.b16 %v595, %v591
    %v984 = vpack.c.b16 %v596, %v592
    %v985 = vpack.c.b16 %v597, %v593
    %v986 = vpack.c.b16 %v598, %v594
    %v987 = vpack.c.b16 %v603, %v599
    %v988 = vpack.c.b16 %v604, %v600
    %v989 = vpack.c.b16 %v605, %v601
    %v990 = vpack.c.b16 %v606, %v602
    %v991 = vpack.c.b16 %v611, %v607
    %v992 = vpack.c.b16 %v612, %v608
    %v993 = vpack.c.b16 %v613, %v609
    %v994 = vpack.c.b16 %v614, %v610
    %v995 = vpack.c.b16 %v619, %v615
    %v996 = vpack.c.b16 %v620, %v616
    %v997 = vpack.c.b16 %v621, %v617
    %v998 = vpack.c.b16 %v622, %v618
    %v999 = vpack.c.b16 %v627, %v623
    %v1000 = vpack.c.b16 %v628, %v624
    %v1001 = vpack.c.b16 %v629, %v625
    %v1002 = vpack.c.b16 %v630, %v626
    %v1003 = vpack.c.b16 %v635, %v631
    %v1004 = vpack.c.b16 %v636, %v632
    %v1005 = vpack.c.b16 %v637, %v633
    %v1006 = vpack.c.b16 %v638, %v634
    %v1007 = vpack.c.b16 %v643, %v639
    %v1008 = vpack.c.b16 %v644, %v640
    %v1009 = vpack.c.b16 %v645, %v641
    %v1010 = vpack.c.b16 %v646, %v642
    %v1011 = vpack.c.b16 %v651, %v647
    %v1012 = vpack.c.b16 %v652, %v648
    %v1013 = vpack.c.b16 %v653, %v649
    %v1014 = vpack.c.b16 %v654, %v650
    %v1015 = vpack.c.b16 %v659, %v655
    %v1016 = vpack.c.b16 %v660, %v656
    %v1017 = vpack.c.b16 %v661, %v657
    %v1018 = vpack.c.b16 %v662, %v658
    %v1019 = vpack.c.b16 %v667, %v663
    %v1020 = vpack.c.b16 %v668, %v664
    %v1021 = vpack.c.b16 %v669, %v665
    %v1022 = vpack.c.b16 %v670, %v666
    %v1023 = vpack.c.b16 %v675, %v671
    %v1024 = vpack.c.b16 %v676, %v672
    %v1025 = vpack.c.b16 %v677, %v673
    %v1026 = vpack.c.b16 %v678, %v674
    %v1027 = vpack.c.b16 %v683, %v679
    %v1028 = vpack.c.b16 %v684, %v680
    %v1029 = vpack.c.b16 %v685, %v681
    %v1030 = vpack.c.b16 %v686, %v682
    %v1031 = vpack.c.b16 %v691, %v687
    %v1032 = vpack.c.b16 %v692, %v688
    %v1033 = vpack.c.b16 %v693, %v689
    %v1034 = vpack.c.b16 %v694, %v690
    %v1035 = vpack.c.b16 %v699, %v695
    %v1036 = vpack.c.b16 %v700, %v696
    %v1037 = vpack.c.b16 %v701, %v697
    %v1038 = vpack.c.b16 %v702, %v698
    %v1039 = vpack.c.b16 %v707, %v703
    %v1040 = vpack.c.b16 %v708, %v704
    %v1041 = vpack.c.b16 %v709, %v705
    %v1042 = vpack.c.b16 %v710, %v706
    %v1043 = vpack.c.b16 %v715, %v711
    %v1044 = vpack.c.b16 %v716, %v712
    %v1045 = vpack.c.b16 %v717, %v713
    %v1046 = vpack.c.b16 %v718, %v714
    %v1047 = vpack.c.b16 %v723, %v719
    %v1048 = vpack.c.b16 %v724, %v720
    %v1049 = vpack.c.b16 %v725, %v721
    %v1050 = vpack.c.b16 %v726, %v722
    %v1051 = vpack.c.b16 %v731, %v727
    %v1052 = vpack.c.b16 %v732, %v728
    %v1053 = vpack.c.b16 %v733, %v729
    %v1054 = vpack.c.b16 %v734, %v730
    %v1055 = vpack.c.b16 %v739, %v735
    %v1056 = vpack.c.b16 %v740, %v736
    %v1057 = vpack.c.b16 %v741, %v737
    %v1058 = vpack.c.b16 %v742, %v738
    %v1059 = vpack.c.b16 %v747, %v743
    %v1060 = vpack.c.b16 %v748, %v744
    %v1061 = vpack.c.b16 %v749, %v745
    %v1062 = vpack.c.b16 %v750, %v746
    %v1063 = vpack.c.b16 %v755, %v751
    %v1064 = vpack.c.b16 %v756, %v752
    %v1065 = vpack.c.b16 %v757, %v753
    %v1066 = vpack.c.b16 %v758, %v754
    %v1067 = vpack.c.b16 %v763, %v759
    %v1068 = vpack.c.b16 %v764, %v760
    %v1069 = vpack.c.b16 %v765, %v761
    %v1070 = vpack.c.b16 %v766, %v762
    %v1071 = vpack.c.b16 %v771, %v767
    %v1072 = vpack.c.b16 %v772, %v768
    %v1073 = vpack.c.b16 %v773, %v769
    %v1074 = vpack.c.b16 %v774, %v770
    %v1075 = vpack.c.b16 %v779, %v775
    %v1076 = vpack.c.b16 %v780, %v776
    %v1077 = vpack.c.b16 %v781, %v777
    %v1078 = vpack.c.b16 %v782, %v778
    %v1079 = vpack.c.b16 %v787, %v783
    %v1080 = vpack.c.b16 %v788, %v784
    %v1081 = vpack.c.b16 %v789, %v785
    %v1082 = vpack.c.b16 %v790, %v786
    %v1083 = vpack.c.b16 %v795, %v791
    %v1084 = vpack.c.b16 %v796, %v792
    %v1085 = vpack.c.b16 %v797, %v793
    %v1086 = vpack.c.b16 %v798, %v794
    %v1087 = vpack.c.b16 %v803, %v799
    %v1088 = vpack.c.b16 %v804, %v800
    %v1089 = vpack.c.b16 %v805, %v801
    %v1090 = vpack.c.b16 %v806, %v802
    %v1091 = vpack.c.b16 %v811, %v807
    %v1092 = vpack.c.b16 %v812, %v808
    %v1093 = vpack.c.b16 %v813, %v809
    %v1094 = vpack.c.b16 %v814, %v810
    %v1095 = vpack.c.b16 %v819, %v815
    %v1096 = vpack.c.b16 %v820, %v816
    %v1097 = vpack.c.b16 %v821, %v817
    %v1098 = vpack.c.b16 %v822, %v818
    %v1099 = vpack.c.b16 %v827, %v823
    %v1100 = vpack.c.b16 %v828, %v824
    %v1101 = vpack.c.b16 %v829, %v825
    %v1102 = vpack.c.b16 %v830, %v826
    %v1103 = vpack.c.b16 %v835, %v831
    %v1104 = vpack.c.b16 %v836, %v832
    %v1105 = vpack.c.b16 %v837, %v833
    %v1106 = vpack.c.b16 %v838, %v834
    %v1107 = vpack.c.b16 %v843, %v839
    %v1108 = vpack.c.b16 %v844, %v840
    %v1109 = vpack.c.b16 %v845, %v841
    %v1110 = vpack.c.b16 %v846, %v842
    %v1111 = vpack.c.b16 %v851, %v847
    %v1112 = vpack.c.b16 %v852, %v848
    %v1113 = vpack.c.b16 %v853, %v849
    %v1114 = vpack.c.b16 %v854, %v850
    %v1115 = vpack.c.b16 %v859, %v855
    %v1116 = vpack.c.b16 %v860, %v856
    %v1117 = vpack.c.b16 %v861, %v857
    %v1118 = vpack.c.b16 %v862, %v858
    %v1119 = vpack.c.b16 %v867, %v863
    %v1120 = vpack.c.b16 %v868, %v864
    %v1121 = vpack.c.b16 %v869, %v865
    %v1122 = vpack.c.b16 %v870, %v866
    %v1123 = vpack.c.b16 %v875, %v871
    %v1124 = vpack.c.b16 %v876, %v872
    %v1125 = vpack.c.b16 %v877, %v873
    %v1126 = vpack.c.b16 %v878, %v874
    %v1127 = vpack.c.b16 %v883, %v879
    %v1128 = vpack.c.b16 %v884, %v880
    %v1129 = vpack.c.b16 %v885, %v881
    %v1130 = vpack.c.b16 %v886, %v882
    %v1131 = vpack.c.b16 %v891, %v887
    %v1132 = vpack.c.b16 %v892, %v888
    %v1133 = vpack.c.b16 %v893, %v889
    %v1134 = vpack.c.b16 %v894, %v890
    %v1135 = vpack.c.b16 %v899, %v895
    %v1136 = vpack.c.b16 %v900, %v896
    %v1137 = vpack.c.b16 %v901, %v897
    %v1138 = vpack.c.b16 %v902, %v898
    %v1139 = vpack.c.b16 %v907, %v903
    %v1140 = vpack.c.b16 %v908, %v904
    %v1141 = vpack.c.b16 %v909, %v905
    %v1142 = vpack.c.b16 %v910, %v906
    %v1143 = vpack.c.b16 %v915, %v911
    %v1144 = vpack.c.b16 %v916, %v912
    %v1145 = vpack.c.b16 %v917, %v913
    %v1146 = vpack.c.b16 %v918, %v914
    %v1147 = vpack.c.b16 %v923, %v919
    %v1148 = vpack.c.b16 %v924, %v920
    %v1149 = vpack.c.b16 %v925, %v921
    %v1150 = vpack.c.b16 %v926, %v922
    %v1151 = vpack.c.b16 %v931, %v927
    %v1152 = vpack.c.b16 %v932, %v928
    %v1153 = vpack.c.b16 %v933, %v929
    %v1154 = vpack.c.b16 %v934, %v930
    %v1155 = vpack.c.b16 %v939, %v935
    %v1156 = vpack.c.b16 %v940, %v936
    %v1157 = vpack.c.b16 %v941, %v937
    %v1158 = vpack.c.b16 %v942, %v938
    %v1159 = vpack.c.b16 %v947, %v943
    %v1160 = vpack.c.b16 %v948, %v944
    %v1161 = vpack.c.b16 %v949, %v945
    %v1162 = vpack.c.b16 %v950, %v946
    %v1163 = vpack.c.b16 %v955, %v951
    %v1164 = vpack.c.b16 %v956, %v952
    %v1165 = vpack.c.b16 %v957, %v953
    %v1166 = vpack.c.b16 %v958, %v954
    %v1167 = vpack.c.b16 %v963, %v959
    %v1168 = vpack.c.b16 %v964, %v960
    %v1169 = vpack.c.b16 %v965, %v961
    %v1170 = vpack.c.b16 %v966, %v962
    %v1171 = vpack.c.b16 %v971, %v967
    %v1172 = vpack.c.b16 %v972, %v968
    %v1173 = vpack.c.b16 %v973, %v969
    %v1174 = vpack.c.b16 %v974, %v970
    %v1175 = vpack.c.b16 %v979, %v975
    %v1176 = vpack.c.b16 %v980, %v976
    %v1177 = vpack.c.b16 %v981, %v977
    %v1178 = vpack.c.b16 %v982, %v978
    %vm1375 = vcmask 130048
    %v1377 = vsel %vm1375, %v181, 0
    %v1380 = vsel %vm1375, %v188, 0
    %1382 = vmatpush.bf16.msra.mxu0 %v1011
    %1383 = vmatpush.bf16.msra.mxu0 %v1007
    %1384 = vmatpush.bf16.msra.mxu0 %v1003
    %1385 = vmatpush.bf16.msra.mxu0 %v999
    %1386 = vmatpush.bf16.msra.mxu0 %v995
    %1387 = vmatpush.bf16.msra.mxu0 %v991
    %1388 = vmatpush.bf16.msra.mxu0 %v987
    %1389 = vmatpush.bf16.msra.mxu0 %v983
    %1390 = vmatmul.bf16.gmra.mxu0 %v175
    %v1391 = vpop.f32.mrf.mxu0
    %v1392 = vadd.f32 %v387, %v1391
    %v1393 = vpop.f32.mrf.mxu0
    %v1394 = vadd.f32 %v387, %v1393
    %1395 = vmatmul.bf16.gmra.mxu0 %v182
    %v1396 = vpop.f32.mrf.mxu0
    %v1397 = vadd.f32 %v387, %v1396
    %v1398 = vpop.f32.mrf.mxu0
    %v1399 = vadd.f32 %v387, %v1398
    %1400 = vdwg.mxu0
    %1401 = vmatpush.bf16.msra.mxu0 %v1043
    %1402 = vmatpush.bf16.msra.mxu0 %v1039
    %1403 = vmatpush.bf16.msra.mxu0 %v1035
    %1404 = vmatpush.bf16.msra.mxu0 %v1031
    %1405 = vmatpush.bf16.msra.mxu0 %v1027
    %1406 = vmatpush.bf16.msra.mxu0 %v1023
    %1407 = vmatpush.bf16.msra.mxu0 %v1019
    %1408 = vmatpush.bf16.msra.mxu0 %v1015
    %1409 = vmatmul.bf16.gmra.mxu0 %v176
    %v1410 = vpop.f32.mrf.mxu0
    %v1411 = vadd.f32 %v1392, %v1410
    %v1412 = vpop.f32.mrf.mxu0
    %v1413 = vadd.f32 %v1394, %v1412
    %1414 = vmatmul.bf16.gmra.mxu0 %v183
    %v1415 = vpop.f32.mrf.mxu0
    %v1416 = vadd.f32 %v1397, %v1415
    %v1417 = vpop.f32.mrf.mxu0
    %v1418 = vadd.f32 %v1399, %v1417
    %1419 = vdwg.mxu0
    %1420 = vmatpush.bf16.msra.mxu0 %v1075
    %1421 = vmatpush.bf16.msra.mxu0 %v1071
    %1422 = vmatpush.bf16.msra.mxu0 %v1067
    %1423 = vmatpush.bf16.msra.mxu0 %v1063
    %1424 = vmatpush.bf16.msra.mxu0 %v1059
    %1425 = vmatpush.bf16.msra.mxu0 %v1055
    %1426 = vmatpush.bf16.msra.mxu0 %v1051
    %1427 = vmatpush.bf16.msra.mxu0 %v1047
    %1428 = vmatmul.bf16.gmra.mxu0 %v177
    %v1429 = vpop.f32.mrf.mxu0
    %v1430 = vadd.f32 %v1411, %v1429
    %v1431 = vpop.f32.mrf.mxu0
    %v1432 = vadd.f32 %v1413, %v1431
    %1433 = vmatmul.bf16.gmra.mxu0 %v184
    %v1434 = vpop.f32.mrf.mxu0
    %v1435 = vadd.f32 %v1416, %v1434
    %v1436 = vpop.f32.mrf.mxu0
    %v1437 = vadd.f32 %v1418, %v1436
    %1438 = vdwg.mxu0
    %1439 = vmatpush.bf16.msra.mxu0 %v1107
    %1440 = vmatpush.bf16.msra.mxu0 %v1103
    %1441 = vmatpush.bf16.msra.mxu0 %v1099
    %1442 = vmatpush.bf16.msra.mxu0 %v1095
    %1443 = vmatpush.bf16.msra.mxu0 %v1091
    %1444 = vmatpush.bf16.msra.mxu0 %v1087
    %1445 = vmatpush.bf16.msra.mxu0 %v1083
    %1446 = vmatpush.bf16.msra.mxu0 %v1079
    %1447 = vmatmul.bf16.gmra.mxu0 %v178
    %v1448 = vpop.f32.mrf.mxu0
    %v1449 = vadd.f32 %v1430, %v1448
    %v1450 = vpop.f32.mrf.mxu0
    %v1451 = vadd.f32 %v1432, %v1450
    %1452 = vmatmul.bf16.gmra.mxu0 %v185
    %v1453 = vpop.f32.mrf.mxu0
    %v1454 = vadd.f32 %v1435, %v1453
    %v1455 = vpop.f32.mrf.mxu0
    %v1456 = vadd.f32 %v1437, %v1455
    %1457 = vdwg.mxu0
    %1458 = vmatpush.bf16.msra.mxu0 %v1139
    %1459 = vmatpush.bf16.msra.mxu0 %v1135
    %1460 = vmatpush.bf16.msra.mxu0 %v1131
    %1461 = vmatpush.bf16.msra.mxu0 %v1127
    %1462 = vmatpush.bf16.msra.mxu0 %v1123
    %1463 = vmatpush.bf16.msra.mxu0 %v1119
    %1464 = vmatpush.bf16.msra.mxu0 %v1115
    %1465 = vmatpush.bf16.msra.mxu0 %v1111
    %1466 = vmatmul.bf16.gmra.mxu0 %v179
    %v1467 = vpop.f32.mrf.mxu0
    %v1468 = vadd.f32 %v1449, %v1467
    %v1469 = vpop.f32.mrf.mxu0
    %v1470 = vadd.f32 %v1451, %v1469
    %1471 = vmatmul.bf16.gmra.mxu0 %v186
    %v1472 = vpop.f32.mrf.mxu0
    %v1473 = vadd.f32 %v1454, %v1472
    %v1474 = vpop.f32.mrf.mxu0
    %v1475 = vadd.f32 %v1456, %v1474
    %1476 = vdwg.mxu0
    %1477 = vmatpush.bf16.msra.mxu0 %v1171
    %1478 = vmatpush.bf16.msra.mxu0 %v1167
    %1479 = vmatpush.bf16.msra.mxu0 %v1163
    %1480 = vmatpush.bf16.msra.mxu0 %v1159
    %1481 = vmatpush.bf16.msra.mxu0 %v1155
    %1482 = vmatpush.bf16.msra.mxu0 %v1151
    %1483 = vmatpush.bf16.msra.mxu0 %v1147
    %1484 = vmatpush.bf16.msra.mxu0 %v1143
    %1485 = vmatmul.bf16.gmra.mxu0 %v180
    %v1486 = vpop.f32.mrf.mxu0
    %v1487 = vadd.f32 %v1468, %v1486
    %v1488 = vpop.f32.mrf.mxu0
    %v1489 = vadd.f32 %v1470, %v1488
    %1490 = vmatmul.bf16.gmra.mxu0 %v187
    %v1491 = vpop.f32.mrf.mxu0
    %v1492 = vadd.f32 %v1473, %v1491
    %v1493 = vpop.f32.mrf.mxu0
    %v1494 = vadd.f32 %v1475, %v1493
    %1495 = vdwg.mxu0
    %1496 = vmatpush.bf16.msra.mxu0 0
    %1497 = vmatpush.bf16.msra.mxu0 0
    %1498 = vmatpush.bf16.msra.mxu0 0
    %1499 = vmatpush.bf16.msra.mxu0 0
    %1500 = vmatpush.bf16.msra.mxu0 0
    %1501 = vmatpush.bf16.msra.mxu0 0
    %1502 = vmatpush.bf16.msra.mxu0 0
    %1503 = vmatpush.bf16.msra.mxu0 %v1175
    %1504 = vmatmul.bf16.gmra.mxu0 %v1377
    %v1505 = vpop.f32.mrf.mxu0
    %v1506 = vadd.f32 %v1487, %v1505
    %v1507 = vpop.f32.mrf.mxu0
    %v1508 = vadd.f32 %v1489, %v1507
    %1509 = vmatmul.bf16.gmra.mxu0 %v1380
    %v1510 = vpop.f32.mrf.mxu0
    %v1511 = vadd.f32 %v1492, %v1510
    %v1512 = vpop.f32.mrf.mxu0
    %v1513 = vadd.f32 %v1494, %v1512
    %1514 = vdwg.mxu0
    %1515 = vmatpush.bf16.msra.mxu0 %v1012
    %1516 = vmatpush.bf16.msra.mxu0 %v1008
    %1517 = vmatpush.bf16.msra.mxu0 %v1004
    %1518 = vmatpush.bf16.msra.mxu0 %v1000
    %1519 = vmatpush.bf16.msra.mxu0 %v996
    %1520 = vmatpush.bf16.msra.mxu0 %v992
    %1521 = vmatpush.bf16.msra.mxu0 %v988
    %1522 = vmatpush.bf16.msra.mxu0 %v984
    %1523 = vmatmul.bf16.gmra.mxu0 %v175
    %v1524 = vpop.f32.mrf.mxu0
    %v1525 = vadd.f32 %v388, %v1524
    %v1526 = vpop.f32.mrf.mxu0
    %v1527 = vadd.f32 %v388, %v1526
    %1528 = vmatmul.bf16.gmra.mxu0 %v182
    %v1529 = vpop.f32.mrf.mxu0
    %v1530 = vadd.f32 %v388, %v1529
    %v1531 = vpop.f32.mrf.mxu0
    %v1532 = vadd.f32 %v388, %v1531
    %1533 = vdwg.mxu0
    %1534 = vmatpush.bf16.msra.mxu0 %v1044
    %1535 = vmatpush.bf16.msra.mxu0 %v1040
    %1536 = vmatpush.bf16.msra.mxu0 %v1036
    %1537 = vmatpush.bf16.msra.mxu0 %v1032
    %1538 = vmatpush.bf16.msra.mxu0 %v1028
    %1539 = vmatpush.bf16.msra.mxu0 %v1024
    %1540 = vmatpush.bf16.msra.mxu0 %v1020
    %1541 = vmatpush.bf16.msra.mxu0 %v1016
    %1542 = vmatmul.bf16.gmra.mxu0 %v176
    %v1543 = vpop.f32.mrf.mxu0
    %v1544 = vadd.f32 %v1525, %v1543
    %v1545 = vpop.f32.mrf.mxu0
    %v1546 = vadd.f32 %v1527, %v1545
    %1547 = vmatmul.bf16.gmra.mxu0 %v183
    %v1548 = vpop.f32.mrf.mxu0
    %v1549 = vadd.f32 %v1530, %v1548
    %v1550 = vpop.f32.mrf.mxu0
    %v1551 = vadd.f32 %v1532, %v1550
    %1552 = vdwg.mxu0
    %1553 = vmatpush.bf16.msra.mxu0 %v1076
    %1554 = vmatpush.bf16.msra.mxu0 %v1072
    %1555 = vmatpush.bf16.msra.mxu0 %v1068
    %1556 = vmatpush.bf16.msra.mxu0 %v1064
    %1557 = vmatpush.bf16.msra.mxu0 %v1060
    %1558 = vmatpush.bf16.msra.mxu0 %v1056
    %1559 = vmatpush.bf16.msra.mxu0 %v1052
    %1560 = vmatpush.bf16.msra.mxu0 %v1048
    %1561 = vmatmul.bf16.gmra.mxu0 %v177
    %v1562 = vpop.f32.mrf.mxu0
    %v1563 = vadd.f32 %v1544, %v1562
    %v1564 = vpop.f32.mrf.mxu0
    %v1565 = vadd.f32 %v1546, %v1564
    %1566 = vmatmul.bf16.gmra.mxu0 %v184
    %v1567 = vpop.f32.mrf.mxu0
    %v1568 = vadd.f32 %v1549, %v1567
    %v1569 = vpop.f32.mrf.mxu0
    %v1570 = vadd.f32 %v1551, %v1569
    %1571 = vdwg.mxu0
    %1572 = vmatpush.bf16.msra.mxu0 %v1108
    %1573 = vmatpush.bf16.msra.mxu0 %v1104
    %1574 = vmatpush.bf16.msra.mxu0 %v1100
    %1575 = vmatpush.bf16.msra.mxu0 %v1096
    %1576 = vmatpush.bf16.msra.mxu0 %v1092
    %1577 = vmatpush.bf16.msra.mxu0 %v1088
    %1578 = vmatpush.bf16.msra.mxu0 %v1084
    %1579 = vmatpush.bf16.msra.mxu0 %v1080
    %1580 = vmatmul.bf16.gmra.mxu0 %v178
    %v1581 = vpop.f32.mrf.mxu0
    %v1582 = vadd.f32 %v1563, %v1581
    %v1583 = vpop.f32.mrf.mxu0
    %v1584 = vadd.f32 %v1565, %v1583
    %1585 = vmatmul.bf16.gmra.mxu0 %v185
    %v1586 = vpop.f32.mrf.mxu0
    %v1587 = vadd.f32 %v1568, %v1586
    %v1588 = vpop.f32.mrf.mxu0
    %v1589 = vadd.f32 %v1570, %v1588
    %1590 = vdwg.mxu0
    %1591 = vmatpush.bf16.msra.mxu0 %v1140
    %1592 = vmatpush.bf16.msra.mxu0 %v1136
    %1593 = vmatpush.bf16.msra.mxu0 %v1132
    %1594 = vmatpush.bf16.msra.mxu0 %v1128
    %1595 = vmatpush.bf16.msra.mxu0 %v1124
    %1596 = vmatpush.bf16.msra.mxu0 %v1120
    %1597 = vmatpush.bf16.msra.mxu0 %v1116
    %1598 = vmatpush.bf16.msra.mxu0 %v1112
    %1599 = vmatmul.bf16.gmra.mxu0 %v179
    %v1600 = vpop.f32.mrf.mxu0
    %v1601 = vadd.f32 %v1582, %v1600
    %v1602 = vpop.f32.mrf.mxu0
    %v1603 = vadd.f32 %v1584, %v1602
    %1604 = vmatmul.bf16.gmra.mxu0 %v186
    %v1605 = vpop.f32.mrf.mxu0
    %v1606 = vadd.f32 %v1587, %v1605
    %v1607 = vpop.f32.mrf.mxu0
    %v1608 = vadd.f32 %v1589, %v1607
    %1609 = vdwg.mxu0
    %1610 = vmatpush.bf16.msra.mxu0 %v1172
    %1611 = vmatpush.bf16.msra.mxu0 %v1168
    %1612 = vmatpush.bf16.msra.mxu0 %v1164
    %1613 = vmatpush.bf16.msra.mxu0 %v1160
    %1614 = vmatpush.bf16.msra.mxu0 %v1156
    %1615 = vmatpush.bf16.msra.mxu0 %v1152
    %1616 = vmatpush.bf16.msra.mxu0 %v1148
    %1617 = vmatpush.bf16.msra.mxu0 %v1144
    %1618 = vmatmul.bf16.gmra.mxu0 %v180
    %v1619 = vpop.f32.mrf.mxu0
    %v1620 = vadd.f32 %v1601, %v1619
    %v1621 = vpop.f32.mrf.mxu0
    %v1622 = vadd.f32 %v1603, %v1621
    %1623 = vmatmul.bf16.gmra.mxu0 %v187
    %v1624 = vpop.f32.mrf.mxu0
    %v1625 = vadd.f32 %v1606, %v1624
    %v1626 = vpop.f32.mrf.mxu0
    %v1627 = vadd.f32 %v1608, %v1626
    %1628 = vdwg.mxu0
    %1629 = vmatpush.bf16.msra.mxu0 0
    %1630 = vmatpush.bf16.msra.mxu0 0
    %1631 = vmatpush.bf16.msra.mxu0 0
    %1632 = vmatpush.bf16.msra.mxu0 0
    %1633 = vmatpush.bf16.msra.mxu0 0
    %1634 = vmatpush.bf16.msra.mxu0 0
    %1635 = vmatpush.bf16.msra.mxu0 0
    %1636 = vmatpush.bf16.msra.mxu0 %v1176
    %1637 = vmatmul.bf16.gmra.mxu0 %v1377
    %v1638 = vpop.f32.mrf.mxu0
    %v1639 = vadd.f32 %v1620, %v1638
    %v1640 = vpop.f32.mrf.mxu0
    %v1641 = vadd.f32 %v1622, %v1640
    %1642 = vmatmul.bf16.gmra.mxu0 %v1380
    %v1643 = vpop.f32.mrf.mxu0
    %v1644 = vadd.f32 %v1625, %v1643
    %v1645 = vpop.f32.mrf.mxu0
    %v1646 = vadd.f32 %v1627, %v1645
    %1647 = vdwg.mxu0
    %1648 = vmatpush.bf16.msra.mxu0 %v1013
    %1649 = vmatpush.bf16.msra.mxu0 %v1009
    %1650 = vmatpush.bf16.msra.mxu0 %v1005
    %1651 = vmatpush.bf16.msra.mxu0 %v1001
    %1652 = vmatpush.bf16.msra.mxu0 %v997
    %1653 = vmatpush.bf16.msra.mxu0 %v993
    %1654 = vmatpush.bf16.msra.mxu0 %v989
    %1655 = vmatpush.bf16.msra.mxu0 %v985
    %1656 = vmatmul.bf16.gmra.mxu0 %v175
    %v1657 = vpop.f32.mrf.mxu0
    %v1658 = vadd.f32 %v389, %v1657
    %v1659 = vpop.f32.mrf.mxu0
    %v1660 = vadd.f32 %v389, %v1659
    %1661 = vmatmul.bf16.gmra.mxu0 %v182
    %v1662 = vpop.f32.mrf.mxu0
    %v1663 = vadd.f32 %v389, %v1662
    %v1664 = vpop.f32.mrf.mxu0
    %v1665 = vadd.f32 %v389, %v1664
    %1666 = vdwg.mxu0
    %1667 = vmatpush.bf16.msra.mxu0 %v1045
    %1668 = vmatpush.bf16.msra.mxu0 %v1041
    %1669 = vmatpush.bf16.msra.mxu0 %v1037
    %1670 = vmatpush.bf16.msra.mxu0 %v1033
    %1671 = vmatpush.bf16.msra.mxu0 %v1029
    %1672 = vmatpush.bf16.msra.mxu0 %v1025
    %1673 = vmatpush.bf16.msra.mxu0 %v1021
    %1674 = vmatpush.bf16.msra.mxu0 %v1017
    %1675 = vmatmul.bf16.gmra.mxu0 %v176
    %v1676 = vpop.f32.mrf.mxu0
    %v1677 = vadd.f32 %v1658, %v1676
    %v1678 = vpop.f32.mrf.mxu0
    %v1679 = vadd.f32 %v1660, %v1678
    %1680 = vmatmul.bf16.gmra.mxu0 %v183
    %v1681 = vpop.f32.mrf.mxu0
    %v1682 = vadd.f32 %v1663, %v1681
    %v1683 = vpop.f32.mrf.mxu0
    %v1684 = vadd.f32 %v1665, %v1683
    %1685 = vdwg.mxu0
    %1686 = vmatpush.bf16.msra.mxu0 %v1077
    %1687 = vmatpush.bf16.msra.mxu0 %v1073
    %1688 = vmatpush.bf16.msra.mxu0 %v1069
    %1689 = vmatpush.bf16.msra.mxu0 %v1065
    %1690 = vmatpush.bf16.msra.mxu0 %v1061
    %1691 = vmatpush.bf16.msra.mxu0 %v1057
    %1692 = vmatpush.bf16.msra.mxu0 %v1053
    %1693 = vmatpush.bf16.msra.mxu0 %v1049
    %1694 = vmatmul.bf16.gmra.mxu0 %v177
    %v1695 = vpop.f32.mrf.mxu0
    %v1696 = vadd.f32 %v1677, %v1695
    %v1697 = vpop.f32.mrf.mxu0
    %v1698 = vadd.f32 %v1679, %v1697
    %1699 = vmatmul.bf16.gmra.mxu0 %v184
    %v1700 = vpop.f32.mrf.mxu0
    %v1701 = vadd.f32 %v1682, %v1700
    %v1702 = vpop.f32.mrf.mxu0
    %v1703 = vadd.f32 %v1684, %v1702
    %1704 = vdwg.mxu0
    %1705 = vmatpush.bf16.msra.mxu0 %v1109
    %1706 = vmatpush.bf16.msra.mxu0 %v1105
    %1707 = vmatpush.bf16.msra.mxu0 %v1101
    %1708 = vmatpush.bf16.msra.mxu0 %v1097
    %1709 = vmatpush.bf16.msra.mxu0 %v1093
    %1710 = vmatpush.bf16.msra.mxu0 %v1089
    %1711 = vmatpush.bf16.msra.mxu0 %v1085
    %1712 = vmatpush.bf16.msra.mxu0 %v1081
    %1713 = vmatmul.bf16.gmra.mxu0 %v178
    %v1714 = vpop.f32.mrf.mxu0
    %v1715 = vadd.f32 %v1696, %v1714
    %v1716 = vpop.f32.mrf.mxu0
    %v1717 = vadd.f32 %v1698, %v1716
    %1718 = vmatmul.bf16.gmra.mxu0 %v185
    %v1719 = vpop.f32.mrf.mxu0
    %v1720 = vadd.f32 %v1701, %v1719
    %v1721 = vpop.f32.mrf.mxu0
    %v1722 = vadd.f32 %v1703, %v1721
    %1723 = vdwg.mxu0
    %1724 = vmatpush.bf16.msra.mxu0 %v1141
    %1725 = vmatpush.bf16.msra.mxu0 %v1137
    %1726 = vmatpush.bf16.msra.mxu0 %v1133
    %1727 = vmatpush.bf16.msra.mxu0 %v1129
    %1728 = vmatpush.bf16.msra.mxu0 %v1125
    %1729 = vmatpush.bf16.msra.mxu0 %v1121
    %1730 = vmatpush.bf16.msra.mxu0 %v1117
    %1731 = vmatpush.bf16.msra.mxu0 %v1113
    %1732 = vmatmul.bf16.gmra.mxu0 %v179
    %v1733 = vpop.f32.mrf.mxu0
    %v1734 = vadd.f32 %v1715, %v1733
    %v1735 = vpop.f32.mrf.mxu0
    %v1736 = vadd.f32 %v1717, %v1735
    %1737 = vmatmul.bf16.gmra.mxu0 %v186
    %v1738 = vpop.f32.mrf.mxu0
    %v1739 = vadd.f32 %v1720, %v1738
    %v1740 = vpop.f32.mrf.mxu0
    %v1741 = vadd.f32 %v1722, %v1740
    %1742 = vdwg.mxu0
    %1743 = vmatpush.bf16.msra.mxu0 %v1173
    %1744 = vmatpush.bf16.msra.mxu0 %v1169
    %1745 = vmatpush.bf16.msra.mxu0 %v1165
    %1746 = vmatpush.bf16.msra.mxu0 %v1161
    %1747 = vmatpush.bf16.msra.mxu0 %v1157
    %1748 = vmatpush.bf16.msra.mxu0 %v1153
    %1749 = vmatpush.bf16.msra.mxu0 %v1149
    %1750 = vmatpush.bf16.msra.mxu0 %v1145
    %1751 = vmatmul.bf16.gmra.mxu0 %v180
    %v1752 = vpop.f32.mrf.mxu0
    %v1753 = vadd.f32 %v1734, %v1752
    %v1754 = vpop.f32.mrf.mxu0
    %v1755 = vadd.f32 %v1736, %v1754
    %1756 = vmatmul.bf16.gmra.mxu0 %v187
    %v1757 = vpop.f32.mrf.mxu0
    %v1758 = vadd.f32 %v1739, %v1757
    %v1759 = vpop.f32.mrf.mxu0
    %v1760 = vadd.f32 %v1741, %v1759
    %1761 = vdwg.mxu0
    %1762 = vmatpush.bf16.msra.mxu0 0
    %1763 = vmatpush.bf16.msra.mxu0 0
    %1764 = vmatpush.bf16.msra.mxu0 0
    %1765 = vmatpush.bf16.msra.mxu0 0
    %1766 = vmatpush.bf16.msra.mxu0 0
    %1767 = vmatpush.bf16.msra.mxu0 0
    %1768 = vmatpush.bf16.msra.mxu0 0
    %1769 = vmatpush.bf16.msra.mxu0 %v1177
    %1770 = vmatmul.bf16.gmra.mxu0 %v1377
    %v1771 = vpop.f32.mrf.mxu0
    %v1772 = vadd.f32 %v1753, %v1771
    %v1773 = vpop.f32.mrf.mxu0
    %v1774 = vadd.f32 %v1755, %v1773
    %1775 = vmatmul.bf16.gmra.mxu0 %v1380
    %v1776 = vpop.f32.mrf.mxu0
    %v1777 = vadd.f32 %v1758, %v1776
    %v1778 = vpop.f32.mrf.mxu0
    %v1779 = vadd.f32 %v1760, %v1778
    %1780 = vdwg.mxu0
    %1781 = vmatpush.bf16.msra.mxu0 %v1014
    %1782 = vmatpush.bf16.msra.mxu0 %v1010
    %1783 = vmatpush.bf16.msra.mxu0 %v1006
    %1784 = vmatpush.bf16.msra.mxu0 %v1002
    %1785 = vmatpush.bf16.msra.mxu0 %v998
    %1786 = vmatpush.bf16.msra.mxu0 %v994
    %1787 = vmatpush.bf16.msra.mxu0 %v990
    %1788 = vmatpush.bf16.msra.mxu0 %v986
    %1789 = vmatmul.bf16.gmra.mxu0 %v175
    %v1790 = vpop.f32.mrf.mxu0
    %v1791 = vadd.f32 %v390, %v1790
    %v1792 = vpop.f32.mrf.mxu0
    %v1793 = vadd.f32 %v390, %v1792
    %1794 = vmatmul.bf16.gmra.mxu0 %v182
    %v1795 = vpop.f32.mrf.mxu0
    %v1796 = vadd.f32 %v390, %v1795
    %v1797 = vpop.f32.mrf.mxu0
    %v1798 = vadd.f32 %v390, %v1797
    %1799 = vdwg.mxu0
    %1800 = vmatpush.bf16.msra.mxu0 %v1046
    %1801 = vmatpush.bf16.msra.mxu0 %v1042
    %1802 = vmatpush.bf16.msra.mxu0 %v1038
    %1803 = vmatpush.bf16.msra.mxu0 %v1034
    %1804 = vmatpush.bf16.msra.mxu0 %v1030
    %1805 = vmatpush.bf16.msra.mxu0 %v1026
    %1806 = vmatpush.bf16.msra.mxu0 %v1022
    %1807 = vmatpush.bf16.msra.mxu0 %v1018
    %1808 = vmatmul.bf16.gmra.mxu0 %v176
    %v1809 = vpop.f32.mrf.mxu0
    %v1810 = vadd.f32 %v1791, %v1809
    %v1811 = vpop.f32.mrf.mxu0
    %v1812 = vadd.f32 %v1793, %v1811
    %1813 = vmatmul.bf16.gmra.mxu0 %v183
    %v1814 = vpop.f32.mrf.mxu0
    %v1815 = vadd.f32 %v1796, %v1814
    %v1816 = vpop.f32.mrf.mxu0
    %v1817 = vadd.f32 %v1798, %v1816
    %1818 = vdwg.mxu0
    %1819 = vmatpush.bf16.msra.mxu0 %v1078
    %1820 = vmatpush.bf16.msra.mxu0 %v1074
    %1821 = vmatpush.bf16.msra.mxu0 %v1070
    %1822 = vmatpush.bf16.msra.mxu0 %v1066
    %1823 = vmatpush.bf16.msra.mxu0 %v1062
    %1824 = vmatpush.bf16.msra.mxu0 %v1058
    %1825 = vmatpush.bf16.msra.mxu0 %v1054
    %1826 = vmatpush.bf16.msra.mxu0 %v1050
    %1827 = vmatmul.bf16.gmra.mxu0 %v177
    %v1828 = vpop.f32.mrf.mxu0
    %v1829 = vadd.f32 %v1810, %v1828
    %v1830 = vpop.f32.mrf.mxu0
    %v1831 = vadd.f32 %v1812, %v1830
    %1832 = vmatmul.bf16.gmra.mxu0 %v184
    %v1833 = vpop.f32.mrf.mxu0
    %v1834 = vadd.f32 %v1815, %v1833
    %v1835 = vpop.f32.mrf.mxu0
    %v1836 = vadd.f32 %v1817, %v1835
    %1837 = vdwg.mxu0
    %1838 = vmatpush.bf16.msra.mxu0 %v1110
    %1839 = vmatpush.bf16.msra.mxu0 %v1106
    %1840 = vmatpush.bf16.msra.mxu0 %v1102
    %1841 = vmatpush.bf16.msra.mxu0 %v1098
    %1842 = vmatpush.bf16.msra.mxu0 %v1094
    %1843 = vmatpush.bf16.msra.mxu0 %v1090
    %1844 = vmatpush.bf16.msra.mxu0 %v1086
    %1845 = vmatpush.bf16.msra.mxu0 %v1082
    %1846 = vmatmul.bf16.gmra.mxu0 %v178
    %v1847 = vpop.f32.mrf.mxu0
    %v1848 = vadd.f32 %v1829, %v1847
    %v1849 = vpop.f32.mrf.mxu0
    %v1850 = vadd.f32 %v1831, %v1849
    %1851 = vmatmul.bf16.gmra.mxu0 %v185
    %v1852 = vpop.f32.mrf.mxu0
    %v1853 = vadd.f32 %v1834, %v1852
    %v1854 = vpop.f32.mrf.mxu0
    %v1855 = vadd.f32 %v1836, %v1854
    %1856 = vdwg.mxu0
    %1857 = vmatpush.bf16.msra.mxu0 %v1142
    %1858 = vmatpush.bf16.msra.mxu0 %v1138
    %1859 = vmatpush.bf16.msra.mxu0 %v1134
    %1860 = vmatpush.bf16.msra.mxu0 %v1130
    %1861 = vmatpush.bf16.msra.mxu0 %v1126
    %1862 = vmatpush.bf16.msra.mxu0 %v1122
    %1863 = vmatpush.bf16.msra.mxu0 %v1118
    %1864 = vmatpush.bf16.msra.mxu0 %v1114
    %1865 = vmatmul.bf16.gmra.mxu0 %v179
    %v1866 = vpop.f32.mrf.mxu0
    %v1867 = vadd.f32 %v1848, %v1866
    %v1868 = vpop.f32.mrf.mxu0
    %v1869 = vadd.f32 %v1850, %v1868
    %1870 = vmatmul.bf16.gmra.mxu0 %v186
    %v1871 = vpop.f32.mrf.mxu0
    %v1872 = vadd.f32 %v1853, %v1871
    %v1873 = vpop.f32.mrf.mxu0
    %v1874 = vadd.f32 %v1855, %v1873
    %1875 = vdwg.mxu0
    %1876 = vmatpush.bf16.msra.mxu0 %v1174
    %1877 = vmatpush.bf16.msra.mxu0 %v1170
    %1878 = vmatpush.bf16.msra.mxu0 %v1166
    %1879 = vmatpush.bf16.msra.mxu0 %v1162
    %1880 = vmatpush.bf16.msra.mxu0 %v1158
    %1881 = vmatpush.bf16.msra.mxu0 %v1154
    %1882 = vmatpush.bf16.msra.mxu0 %v1150
    %1883 = vmatpush.bf16.msra.mxu0 %v1146
    %1884 = vmatmul.bf16.gmra.mxu0 %v180
    %v1885 = vpop.f32.mrf.mxu0
    %v1886 = vadd.f32 %v1867, %v1885
    %v1887 = vpop.f32.mrf.mxu0
    %v1888 = vadd.f32 %v1869, %v1887
    %1889 = vmatmul.bf16.gmra.mxu0 %v187
    %v1890 = vpop.f32.mrf.mxu0
    %v1891 = vadd.f32 %v1872, %v1890
    %v1892 = vpop.f32.mrf.mxu0
    %v1893 = vadd.f32 %v1874, %v1892
    %1894 = vdwg.mxu0
    %1895 = vmatpush.bf16.msra.mxu0 0
    %1896 = vmatpush.bf16.msra.mxu0 0
    %1897 = vmatpush.bf16.msra.mxu0 0
    %1898 = vmatpush.bf16.msra.mxu0 0
    %1899 = vmatpush.bf16.msra.mxu0 0
    %1900 = vmatpush.bf16.msra.mxu0 0
    %1901 = vmatpush.bf16.msra.mxu0 0
    %1902 = vmatpush.bf16.msra.mxu0 %v1178
    %1903 = vmatmul.bf16.gmra.mxu0 %v1377
    %v1904 = vpop.f32.mrf.mxu0
    %v1905 = vadd.f32 %v1886, %v1904
    %v1906 = vpop.f32.mrf.mxu0
    %v1907 = vadd.f32 %v1888, %v1906
    %1908 = vmatmul.bf16.gmra.mxu0 %v1380
    %v1909 = vpop.f32.mrf.mxu0
    %v1910 = vadd.f32 %v1891, %v1909
    %v1911 = vpop.f32.mrf.mxu0
    %v1912 = vadd.f32 %v1893, %v1911
    %1913 = vdwg.mxu0
    %v1914 = vmax.f32 %v1506, 0.0
    %v1915 = vmax.f32 %v1639, 0.0
    %v1916 = vmax.f32 %v1772, 0.0
    %v1917 = vmax.f32 %v1905, 0.0
    %v1918 = vmax.f32 %v1508, 0.0
    %v1919 = vmax.f32 %v1641, 0.0
    %v1920 = vmax.f32 %v1774, 0.0
    %v1921 = vmax.f32 %v1907, 0.0
    %v1922 = vmax.f32 %v1511, 0.0
    %v1923 = vmax.f32 %v1644, 0.0
    %v1924 = vmax.f32 %v1777, 0.0
    %v1925 = vmax.f32 %v1910, 0.0
    %v1926 = vmax.f32 %v1513, 0.0
    %v1927 = vmax.f32 %v1646, 0.0
    %v1928 = vmax.f32 %v1779, 0.0
    %v1929 = vmax.f32 %v1912, 0.0
    %v1930 = vpack.c.bf16 %v1918, %v1914
    %v1931 = vpack.c.bf16 %v1919, %v1915
    %v1932 = vpack.c.bf16 %v1920, %v1916
    %v1933 = vpack.c.bf16 %v1921, %v1917
    %v1934 = vpack.c.bf16 %v1926, %v1922
    %v1935 = vpack.c.bf16 %v1927, %v1923
    %v1936 = vpack.c.bf16 %v1928, %v1924
    %v1937 = vpack.c.bf16 %v1929, %v1925
    %v1938 = vld [vmem:[#allocation8] sm:$0xff]
    %v1939 = vld [vmem:[#allocation8 + $0x8] sm:$0xff]
    %v1940 = vld [vmem:[#allocation8 + $0x10] sm:$0xff]
    %v1941 = vld [vmem:[#allocation8 + $0x18] sm:$0xff]
    %v1942 = vld [vmem:[#allocation8 + $0x20] sm:$0xff]
    %v1943 = vld [vmem:[#allocation8 + $0x28] sm:$0xff]
    %v1944 = vld [vmem:[#allocation8 + $0x30] sm:$0xff]
    %v1945 = vld [vmem:[#allocation8 + $0x38] sm:$0xff]
    %v1946 = vld [vmem:[#allocation8 + $0x40] sm:$0xff]
    %v1947 = vld [vmem:[#allocation8 + $0x48] sm:$0xff]
    %v1948 = vld [vmem:[#allocation8 + $0x50] sm:$0xff]
    %v1949 = vld [vmem:[#allocation8 + $0x58] sm:$0xff]
    %v1950 = vld [vmem:[#allocation8 + $0x60] sm:$0xff]
    %v1951 = vld [vmem:[#allocation8 + $0x68] sm:$0xff]
    %v1952 = vld [vmem:[#allocation8 + $0x70] sm:$0xff]
    %v1953 = vld [vmem:[#allocation8 + $0x78] sm:$0xff]
    %v1954 = vld [vmem:[#allocation8 + $0x80] sm:$0xff]
    %v1955 = vld [vmem:[#allocation8 + $0x88] sm:$0xff]
    %v1956 = vld [vmem:[#allocation8 + $0x90] sm:$0xff]
    %v1957 = vld [vmem:[#allocation8 + $0x98] sm:$0xff]
    %v1958 = vld [vmem:[#allocation8 + $0xa0] sm:$0xff]
    %v1959 = vld [vmem:[#allocation8 + $0xa8] sm:$0xff]
    %v1960 = vld [vmem:[#allocation8 + $0xb0] sm:$0xff]
    %v1961 = vld [vmem:[#allocation8 + $0xb8] sm:$0xff]
    %v1962 = vld [vmem:[#allocation8 + $0xc0] sm:$0xff]
    %v1963 = vld [vmem:[#allocation8 + $0xc8] sm:$0xff]
    %v1964 = vld [vmem:[#allocation8 + $0xd0] sm:$0xff]
    %v1965 = vld [vmem:[#allocation8 + $0xd8] sm:$0xff]
    %v1966 = vld [vmem:[#allocation8 + $0xe0] sm:$0xff]
    %v1967 = vld [vmem:[#allocation8 + $0xe8] sm:$0xff]
    %v1968 = vld [vmem:[#allocation8 + $0xf0] sm:$0xff]
    %v1969 = vld [vmem:[#allocation8 + $0xf8] sm:$0xff]
    %v1970 = vld [vmem:[#allocation8 + $0x100] sm:$0xff]
    %v1971 = vld [vmem:[#allocation8 + $0x108] sm:$0xff]
    %v1972 = vld [vmem:[#allocation8 + $0x110] sm:$0xff]
    %v1973 = vld [vmem:[#allocation8 + $0x118] sm:$0xff]
    %v1974 = vld [vmem:[#allocation8 + $0x120] sm:$0xff]
    %v1975 = vld [vmem:[#allocation8 + $0x128] sm:$0xff]
    %v1976 = vld [vmem:[#allocation8 + $0x130] sm:$0xff]
    %v1977 = vld [vmem:[#allocation8 + $0x138] sm:$0xff]
    %v1978 = vld [vmem:[#allocation8 + $0x140] sm:$0xff]
    %v1979 = vld [vmem:[#allocation8 + $0x148] sm:$0xff]
    %v1980 = vld [vmem:[#allocation8 + $0x150] sm:$0xff]
    %v1981 = vld [vmem:[#allocation8 + $0x158] sm:$0xff]
    %v1982 = vld [vmem:[#allocation8 + $0x160] sm:$0xff]
    %v1983 = vld [vmem:[#allocation8 + $0x168] sm:$0xff]
    %v1984 = vld [vmem:[#allocation8 + $0x170] sm:$0xff]
    %v1985 = vld [vmem:[#allocation8 + $0x178] sm:$0xff]
    %v1986 = vld [vmem:[#allocation8 + $0x180] sm:$0xff]
    %v1987 = vld [vmem:[#allocation8 + $0x188] sm:$0xff]
    %v1988 = vld [vmem:[#allocation8 + $0x190] sm:$0xff]
    %v1989 = vld [vmem:[#allocation8 + $0x198] sm:$0xff]
    %v1990 = vld [vmem:[#allocation8 + $0x1a0] sm:$0xff]
    %v1991 = vld [vmem:[#allocation8 + $0x1a8] sm:$0xff]
    %v1992 = vld [vmem:[#allocation8 + $0x1b0] sm:$0xff]
    %v1993 = vld [vmem:[#allocation8 + $0x1b8] sm:$0xff]
    %v1994 = vld [vmem:[#allocation8 + $0x1c0] sm:$0xff]
    %v1995 = vld [vmem:[#allocation8 + $0x1c8] sm:$0xff]
    %v1996 = vld [vmem:[#allocation8 + $0x1d0] sm:$0xff]
    %v1997 = vld [vmem:[#allocation8 + $0x1d8] sm:$0xff]
    %v1998 = vld [vmem:[#allocation8 + $0x1e0] sm:$0xff]
    %v1999 = vld [vmem:[#allocation8 + $0x1e8] sm:$0xff]
    %v2000 = vld [vmem:[#allocation8 + $0x1f0] sm:$0xff]
    %v2001 = vld [vmem:[#allocation8 + $0x1f8] sm:$0xff]
    %v2002 = vld [vmem:[%s4] sm:$0x3]
    %v2004 = vperm.slane %v2002, 0
    %v2005 = vperm.slane %v2002, 1
    %v2072 = vunpack.c.l.b16 %v1938
    %v2073 = vunpack.c.h.b16 %v1938
    %v2074 = vunpack.c.l.b16 %v1939
    %v2075 = vunpack.c.h.b16 %v1939
    %v2076 = vunpack.c.l.b16 %v1940
    %v2077 = vunpack.c.h.b16 %v1940
    %v2078 = vunpack.c.l.b16 %v1941
    %v2079 = vunpack.c.h.b16 %v1941
    %v2080 = vunpack.c.l.b16 %v1942
    %v2081 = vunpack.c.h.b16 %v1942
    %v2082 = vunpack.c.l.b16 %v1943
    %v2083 = vunpack.c.h.b16 %v1943
    %v2084 = vunpack.c.l.b16 %v1944
    %v2085 = vunpack.c.h.b16 %v1944
    %v2086 = vunpack.c.l.b16 %v1945
    %v2087 = vunpack.c.h.b16 %v1945
    %v2088 = vunpack.c.l.b16 %v1946
    %v2089 = vunpack.c.h.b16 %v1946
    %v2090 = vunpack.c.l.b16 %v1947
    %v2091 = vunpack.c.h.b16 %v1947
    %v2092 = vunpack.c.l.b16 %v1948
    %v2093 = vunpack.c.h.b16 %v1948
    %v2094 = vunpack.c.l.b16 %v1949
    %v2095 = vunpack.c.h.b16 %v1949
    %v2096 = vunpack.c.l.b16 %v1950
    %v2097 = vunpack.c.h.b16 %v1950
    %v2098 = vunpack.c.l.b16 %v1951
    %v2099 = vunpack.c.h.b16 %v1951
    %v2100 = vunpack.c.l.b16 %v1952
    %v2101 = vunpack.c.h.b16 %v1952
    %v2102 = vunpack.c.l.b16 %v1953
    %v2103 = vunpack.c.h.b16 %v1953
    %v2104 = vunpack.c.l.b16 %v1954
    %v2105 = vunpack.c.h.b16 %v1954
    %v2106 = vunpack.c.l.b16 %v1955
    %v2107 = vunpack.c.h.b16 %v1955
    %v2108 = vunpack.c.l.b16 %v1956
    %v2109 = vunpack.c.h.b16 %v1956
    %v2110 = vunpack.c.l.b16 %v1957
    %v2111 = vunpack.c.h.b16 %v1957
    %v2112 = vunpack.c.l.b16 %v1958
    %v2113 = vunpack.c.h.b16 %v1958
    %v2114 = vunpack.c.l.b16 %v1959
    %v2115 = vunpack.c.h.b16 %v1959
    %v2116 = vunpack.c.l.b16 %v1960
    %v2117 = vunpack.c.h.b16 %v1960
    %v2118 = vunpack.c.l.b16 %v1961
    %v2119 = vunpack.c.h.b16 %v1961
    %v2120 = vunpack.c.l.b16 %v1962
    %v2121 = vunpack.c.h.b16 %v1962
    %v2122 = vunpack.c.l.b16 %v1963
    %v2123 = vunpack.c.h.b16 %v1963
    %v2124 = vunpack.c.l.b16 %v1964
    %v2125 = vunpack.c.h.b16 %v1964
    %v2126 = vunpack.c.l.b16 %v1965
    %v2127 = vunpack.c.h.b16 %v1965
    %v2128 = vunpack.c.l.b16 %v1966
    %v2129 = vunpack.c.h.b16 %v1966
    %v2130 = vunpack.c.l.b16 %v1967
    %v2131 = vunpack.c.h.b16 %v1967
    %v2132 = vunpack.c.l.b16 %v1968
    %v2133 = vunpack.c.h.b16 %v1968
    %v2134 = vunpack.c.l.b16 %v1969
    %v2135 = vunpack.c.h.b16 %v1969
    %v2136 = vunpack.c.l.b16 %v1970
    %v2137 = vunpack.c.h.b16 %v1970
    %v2138 = vunpack.c.l.b16 %v1971
    %v2139 = vunpack.c.h.b16 %v1971
    %v2140 = vunpack.c.l.b16 %v1972
    %v2141 = vunpack.c.h.b16 %v1972
    %v2142 = vunpack.c.l.b16 %v1973
    %v2143 = vunpack.c.h.b16 %v1973
    %v2144 = vunpack.c.l.b16 %v1974
    %v2145 = vunpack.c.h.b16 %v1974
    %v2146 = vunpack.c.l.b16 %v1975
    %v2147 = vunpack.c.h.b16 %v1975
    %v2148 = vunpack.c.l.b16 %v1976
    %v2149 = vunpack.c.h.b16 %v1976
    %v2150 = vunpack.c.l.b16 %v1977
    %v2151 = vunpack.c.h.b16 %v1977
    %v2152 = vunpack.c.l.b16 %v1978
    %v2153 = vunpack.c.h.b16 %v1978
    %v2154 = vunpack.c.l.b16 %v1979
    %v2155 = vunpack.c.h.b16 %v1979
    %v2156 = vunpack.c.l.b16 %v1980
    %v2157 = vunpack.c.h.b16 %v1980
    %v2158 = vunpack.c.l.b16 %v1981
    %v2159 = vunpack.c.h.b16 %v1981
    %v2160 = vunpack.c.l.b16 %v1982
    %v2161 = vunpack.c.h.b16 %v1982
    %v2162 = vunpack.c.l.b16 %v1983
    %v2163 = vunpack.c.h.b16 %v1983
    %v2164 = vunpack.c.l.b16 %v1984
    %v2165 = vunpack.c.h.b16 %v1984
    %v2166 = vunpack.c.l.b16 %v1985
    %v2167 = vunpack.c.h.b16 %v1985
    %v2168 = vunpack.c.l.b16 %v1986
    %v2169 = vunpack.c.h.b16 %v1986
    %v2170 = vunpack.c.l.b16 %v1987
    %v2171 = vunpack.c.h.b16 %v1987
    %v2172 = vunpack.c.l.b16 %v1988
    %v2173 = vunpack.c.h.b16 %v1988
    %v2174 = vunpack.c.l.b16 %v1989
    %v2175 = vunpack.c.h.b16 %v1989
    %v2176 = vunpack.c.l.b16 %v1990
    %v2177 = vunpack.c.h.b16 %v1990
    %v2178 = vunpack.c.l.b16 %v1991
    %v2179 = vunpack.c.h.b16 %v1991
    %v2180 = vunpack.c.l.b16 %v1992
    %v2181 = vunpack.c.h.b16 %v1992
    %v2182 = vunpack.c.l.b16 %v1993
    %v2183 = vunpack.c.h.b16 %v1993
    %v2184 = vunpack.c.l.b16 %v1994
    %v2185 = vunpack.c.h.b16 %v1994
    %v2186 = vunpack.c.l.b16 %v1995
    %v2187 = vunpack.c.h.b16 %v1995
    %v2188 = vunpack.c.l.b16 %v1996
    %v2189 = vunpack.c.h.b16 %v1996
    %v2190 = vunpack.c.l.b16 %v1997
    %v2191 = vunpack.c.h.b16 %v1997
    %v2192 = vunpack.c.l.b16 %v1998
    %v2193 = vunpack.c.h.b16 %v1998
    %v2194 = vunpack.c.l.b16 %v1999
    %v2195 = vunpack.c.h.b16 %v1999
    %v2196 = vunpack.c.l.b16 %v2000
    %v2197 = vunpack.c.h.b16 %v2000
    %v2198 = vunpack.c.l.b16 %v2001
    %v2199 = vunpack.c.h.b16 %v2001
    %v2200 = vpack.c.b16 %v2074, %v2072
    %v2201 = vpack.c.b16 %v2075, %v2073
    %v2202 = vpack.c.b16 %v2078, %v2076
    %v2203 = vpack.c.b16 %v2079, %v2077
    %v2204 = vpack.c.b16 %v2082, %v2080
    %v2205 = vpack.c.b16 %v2083, %v2081
    %v2206 = vpack.c.b16 %v2086, %v2084
    %v2207 = vpack.c.b16 %v2087, %v2085
    %v2208 = vpack.c.b16 %v2090, %v2088
    %v2209 = vpack.c.b16 %v2091, %v2089
    %v2210 = vpack.c.b16 %v2094, %v2092
    %v2211 = vpack.c.b16 %v2095, %v2093
    %v2212 = vpack.c.b16 %v2098, %v2096
    %v2213 = vpack.c.b16 %v2099, %v2097
    %v2214 = vpack.c.b16 %v2102, %v2100
    %v2215 = vpack.c.b16 %v2103, %v2101
    %v2216 = vpack.c.b16 %v2106, %v2104
    %v2217 = vpack.c.b16 %v2107, %v2105
    %v2218 = vpack.c.b16 %v2110, %v2108
    %v2219 = vpack.c.b16 %v2111, %v2109
    %v2220 = vpack.c.b16 %v2114, %v2112
    %v2221 = vpack.c.b16 %v2115, %v2113
    %v2222 = vpack.c.b16 %v2118, %v2116
    %v2223 = vpack.c.b16 %v2119, %v2117
    %v2224 = vpack.c.b16 %v2122, %v2120
    %v2225 = vpack.c.b16 %v2123, %v2121
    %v2226 = vpack.c.b16 %v2126, %v2124
    %v2227 = vpack.c.b16 %v2127, %v2125
    %v2228 = vpack.c.b16 %v2130, %v2128
    %v2229 = vpack.c.b16 %v2131, %v2129
    %v2230 = vpack.c.b16 %v2134, %v2132
    %v2231 = vpack.c.b16 %v2135, %v2133
    %v2232 = vpack.c.b16 %v2138, %v2136
    %v2233 = vpack.c.b16 %v2139, %v2137
    %v2234 = vpack.c.b16 %v2142, %v2140
    %v2235 = vpack.c.b16 %v2143, %v2141
    %v2236 = vpack.c.b16 %v2146, %v2144
    %v2237 = vpack.c.b16 %v2147, %v2145
    %v2238 = vpack.c.b16 %v2150, %v2148
    %v2239 = vpack.c.b16 %v2151, %v2149
    %v2240 = vpack.c.b16 %v2154, %v2152
    %v2241 = vpack.c.b16 %v2155, %v2153
    %v2242 = vpack.c.b16 %v2158, %v2156
    %v2243 = vpack.c.b16 %v2159, %v2157
    %v2244 = vpack.c.b16 %v2162, %v2160
    %v2245 = vpack.c.b16 %v2163, %v2161
    %v2246 = vpack.c.b16 %v2166, %v2164
    %v2247 = vpack.c.b16 %v2167, %v2165
    %v2248 = vpack.c.b16 %v2170, %v2168
    %v2249 = vpack.c.b16 %v2171, %v2169
    %v2250 = vpack.c.b16 %v2174, %v2172
    %v2251 = vpack.c.b16 %v2175, %v2173
    %v2252 = vpack.c.b16 %v2178, %v2176
    %v2253 = vpack.c.b16 %v2179, %v2177
    %v2254 = vpack.c.b16 %v2182, %v2180
    %v2255 = vpack.c.b16 %v2183, %v2181
    %v2256 = vpack.c.b16 %v2186, %v2184
    %v2257 = vpack.c.b16 %v2187, %v2185
    %v2258 = vpack.c.b16 %v2190, %v2188
    %v2259 = vpack.c.b16 %v2191, %v2189
    %v2260 = vpack.c.b16 %v2194, %v2192
    %v2261 = vpack.c.b16 %v2195, %v2193
    %v2262 = vpack.c.b16 %v2198, %v2196
    %v2263 = vpack.c.b16 %v2199, %v2197
    %2328 = vmatpush.bf16.msra.mxu0 %v2214
    %2329 = vmatpush.bf16.msra.mxu0 %v2212
    %2330 = vmatpush.bf16.msra.mxu0 %v2210
    %2331 = vmatpush.bf16.msra.mxu0 %v2208
    %2332 = vmatpush.bf16.msra.mxu0 %v2206
    %2333 = vmatpush.bf16.msra.mxu0 %v2204
    %2334 = vmatpush.bf16.msra.mxu0 %v2202
    %2335 = vmatpush.bf16.msra.mxu0 %v2200
    %2336 = vmatmul.bf16.gmra.mxu0 %v1930
    %v2337 = vpop.f32.mrf.mxu0
    %v2338 = vadd.f32 %v2004, %v2337
    %v2339 = vpop.f32.mrf.mxu0
    %v2340 = vadd.f32 %v2004, %v2339
    %2341 = vmatmul.bf16.gmra.mxu0 %v1934
    %v2342 = vpop.f32.mrf.mxu0
    %v2343 = vadd.f32 %v2004, %v2342
    %v2344 = vpop.f32.mrf.mxu0
    %v2345 = vadd.f32 %v2004, %v2344
    %2346 = vdwg.mxu0
    %2347 = vmatpush.bf16.msra.mxu0 %v2230
    %2348 = vmatpush.bf16.msra.mxu0 %v2228
    %2349 = vmatpush.bf16.msra.mxu0 %v2226
    %2350 = vmatpush.bf16.msra.mxu0 %v2224
    %2351 = vmatpush.bf16.msra.mxu0 %v2222
    %2352 = vmatpush.bf16.msra.mxu0 %v2220
    %2353 = vmatpush.bf16.msra.mxu0 %v2218
    %2354 = vmatpush.bf16.msra.mxu0 %v2216
    %2355 = vmatmul.bf16.gmra.mxu0 %v1931
    %v2356 = vpop.f32.mrf.mxu0
    %v2357 = vadd.f32 %v2338, %v2356
    %v2358 = vpop.f32.mrf.mxu0
    %v2359 = vadd.f32 %v2340, %v2358
    %2360 = vmatmul.bf16.gmra.mxu0 %v1935
    %v2361 = vpop.f32.mrf.mxu0
    %v2362 = vadd.f32 %v2343, %v2361
    %v2363 = vpop.f32.mrf.mxu0
    %v2364 = vadd.f32 %v2345, %v2363
    %2365 = vdwg.mxu0
    %2366 = vmatpush.bf16.msra.mxu0 %v2246
    %2367 = vmatpush.bf16.msra.mxu0 %v2244
    %2368 = vmatpush.bf16.msra.mxu0 %v2242
    %2369 = vmatpush.bf16.msra.mxu0 %v2240
    %2370 = vmatpush.bf16.msra.mxu0 %v2238
    %2371 = vmatpush.bf16.msra.mxu0 %v2236
    %2372 = vmatpush.bf16.msra.mxu0 %v2234
    %2373 = vmatpush.bf16.msra.mxu0 %v2232
    %2374 = vmatmul.bf16.gmra.mxu0 %v1932
    %v2375 = vpop.f32.mrf.mxu0
    %v2376 = vadd.f32 %v2357, %v2375
    %v2377 = vpop.f32.mrf.mxu0
    %v2378 = vadd.f32 %v2359, %v2377
    %2379 = vmatmul.bf16.gmra.mxu0 %v1936
    %v2380 = vpop.f32.mrf.mxu0
    %v2381 = vadd.f32 %v2362, %v2380
    %v2382 = vpop.f32.mrf.mxu0
    %v2383 = vadd.f32 %v2364, %v2382
    %2384 = vdwg.mxu0
    %2385 = vmatpush.bf16.msra.mxu0 %v2262
    %2386 = vmatpush.bf16.msra.mxu0 %v2260
    %2387 = vmatpush.bf16.msra.mxu0 %v2258
    %2388 = vmatpush.bf16.msra.mxu0 %v2256
    %2389 = vmatpush.bf16.msra.mxu0 %v2254
    %2390 = vmatpush.bf16.msra.mxu0 %v2252
    %2391 = vmatpush.bf16.msra.mxu0 %v2250
    %2392 = vmatpush.bf16.msra.mxu0 %v2248
    %2393 = vmatmul.bf16.gmra.mxu0 %v1933
    %v2394 = vpop.f32.mrf.mxu0
    %v2395 = vadd.f32 %v2376, %v2394
    %v2396 = vpop.f32.mrf.mxu0
    %v2397 = vadd.f32 %v2378, %v2396
    %2398 = vmatmul.bf16.gmra.mxu0 %v1937
    %v2399 = vpop.f32.mrf.mxu0
    %v2400 = vadd.f32 %v2381, %v2399
    %v2401 = vpop.f32.mrf.mxu0
    %v2402 = vadd.f32 %v2383, %v2401
    %2403 = vdwg.mxu0
    %2404 = vmatpush.bf16.msra.mxu0 %v2215
    %2405 = vmatpush.bf16.msra.mxu0 %v2213
    %2406 = vmatpush.bf16.msra.mxu0 %v2211
    %2407 = vmatpush.bf16.msra.mxu0 %v2209
    %2408 = vmatpush.bf16.msra.mxu0 %v2207
    %2409 = vmatpush.bf16.msra.mxu0 %v2205
    %2410 = vmatpush.bf16.msra.mxu0 %v2203
    %2411 = vmatpush.bf16.msra.mxu0 %v2201
    %2412 = vmatmul.bf16.gmra.mxu0 %v1930
    %v2413 = vpop.f32.mrf.mxu0
    %v2414 = vadd.f32 %v2005, %v2413
    %v2415 = vpop.f32.mrf.mxu0
    %v2416 = vadd.f32 %v2005, %v2415
    %2417 = vmatmul.bf16.gmra.mxu0 %v1934
    %v2418 = vpop.f32.mrf.mxu0
    %v2419 = vadd.f32 %v2005, %v2418
    %v2420 = vpop.f32.mrf.mxu0
    %v2421 = vadd.f32 %v2005, %v2420
    %2422 = vdwg.mxu0
    %2423 = vmatpush.bf16.msra.mxu0 %v2231
    %2424 = vmatpush.bf16.msra.mxu0 %v2229
    %2425 = vmatpush.bf16.msra.mxu0 %v2227
    %2426 = vmatpush.bf16.msra.mxu0 %v2225
    %2427 = vmatpush.bf16.msra.mxu0 %v2223
    %2428 = vmatpush.bf16.msra.mxu0 %v2221
    %2429 = vmatpush.bf16.msra.mxu0 %v2219
    %2430 = vmatpush.bf16.msra.mxu0 %v2217
    %2431 = vmatmul.bf16.gmra.mxu0 %v1931
    %v2432 = vpop.f32.mrf.mxu0
    %v2433 = vadd.f32 %v2414, %v2432
    %v2434 = vpop.f32.mrf.mxu0
    %v2435 = vadd.f32 %v2416, %v2434
    %2436 = vmatmul.bf16.gmra.mxu0 %v1935
    %v2437 = vpop.f32.mrf.mxu0
    %v2438 = vadd.f32 %v2419, %v2437
    %v2439 = vpop.f32.mrf.mxu0
    %v2440 = vadd.f32 %v2421, %v2439
    %2441 = vdwg.mxu0
    %2442 = vmatpush.bf16.msra.mxu0 %v2247
    %2443 = vmatpush.bf16.msra.mxu0 %v2245
    %2444 = vmatpush.bf16.msra.mxu0 %v2243
    %2445 = vmatpush.bf16.msra.mxu0 %v2241
    %2446 = vmatpush.bf16.msra.mxu0 %v2239
    %2447 = vmatpush.bf16.msra.mxu0 %v2237
    %2448 = vmatpush.bf16.msra.mxu0 %v2235
    %2449 = vmatpush.bf16.msra.mxu0 %v2233
    %2450 = vmatmul.bf16.gmra.mxu0 %v1932
    %v2451 = vpop.f32.mrf.mxu0
    %v2452 = vadd.f32 %v2433, %v2451
    %v2453 = vpop.f32.mrf.mxu0
    %v2454 = vadd.f32 %v2435, %v2453
    %2455 = vmatmul.bf16.gmra.mxu0 %v1936
    %v2456 = vpop.f32.mrf.mxu0
    %v2457 = vadd.f32 %v2438, %v2456
    %v2458 = vpop.f32.mrf.mxu0
    %v2459 = vadd.f32 %v2440, %v2458
    %2460 = vdwg.mxu0
    %2461 = vmatpush.bf16.msra.mxu0 %v2263
    %2462 = vmatpush.bf16.msra.mxu0 %v2261
    %2463 = vmatpush.bf16.msra.mxu0 %v2259
    %2464 = vmatpush.bf16.msra.mxu0 %v2257
    %2465 = vmatpush.bf16.msra.mxu0 %v2255
    %2466 = vmatpush.bf16.msra.mxu0 %v2253
    %2467 = vmatpush.bf16.msra.mxu0 %v2251
    %2468 = vmatpush.bf16.msra.mxu0 %v2249
    %2469 = vmatmul.bf16.gmra.mxu0 %v1933
    %v2470 = vpop.f32.mrf.mxu0
    %v2471 = vadd.f32 %v2452, %v2470
    %v2472 = vpop.f32.mrf.mxu0
    %v2473 = vadd.f32 %v2454, %v2472
    %2474 = vmatmul.bf16.gmra.mxu0 %v1937
    %v2475 = vpop.f32.mrf.mxu0
    %v2476 = vadd.f32 %v2457, %v2475
    %v2477 = vpop.f32.mrf.mxu0
    %v2478 = vadd.f32 %v2459, %v2477
    %2479 = vdwg.mxu0
    %v2480 = vmax.f32 %v2395, 0.0
    %v2481 = vmax.f32 %v2471, 0.0
    %v2482 = vmax.f32 %v2397, 0.0
    %v2483 = vmax.f32 %v2473, 0.0
    %v2484 = vmax.f32 %v2400, 0.0
    %v2485 = vmax.f32 %v2476, 0.0
    %v2486 = vmax.f32 %v2402, 0.0
    %v2487 = vmax.f32 %v2478, 0.0
    %v2488 = vpack.c.bf16 %v2482, %v2480
    %v2489 = vpack.c.bf16 %v2483, %v2481
    %v2490 = vpack.c.bf16 %v2486, %v2484
    %v2491 = vpack.c.bf16 %v2487, %v2485
    %v2492 = vld [vmem:[#allocation10] sm:$0xff]
    %v2493 = vld [vmem:[#allocation10 + $0x8] sm:$0xff]
    %v2494 = vld [vmem:[#allocation10 + $0x10] sm:$0xff]
    %v2495 = vld [vmem:[#allocation10 + $0x18] sm:$0xff]
    %v2496 = vld [vmem:[#allocation10 + $0x20] sm:$0xff]
    %v2497 = vld [vmem:[#allocation10 + $0x28] sm:$0xff]
    %v2498 = vld [vmem:[#allocation10 + $0x30] sm:$0xff]
    %v2499 = vld [vmem:[#allocation10 + $0x38] sm:$0xff]
    %v2500 = vld [vmem:[#allocation10 + $0x40] sm:$0xff]
    %v2501 = vld [vmem:[#allocation10 + $0x48] sm:$0xff]
    %v2502 = vld [vmem:[#allocation10 + $0x50] sm:$0xff]
    %v2503 = vld [vmem:[#allocation10 + $0x58] sm:$0xff]
    %v2504 = vld [vmem:[#allocation10 + $0x60] sm:$0xff]
    %v2505 = vld [vmem:[#allocation10 + $0x68] sm:$0xff]
    %v2506 = vld [vmem:[#allocation10 + $0x70] sm:$0xff]
    %v2507 = vld [vmem:[#allocation10 + $0x78] sm:$0xff]
    %v2508 = vld [vmem:[#allocation10 + $0x80] sm:$0xff]
    %v2509 = vld [vmem:[#allocation10 + $0x88] sm:$0xff]
    %v2510 = vld [vmem:[#allocation10 + $0x90] sm:$0xff]
    %v2511 = vld [vmem:[#allocation10 + $0x98] sm:$0xff]
    %v2512 = vld [vmem:[#allocation10 + $0xa0] sm:$0xff]
    %v2513 = vld [vmem:[#allocation10 + $0xa8] sm:$0xff]
    %v2514 = vld [vmem:[#allocation10 + $0xb0] sm:$0xff]
    %v2515 = vld [vmem:[#allocation10 + $0xb8] sm:$0xff]
    %v2516 = vld [vmem:[#allocation10 + $0xc0] sm:$0xff]
    %v2517 = vld [vmem:[#allocation10 + $0xc8] sm:$0xff]
    %v2518 = vld [vmem:[#allocation10 + $0xd0] sm:$0xff]
    %v2519 = vld [vmem:[#allocation10 + $0xd8] sm:$0xff]
    %v2520 = vld [vmem:[#allocation10 + $0xe0] sm:$0xff]
    %v2521 = vld [vmem:[#allocation10 + $0xe8] sm:$0xff]
    %v2522 = vld [vmem:[#allocation10 + $0xf0] sm:$0xff]
    %v2523 = vld [vmem:[#allocation10 + $0xf8] sm:$0xff]
    %v2524 = vld [vmem:[%s6] sm:$0x3]
    %v2526 = vperm.slane %v2524, 0
    %v2527 = vperm.slane %v2524, 1
    %v2562 = vunpack.c.l.b16 %v2492
    %v2563 = vunpack.c.h.b16 %v2492
    %v2564 = vunpack.c.l.b16 %v2493
    %v2565 = vunpack.c.h.b16 %v2493
    %v2566 = vunpack.c.l.b16 %v2494
    %v2567 = vunpack.c.h.b16 %v2494
    %v2568 = vunpack.c.l.b16 %v2495
    %v2569 = vunpack.c.h.b16 %v2495
    %v2570 = vunpack.c.l.b16 %v2496
    %v2571 = vunpack.c.h.b16 %v2496
    %v2572 = vunpack.c.l.b16 %v2497
    %v2573 = vunpack.c.h.b16 %v2497
    %v2574 = vunpack.c.l.b16 %v2498
    %v2575 = vunpack.c.h.b16 %v2498
    %v2576 = vunpack.c.l.b16 %v2499
    %v2577 = vunpack.c.h.b16 %v2499
    %v2578 = vunpack.c.l.b16 %v2500
    %v2579 = vunpack.c.h.b16 %v2500
    %v2580 = vunpack.c.l.b16 %v2501
    %v2581 = vunpack.c.h.b16 %v2501
    %v2582 = vunpack.c.l.b16 %v2502
    %v2583 = vunpack.c.h.b16 %v2502
    %v2584 = vunpack.c.l.b16 %v2503
    %v2585 = vunpack.c.h.b16 %v2503
    %v2586 = vunpack.c.l.b16 %v2504
    %v2587 = vunpack.c.h.b16 %v2504
    %v2588 = vunpack.c.l.b16 %v2505
    %v2589 = vunpack.c.h.b16 %v2505
    %v2590 = vunpack.c.l.b16 %v2506
    %v2591 = vunpack.c.h.b16 %v2506
    %v2592 = vunpack.c.l.b16 %v2507
    %v2593 = vunpack.c.h.b16 %v2507
    %v2594 = vunpack.c.l.b16 %v2508
    %v2595 = vunpack.c.h.b16 %v2508
    %v2596 = vunpack.c.l.b16 %v2509
    %v2597 = vunpack.c.h.b16 %v2509
    %v2598 = vunpack.c.l.b16 %v2510
    %v2599 = vunpack.c.h.b16 %v2510
    %v2600 = vunpack.c.l.b16 %v2511
    %v2601 = vunpack.c.h.b16 %v2511
    %v2602 = vunpack.c.l.b16 %v2512
    %v2603 = vunpack.c.h.b16 %v2512
    %v2604 = vunpack.c.l.b16 %v2513
    %v2605 = vunpack.c.h.b16 %v2513
    %v2606 = vunpack.c.l.b16 %v2514
    %v2607 = vunpack.c.h.b16 %v2514
    %v2608 = vunpack.c.l.b16 %v2515
    %v2609 = vunpack.c.h.b16 %v2515
    %v2610 = vunpack.c.l.b16 %v2516
    %v2611 = vunpack.c.h.b16 %v2516
    %v2612 = vunpack.c.l.b16 %v2517
    %v2613 = vunpack.c.h.b16 %v2517
    %v2614 = vunpack.c.l.b16 %v2518
    %v2615 = vunpack.c.h.b16 %v2518
    %v2616 = vunpack.c.l.b16 %v2519
    %v2617 = vunpack.c.h.b16 %v2519
    %v2618 = vunpack.c.l.b16 %v2520
    %v2619 = vunpack.c.h.b16 %v2520
    %v2620 = vunpack.c.l.b16 %v2521
    %v2621 = vunpack.c.h.b16 %v2521
    %v2622 = vunpack.c.l.b16 %v2522
    %v2623 = vunpack.c.h.b16 %v2522
    %v2624 = vunpack.c.l.b16 %v2523
    %v2625 = vunpack.c.h.b16 %v2523
    %v2626 = vpack.c.b16 %v2564, %v2562
    %v2627 = vpack.c.b16 %v2565, %v2563
    %v2628 = vpack.c.b16 %v2568, %v2566
    %v2629 = vpack.c.b16 %v2569, %v2567
    %v2630 = vpack.c.b16 %v2572, %v2570
    %v2631 = vpack.c.b16 %v2573, %v2571
    %v2632 = vpack.c.b16 %v2576, %v2574
    %v2633 = vpack.c.b16 %v2577, %v2575
    %v2634 = vpack.c.b16 %v2580, %v2578
    %v2635 = vpack.c.b16 %v2581, %v2579
    %v2636 = vpack.c.b16 %v2584, %v2582
    %v2637 = vpack.c.b16 %v2585, %v2583
    %v2638 = vpack.c.b16 %v2588, %v2586
    %v2639 = vpack.c.b16 %v2589, %v2587
    %v2640 = vpack.c.b16 %v2592, %v2590
    %v2641 = vpack.c.b16 %v2593, %v2591
    %v2642 = vpack.c.b16 %v2596, %v2594
    %v2643 = vpack.c.b16 %v2597, %v2595
    %v2644 = vpack.c.b16 %v2600, %v2598
    %v2645 = vpack.c.b16 %v2601, %v2599
    %v2646 = vpack.c.b16 %v2604, %v2602
    %v2647 = vpack.c.b16 %v2605, %v2603
    %v2648 = vpack.c.b16 %v2608, %v2606
    %v2649 = vpack.c.b16 %v2609, %v2607
    %v2650 = vpack.c.b16 %v2612, %v2610
    %v2651 = vpack.c.b16 %v2613, %v2611
    %v2652 = vpack.c.b16 %v2616, %v2614
    %v2653 = vpack.c.b16 %v2617, %v2615
    %v2654 = vpack.c.b16 %v2620, %v2618
    %v2655 = vpack.c.b16 %v2621, %v2619
    %v2656 = vpack.c.b16 %v2624, %v2622
    %v2657 = vpack.c.b16 %v2625, %v2623
    %2690 = vmatpush.bf16.msra.mxu0 %v2640
    %2691 = vmatpush.bf16.msra.mxu0 %v2638
    %2692 = vmatpush.bf16.msra.mxu0 %v2636
    %2693 = vmatpush.bf16.msra.mxu0 %v2634
    %2694 = vmatpush.bf16.msra.mxu0 %v2632
    %2695 = vmatpush.bf16.msra.mxu0 %v2630
    %2696 = vmatpush.bf16.msra.mxu0 %v2628
    %2697 = vmatpush.bf16.msra.mxu0 %v2626
    %2698 = vmatmul.bf16.gmra.mxu0 %v2488
    %v2699 = vpop.f32.mrf.mxu0
    %v2700 = vadd.f32 %v2526, %v2699
    %v2701 = vpop.f32.mrf.mxu0
    %v2702 = vadd.f32 %v2526, %v2701
    %2703 = vmatmul.bf16.gmra.mxu0 %v2490
    %v2704 = vpop.f32.mrf.mxu0
    %v2705 = vadd.f32 %v2526, %v2704
    %v2706 = vpop.f32.mrf.mxu0
    %v2707 = vadd.f32 %v2526, %v2706
    %2708 = vdwg.mxu0
    %2709 = vmatpush.bf16.msra.mxu0 %v2656
    %2710 = vmatpush.bf16.msra.mxu0 %v2654
    %2711 = vmatpush.bf16.msra.mxu0 %v2652
    %2712 = vmatpush.bf16.msra.mxu0 %v2650
    %2713 = vmatpush.bf16.msra.mxu0 %v2648
    %2714 = vmatpush.bf16.msra.mxu0 %v2646
    %2715 = vmatpush.bf16.msra.mxu0 %v2644
    %2716 = vmatpush.bf16.msra.mxu0 %v2642
    %2717 = vmatmul.bf16.gmra.mxu0 %v2489
    %v2718 = vpop.f32.mrf.mxu0
    %v2719 = vadd.f32 %v2700, %v2718
    %v2720 = vpop.f32.mrf.mxu0
    %v2721 = vadd.f32 %v2702, %v2720
    %2722 = vmatmul.bf16.gmra.mxu0 %v2491
    %v2723 = vpop.f32.mrf.mxu0
    %v2724 = vadd.f32 %v2705, %v2723
    %v2725 = vpop.f32.mrf.mxu0
    %v2726 = vadd.f32 %v2707, %v2725
    %2727 = vdwg.mxu0
    %2728 = vmatpush.bf16.msra.mxu0 %v2641
    %2729 = vmatpush.bf16.msra.mxu0 %v2639
    %2730 = vmatpush.bf16.msra.mxu0 %v2637
    %2731 = vmatpush.bf16.msra.mxu0 %v2635
    %2732 = vmatpush.bf16.msra.mxu0 %v2633
    %2733 = vmatpush.bf16.msra.mxu0 %v2631
    %2734 = vmatpush.bf16.msra.mxu0 %v2629
    %2735 = vmatpush.bf16.msra.mxu0 %v2627
    %2736 = vmatmul.bf16.gmra.mxu0 %v2488
    %v2737 = vpop.f32.mrf.mxu0
    %v2738 = vadd.f32 %v2527, %v2737
    %v2739 = vpop.f32.mrf.mxu0
    %v2740 = vadd.f32 %v2527, %v2739
    %2741 = vmatmul.bf16.gmra.mxu0 %v2490
    %v2742 = vpop.f32.mrf.mxu0
    %v2743 = vadd.f32 %v2527, %v2742
    %v2744 = vpop.f32.mrf.mxu0
    %v2745 = vadd.f32 %v2527, %v2744
    %2746 = vdwg.mxu0
    %2747 = vmatpush.bf16.msra.mxu0 %v2657
    %2748 = vmatpush.bf16.msra.mxu0 %v2655
    %2749 = vmatpush.bf16.msra.mxu0 %v2653
    %2750 = vmatpush.bf16.msra.mxu0 %v2651
    %2751 = vmatpush.bf16.msra.mxu0 %v2649
    %2752 = vmatpush.bf16.msra.mxu0 %v2647
    %2753 = vmatpush.bf16.msra.mxu0 %v2645
    %2754 = vmatpush.bf16.msra.mxu0 %v2643
    %2755 = vmatmul.bf16.gmra.mxu0 %v2489
    %v2756 = vpop.f32.mrf.mxu0
    %v2757 = vadd.f32 %v2738, %v2756
    %v2758 = vpop.f32.mrf.mxu0
    %v2759 = vadd.f32 %v2740, %v2758
    %2760 = vmatmul.bf16.gmra.mxu0 %v2491
    %v2761 = vpop.f32.mrf.mxu0
    %v2762 = vadd.f32 %v2743, %v2761
    %v2763 = vpop.f32.mrf.mxu0
    %v2764 = vadd.f32 %v2745, %v2763
    %2765 = vdwg.mxu0
    %v2766 = vmax.f32 %v2719, 0.0
    %v2767 = vmax.f32 %v2757, 0.0
    %v2768 = vmax.f32 %v2721, 0.0
    %v2769 = vmax.f32 %v2759, 0.0
    %v2770 = vmax.f32 %v2724, 0.0
    %v2771 = vmax.f32 %v2762, 0.0
    %v2772 = vmax.f32 %v2726, 0.0
    %v2773 = vmax.f32 %v2764, 0.0
    %v2774 = vpack.c.bf16 %v2768, %v2766
    %v2775 = vpack.c.bf16 %v2769, %v2767
    %v2776 = vpack.c.bf16 %v2772, %v2770
    %v2777 = vpack.c.bf16 %v2773, %v2771
    %v2778 = vld [vmem:[#allocation11] sm:$0xf]
    %v2779 = vld [vmem:[#allocation11 + $0x4] sm:$0xf]
    %v2780 = vld [vmem:[#allocation11 + $0x8] sm:$0xf]
    %v2781 = vld [vmem:[#allocation11 + $0xc] sm:$0xf]
    %v2782 = vld [vmem:[#allocation11 + $0x10] sm:$0xf]
    %v2783 = vld [vmem:[#allocation11 + $0x14] sm:$0xf]
    %v2784 = vld [vmem:[#allocation11 + $0x18] sm:$0xf]
    %v2785 = vld [vmem:[#allocation11 + $0x1c] sm:$0xf]
    %v2786 = vld [vmem:[#allocation11 + $0x20] sm:$0xf]
    %v2787 = vld [vmem:[#allocation11 + $0x24] sm:$0xf]
    %v2788 = vld [vmem:[#allocation11 + $0x28] sm:$0xf]
    %v2789 = vld [vmem:[#allocation11 + $0x2c] sm:$0xf]
    %v2790 = vld [vmem:[#allocation11 + $0x30] sm:$0xf]
    %v2791 = vld [vmem:[#allocation11 + $0x34] sm:$0xf]
    %v2792 = vld [vmem:[#allocation11 + $0x38] sm:$0xf]
    %v2793 = vld [vmem:[#allocation11 + $0x3c] sm:$0xf]
    %v2794 = vld [vmem:[#allocation11 + $0x40] sm:$0xf]
    %v2795 = vld [vmem:[#allocation11 + $0x44] sm:$0xf]
    %v2796 = vld [vmem:[#allocation11 + $0x48] sm:$0xf]
    %v2797 = vld [vmem:[#allocation11 + $0x4c] sm:$0xf]
    %v2798 = vld [vmem:[#allocation11 + $0x50] sm:$0xf]
    %v2799 = vld [vmem:[#allocation11 + $0x54] sm:$0xf]
    %v2800 = vld [vmem:[#allocation11 + $0x58] sm:$0xf]
    %v2801 = vld [vmem:[#allocation11 + $0x5c] sm:$0xf]
    %v2802 = vld [vmem:[#allocation11 + $0x60] sm:$0xf]
    %v2803 = vld [vmem:[#allocation11 + $0x64] sm:$0xf]
    %v2804 = vld [vmem:[#allocation11 + $0x68] sm:$0xf]
    %v2805 = vld [vmem:[#allocation11 + $0x6c] sm:$0xf]
    %v2806 = vld [vmem:[#allocation11 + $0x70] sm:$0xf]
    %v2807 = vld [vmem:[#allocation11 + $0x74] sm:$0xf]
    %v2808 = vld [vmem:[#allocation11 + $0x78] sm:$0xf]
    %v2809 = vld [vmem:[#allocation11 + $0x7c] sm:$0xf]
    %v2810 = vld [vmem:[%s8] sm:$0x1]
    %v2812 = vperm.slane %v2810, 0
    %v2846 = vunpack.c.l.b16 %v2778
    %v2847 = vunpack.c.l.b16 %v2779
    %v2848 = vunpack.c.l.b16 %v2780
    %v2849 = vunpack.c.l.b16 %v2781
    %v2850 = vunpack.c.l.b16 %v2782
    %v2851 = vunpack.c.l.b16 %v2783
    %v2852 = vunpack.c.l.b16 %v2784
    %v2853 = vunpack.c.l.b16 %v2785
    %v2854 = vunpack.c.l.b16 %v2786
    %v2855 = vunpack.c.l.b16 %v2787
    %v2856 = vunpack.c.l.b16 %v2788
    %v2857 = vunpack.c.l.b16 %v2789
    %v2858 = vunpack.c.l.b16 %v2790
    %v2859 = vunpack.c.l.b16 %v2791
    %v2860 = vunpack.c.l.b16 %v2792
    %v2861 = vunpack.c.l.b16 %v2793
    %v2862 = vunpack.c.l.b16 %v2794
    %v2863 = vunpack.c.l.b16 %v2795
    %v2864 = vunpack.c.l.b16 %v2796
    %v2865 = vunpack.c.l.b16 %v2797
    %v2866 = vunpack.c.l.b16 %v2798
    %v2867 = vunpack.c.l.b16 %v2799
    %v2868 = vunpack.c.l.b16 %v2800
    %v2869 = vunpack.c.l.b16 %v2801
    %v2870 = vunpack.c.l.b16 %v2802
    %v2871 = vunpack.c.l.b16 %v2803
    %v2872 = vunpack.c.l.b16 %v2804
    %v2873 = vunpack.c.l.b16 %v2805
    %v2874 = vunpack.c.l.b16 %v2806
    %v2875 = vunpack.c.l.b16 %v2807
    %v2876 = vunpack.c.l.b16 %v2808
    %v2877 = vunpack.c.l.b16 %v2809
    %v2878 = vpack.c.b16 %v2847, %v2846
    %v2879 = vpack.c.b16 %v2849, %v2848
    %v2880 = vpack.c.b16 %v2851, %v2850
    %v2881 = vpack.c.b16 %v2853, %v2852
    %v2882 = vpack.c.b16 %v2855, %v2854
    %v2883 = vpack.c.b16 %v2857, %v2856
    %v2884 = vpack.c.b16 %v2859, %v2858
    %v2885 = vpack.c.b16 %v2861, %v2860
    %v2886 = vpack.c.b16 %v2863, %v2862
    %v2887 = vpack.c.b16 %v2865, %v2864
    %v2888 = vpack.c.b16 %v2867, %v2866
    %v2889 = vpack.c.b16 %v2869, %v2868
    %v2890 = vpack.c.b16 %v2871, %v2870
    %v2891 = vpack.c.b16 %v2873, %v2872
    %v2892 = vpack.c.b16 %v2875, %v2874
    %v2893 = vpack.c.b16 %v2877, %v2876
    %2910 = vmatpush.bf16.msra.mxu0 %v2885
    %2911 = vmatpush.bf16.msra.mxu0 %v2884
    %2912 = vmatpush.bf16.msra.mxu0 %v2883
    %2913 = vmatpush.bf16.msra.mxu0 %v2882
    %2914 = vmatpush.bf16.msra.mxu0 %v2881
    %2915 = vmatpush.bf16.msra.mxu0 %v2880
    %2916 = vmatpush.bf16.msra.mxu0 %v2879
    %2917 = vmatpush.bf16.msra.mxu0 %v2878
    %2918 = vmatmul.bf16.gmra.mxu0 %v2774
    %v2919 = vpop.f32.mrf.mxu0
    %v2920 = vadd.f32 %v2812, %v2919
    %v2921 = vpop.f32.mrf.mxu0
    %v2922 = vadd.f32 %v2812, %v2921
    %2923 = vmatmul.bf16.gmra.mxu0 %v2776
    %v2924 = vpop.f32.mrf.mxu0
    %v2925 = vadd.f32 %v2812, %v2924
    %v2926 = vpop.f32.mrf.mxu0
    %v2927 = vadd.f32 %v2812, %v2926
    %2928 = vdwg.mxu0
    %2929 = vmatpush.bf16.msra.mxu0 %v2893
    %2930 = vmatpush.bf16.msra.mxu0 %v2892
    %2931 = vmatpush.bf16.msra.mxu0 %v2891
    %2932 = vmatpush.bf16.msra.mxu0 %v2890
    %2933 = vmatpush.bf16.msra.mxu0 %v2889
    %2934 = vmatpush.bf16.msra.mxu0 %v2888
    %2935 = vmatpush.bf16.msra.mxu0 %v2887
    %2936 = vmatpush.bf16.msra.mxu0 %v2886
    %2937 = vmatmul.bf16.gmra.mxu0 %v2775
    %v2938 = vpop.f32.mrf.mxu0
    %v2939 = vadd.f32 %v2920, %v2938
    %v2940 = vpop.f32.mrf.mxu0
    %v2941 = vadd.f32 %v2922, %v2940
    %2942 = vmatmul.bf16.gmra.mxu0 %v2777
    %v2943 = vpop.f32.mrf.mxu0
    %v2944 = vadd.f32 %v2925, %v2943
    %v2945 = vpop.f32.mrf.mxu0
    %v2946 = vadd.f32 %v2927, %v2945
    %2947 = vdwg.mxu0
    %v2948 = vmax.f32 %v2939, 0.0
    %v2949 = vmax.f32 %v2941, 0.0
    %v2950 = vmax.f32 %v2944, 0.0
    %v2951 = vmax.f32 %v2946, 0.0
    %v2952 = vpack.c.bf16 %v2949, %v2948
    %v2953 = vpack.c.bf16 %v2951, %v2950
    %v2954 = vld [vmem:[#allocation13] sm:$0xf]
    %v2955 = vld [vmem:[#allocation13 + $0x4] sm:$0xf]
    %v2956 = vld [vmem:[#allocation13 + $0x8] sm:$0xf]
    %v2957 = vld [vmem:[#allocation13 + $0xc] sm:$0xf]
    %v2958 = vld [vmem:[#allocation13 + $0x10] sm:$0xf]
    %v2959 = vld [vmem:[#allocation13 + $0x14] sm:$0xf]
    %v2960 = vld [vmem:[#allocation13 + $0x18] sm:$0xf]
    %v2961 = vld [vmem:[#allocation13 + $0x1c] sm:$0xf]
    %v2962 = vld [vmem:[#allocation13 + $0x20] sm:$0xf]
    %v2963 = vld [vmem:[#allocation13 + $0x24] sm:$0xf]
    %v2964 = vld [vmem:[#allocation13 + $0x28] sm:$0xf]
    %v2965 = vld [vmem:[#allocation13 + $0x2c] sm:$0xf]
    %v2966 = vld [vmem:[#allocation13 + $0x30] sm:$0xf]
    %v2967 = vld [vmem:[#allocation13 + $0x34] sm:$0xf]
    %v2968 = vld [vmem:[#allocation13 + $0x38] sm:$0xf]
    %v2969 = vld [vmem:[#allocation13 + $0x3c] sm:$0xf]
    %v2970 = vld [vmem:[%s10] sm:$0x1]
    %v2972 = vperm.slane %v2970, 0
    %v2990 = vunpack.c.l.b16 %v2954
    %v2991 = vunpack.c.l.b16 %v2955
    %v2992 = vunpack.c.l.b16 %v2956
    %v2993 = vunpack.c.l.b16 %v2957
    %v2994 = vunpack.c.l.b16 %v2958
    %v2995 = vunpack.c.l.b16 %v2959
    %v2996 = vunpack.c.l.b16 %v2960
    %v2997 = vunpack.c.l.b16 %v2961
    %v2998 = vunpack.c.l.b16 %v2962
    %v2999 = vunpack.c.l.b16 %v2963
    %v3000 = vunpack.c.l.b16 %v2964
    %v3001 = vunpack.c.l.b16 %v2965
    %v3002 = vunpack.c.l.b16 %v2966
    %v3003 = vunpack.c.l.b16 %v2967
    %v3004 = vunpack.c.l.b16 %v2968
    %v3005 = vunpack.c.l.b16 %v2969
    %v3006 = vpack.c.b16 %v2991, %v2990
    %v3007 = vpack.c.b16 %v2993, %v2992
    %v3008 = vpack.c.b16 %v2995, %v2994
    %v3009 = vpack.c.b16 %v2997, %v2996
    %v3010 = vpack.c.b16 %v2999, %v2998
    %v3011 = vpack.c.b16 %v3001, %v3000
    %v3012 = vpack.c.b16 %v3003, %v3002
    %v3013 = vpack.c.b16 %v3005, %v3004
    %3022 = vmatpush.bf16.msra.mxu0 %v3013
    %3023 = vmatpush.bf16.msra.mxu0 %v3012
    %3024 = vmatpush.bf16.msra.mxu0 %v3011
    %3025 = vmatpush.bf16.msra.mxu0 %v3010
    %3026 = vmatpush.bf16.msra.mxu0 %v3009
    %3027 = vmatpush.bf16.msra.mxu0 %v3008
    %3028 = vmatpush.bf16.msra.mxu0 %v3007
    %3029 = vmatpush.bf16.msra.mxu0 %v3006
    %3030 = vmatmul.bf16.gmra.mxu0 %v2952
    %v3031 = vpop.f32.mrf.mxu0
    %v3032 = vadd.f32 %v2972, %v3031
    %v3033 = vpop.f32.mrf.mxu0
    %v3034 = vadd.f32 %v2972, %v3033
    %3035 = vmatmul.bf16.gmra.mxu0 %v2953
    %v3036 = vpop.f32.mrf.mxu0
    %v3037 = vadd.f32 %v2972, %v3036
    %v3038 = vpop.f32.mrf.mxu0
    %v3039 = vadd.f32 %v2972, %v3038
    %3040 = vdwg.mxu0
    %3041 = vst [vmem:[#allocation14] sm:$0xff] %v3032
    %3042 = vst [vmem:[#allocation14 + $0x8] sm:$0xff] %v3034
    %3043 = vst [vmem:[#allocation14 + $0x10] sm:$0xff] %v3037
    %3044 = vst [vmem:[#allocation14 + $0x18] sm:$0xff] %v3039
    // Predicated region
    $region74: #{tpu_custom_call.1} parent=1 // pred_check
      _
    $region75: #{tpu_custom_call.1} parent=1 // pred_check_branch
      %3046 = sbr.rel (0) target = $region77
    $region76: #{tpu_custom_call.1} parent=1 // pred_region
      %3048 = vsyncadd [#allocation4], 0
      %s3049 = sshll.u32 [#allocation14], 4
      %s3050 = int_to_ptr.vmem [resolvable:$true] %s3049
      %s3051 = sshll.u32 %s11, 4
      %s3052 = int_to_ptr.hbm [resolvable:$true] %s3051
      %3057 = dma.vmem_to_hbm [thread:$0]  %s3050, 512, %s3052, [#allocation4], 128, 128, 8
    $region77: #{tpu_custom_call.1} parent=1 // pred_fallthru
      _
    // Predicated region
    $region78: #{tpu_custom_call.1} parent=1 // pred_check
      _
    $region79: #{tpu_custom_call.1} parent=1 // pred_check_branch
      %3059 = sbr.rel (0) target = $region81
    $region80: #{tpu_custom_call.1} parent=1 // pred_region
      %3061 = dma.done [#allocation4], 512
    $region81: #{tpu_custom_call.1} parent=1 // pred_fallthru
      _
    %3062 = vsyncpa [#allocation3], 1
    %3063 = vsyncpa [#allocation6], 1
    %3064 = vsyncpa [#allocation9], 1
    %3065 = vsyncpa [#allocation12], 1
    %3066 = vsyncpa [#allocation4], 1

</llo_original>
